<compile_context>
chip_gen: v7x
topology: tpu7x:2x2x1
jax: 0.10.0
libtpu: 0.0.40
codegen_flags: <defaults>
</compile_context>

<pallas_src>
import jax
import jax.numpy as jnp
from jax import lax
from jax.experimental import pallas as pl
from jax.experimental.pallas import tpu as pltpu


# ----------------------------------------------------------------------------
# helpers
# ----------------------------------------------------------------------------
_VMEM_LIMIT_CACHE = None


def _vmem_limit_bytes():
    """Generation-aware scoped-VMEM cap with headroom for Mosaic scratch."""
    global _VMEM_LIMIT_CACHE
    if _VMEM_LIMIT_CACHE is None:
        cap = 64 * 1024 * 1024  # conservative fallback (works on all gens)
        try:
            cap = int(pltpu.get_tpu_info().vmem_capacity_bytes)
        except Exception:
            pass
        _VMEM_LIMIT_CACHE = max(32 * 1024 * 1024,
                                min(int(cap * 0.85), 100 * 1024 * 1024))
    return _VMEM_LIMIT_CACHE


def _largest_divisor_at_most(n, cap):
    cap = max(1, min(n, cap))
    for t in range(cap, 0, -1):
        if n % t == 0:
            return t
    return 1


def _pick_cout_tile(cout):
    # MXU/lane aligned output-channel tile; bounded fallback keeps the
    # (H*W, tco) f32 accumulator from blowing up when Cout % 128 != 0.
    for t in (256, 128):
        if cout % t == 0:
            return t
    return _largest_divisor_at_most(cout, 256)


def _pick_convt_row_tile(h, wd, cin, cout, vmem_limit):
    # per-row VMEM bytes: double-buffered bf16 in/out tiles + f32 GEMM temp.
    per_row = wd * (2 * 2 * cin            # x tile (bf16, double buffered)
                    + 2 * 2 * 4 * cout     # out tile (bf16, double buffered)
                    + 4 * 4 * cout)        # f32 matmul result temp
    budget = max(vmem_limit // 2, 1)
    cap = max(1, budget // max(per_row, 1))
    return _largest_divisor_at_most(h, cap)


# ----------------------------------------------------------------------------
# Kernel 1: ConvTranspose2d(k=2, s=2) as ONE tiled GEMM (K=Cin, N=4*Cout) with
#           the pixel shuffle folded into the output layout (N,H,2,W,2*Cout).
# ----------------------------------------------------------------------------
def _convt_kernel(x_ref, w_ref, b_ref, o_ref):
    # x_ref: (1, TH, W, Cin)        bf16
    # w_ref: (Cin, 4*Cout)          bf16   columns ordered [di, dj, oc]
    # b_ref: (1, 4*Cout)            f32
    # o_ref: (1, TH, 2, W, 2*Cout)  bf16   o[0, t, di, j, dj*Cout + oc]
    _, th, wd, cin = x_ref.shape
    c2 = o_ref.shape[4]                              # 2*Cout
    xm = x_ref[0].reshape(th * wd, cin)
    y = jnp.dot(xm, w_ref[...], preferred_element_type=jnp.float32) + b_ref[...]
    o_ref[0, :, 0, :, :] = y[:, :c2].reshape(th, wd, c2).astype(o_ref.dtype)
    o_ref[0, :, 1, :, :] = y[:, c2:].reshape(th, wd, c2).astype(o_ref.dtype)


def conv_transpose2x2_nhwc(x, w, b):
    """x: (N,H,W,Cin) NHWC; w: torch layout (Cin, Cout, 2, 2); b: (Cout,).
    Returns (N, 2H, 2W, Cout) in bfloat16 (consumed by the fused conv kernel)."""
    n, h, wd, cin = x.shape
    cout = w.shape[1]
    # single fused weight: rows=Cin, columns ordered (di, dj, oc)
    w4 = jnp.transpose(w, (0, 2, 3, 1)).reshape(cin, 4 * cout).astype(jnp.bfloat16)
    b4 = jnp.tile(b, 4).reshape(1, 4 * cout).astype(jnp.float32)
    xb = x.astype(jnp.bfloat16)

    vmem_limit = _vmem_limit_bytes()
    th = _pick_convt_row_tile(h, wd, cin, cout, vmem_limit)
    grid = (n, h // th)
    flops = 2 * n * h * wd * cin * 4 * cout
    bytes_accessed = (xb.size * 2 + (n * (h // th)) * w4.size * 2 + b4.size * 4
                      + n * h * wd * 4 * cout * 2)

    yp = pl.pallas_call(
        _convt_kernel,
        out_shape=jax.ShapeDtypeStruct((n, h, 2, wd, 2 * cout), jnp.bfloat16),
        grid=grid,
        in_specs=[
            pl.BlockSpec((1, th, wd, cin), lambda i, j: (i, j, 0, 0)),
            pl.BlockSpec((cin, 4 * cout), lambda i, j: (0, 0)),
            pl.BlockSpec((1, 4 * cout), lambda i, j: (0, 0)),
        ],
        out_specs=pl.BlockSpec((1, th, 2, wd, 2 * cout),
                               lambda i, j: (i, j, 0, 0, 0)),
        compiler_params=pltpu.CompilerParams(
            dimension_semantics=("parallel", "parallel"),
            vmem_limit_bytes=vmem_limit),
        cost_estimate=pl.CostEstimate(flops=flops, transcendentals=0,
                                      bytes_accessed=bytes_accessed),
    )(xb, w4, b4)
    # pixel shuffle == contiguous reshape (no transpose / extra HBM pass)
    return yp.reshape(n, 2 * h, 2 * wd, cout)


# ----------------------------------------------------------------------------
# Kernel 2: fused (optional concat) + 3x3 conv (pad=1) + BN affine + ReLU.
# "Same" padding handled in-kernel: zero-padded column shifts build an
# im2col-lite strip (HW, 3*Cin); row taps become 3 grouped GEMMs that hit
# aligned sub-ranges of the f32 accumulator (no masks, no rolls).
# ----------------------------------------------------------------------------
def _conv3x3_bn_relu_body(x3, w_ref, sc_ref, sh_ref, o_ref, acc_ref):
    # x3: (H, W, C) bf16 value; w_ref: (3, 3*C, TCo) bf16; sc/sh: (1, TCo) f32
    h, wd, c = x3.shape
    hw = h * wd
    tco = o_ref.shape[3]
    # strip[i*W + j] = [x[i, j-1] | x[i, j] | x[i, j+1]]   (zeros at W edges)
    zcol = jnp.zeros((h, 1, c), x3.dtype)
    xm = jnp.concatenate([zcol, x3[:, :wd - 1, :]], axis=1)   # x[i, j-1]
    xp = jnp.concatenate([x3[:, 1:, :], zcol], axis=1)        # x[i, j+1]
    strip = jnp.concatenate([xm, x3, xp], axis=2).reshape(hw, 3 * c)
    # kh = 1 (same row): full-range GEMM initializes the accumulator.
    acc_ref[...] = jnp.dot(strip, w_ref[1], preferred_element_type=jnp.float32)
    if h > 1:
        # kh = 0 (row above): output rows [W, HW) use input rows [0, HW-W)
        acc_ref[pl.ds(wd, hw - wd), :] += jnp.dot(
            strip[:hw - wd, :], w_ref[0], preferred_element_type=jnp.float32)
        # kh = 2 (row below): output rows [0, HW-W) use input rows [W, HW)
        acc_ref[pl.ds(0, hw - wd), :] += jnp.dot(
            strip[wd:, :], w_ref[2], preferred_element_type=jnp.float32)
    y = jnp.maximum(acc_ref[...] * sc_ref[...] + sh_ref[...], 0.0)
    o_ref[0] = y.reshape(h, wd, tco).astype(o_ref.dtype)


def _conv1_kernel(xa_ref, xb_ref, w_ref, sc_ref, sh_ref, o_ref, acc_ref):
    # Fused concat([xa, xb], C) -> 3x3 conv -> BN -> ReLU.  The concat is a
    # cheap in-VMEM lane concat; it is never materialized in HBM.
    x3 = jnp.concatenate([xa_ref[0], xb_ref[0]], axis=2)
    _conv3x3_bn_relu_body(x3, w_ref, sc_ref, sh_ref, o_ref, acc_ref)


def _conv2_kernel(x_ref, w_ref, sc_ref, sh_ref, o_ref, acc_ref):
    _conv3x3_bn_relu_body(x_ref[0], w_ref, sc_ref, sh_ref, o_ref, acc_ref)


def _bn_fold(conv_b, gamma, beta, mean, var, eps):
    scale = (gamma / jnp.sqrt(var + eps)).astype(jnp.float32)
    shift = ((conv_b - mean) * scale + beta).astype(jnp.float32)
    return scale.reshape(1, -1), shift.reshape(1, -1)


def _conv_weight_grouped(w):
    """torch (Cout, Cin, 3, 3) -> (3, 3*Cin, Cout) bf16 ordered [kh][kw, cin]."""
    cout, cin = w.shape[0], w.shape[1]
    return jnp.transpose(w, (2, 3, 1, 0)).reshape(3, 3 * cin, cout).astype(jnp.bfloat16)


def conv3x3_bn_relu_fused_concat(x2, x1, w, conv_b, gamma, beta, mean, var,
                                 eps=1e-5, out_dtype=jnp.bfloat16):
    """Fused [concat(x2, x1, channel) -> 3x3 conv(pad=1) -> BN -> ReLU].
    x2: (N,H,W,C2) bf16; x1: (N,H,W,C1) bf16; w: torch layout (Cout, C2+C1, 3, 3)."""
    n, h, wd, c2 = x2.shape
    c1 = x1.shape[3]
    cout = w.shape[0]
    w_grp = _conv_weight_grouped(w)
    scale, shift = _bn_fold(conv_b, gamma, beta, mean, var, eps)
    tco = _pick_cout_tile(cout)
    n_ct = cout // tco
    grid = (n, n_ct)
    vmem_limit = _vmem_limit_bytes()
    flops = 2 * n * h * wd * (c1 + c2) * 9 * cout
    bytes_accessed = ((x2.size + x1.size) * 2 * n_ct + n * n_ct * w_grp.size * 2
                      + n * h * wd * cout * jnp.dtype(out_dtype).itemsize)
    # TODO(synk): add an H row-tile axis (1-row halo) so whole-image blocks +
    # the (H*W, tco) f32 accumulator stay under v7x's 64 MiB at production sizes.
    return pl.pallas_call(
        _conv1_kernel,
        out_shape=jax.ShapeDtypeStruct((n, h, wd, cout), out_dtype),
        grid=grid,
        in_specs=[
            pl.BlockSpec((1, h, wd, c2), lambda i, j: (i, 0, 0, 0)),
            pl.BlockSpec((1, h, wd, c1), lambda i, j: (i, 0, 0, 0)),
            pl.BlockSpec((3, 3 * (c2 + c1), tco), lambda i, j: (0, 0, j)),
            pl.BlockSpec((1, tco), lambda i, j: (0, j)),
            pl.BlockSpec((1, tco), lambda i, j: (0, j)),
        ],
        out_specs=pl.BlockSpec((1, h, wd, tco), lambda i, j: (i, 0, 0, j)),
        scratch_shapes=[pltpu.VMEM((h * wd, tco), jnp.float32)],
        compiler_params=pltpu.CompilerParams(
            dimension_semantics=("parallel", "parallel"),
            vmem_limit_bytes=vmem_limit),
        cost_estimate=pl.CostEstimate(flops=flops, transcendentals=0,
                                      bytes_accessed=bytes_accessed),
    )(x2, x1, w_grp, scale, shift)


def conv3x3_bn_relu(x, w, conv_b, gamma, beta, mean, var,
                    eps=1e-5, out_dtype=jnp.float32):
    """Fused 3x3 conv(pad=1) -> BN -> ReLU.  x: (N,H,W,Cin) bf16."""
    n, h, wd, cin = x.shape
    cout = w.shape[0]
    w_grp = _conv_weight_grouped(w)
    scale, shift = _bn_fold(conv_b, gamma, beta, mean, var, eps)
    tco = _pick_cout_tile(cout)
    n_ct = cout // tco
    grid = (n, n_ct)
    vmem_limit = _vmem_limit_bytes()
    flops = 2 * n * h * wd * cin * 9 * cout
    bytes_accessed = (x.size * 2 * n_ct + n * n_ct * w_grp.size * 2
                      + n * h * wd * cout * jnp.dtype(out_dtype).itemsize)
    return pl.pallas_call(
        _conv2_kernel,
        out_shape=jax.ShapeDtypeStruct((n, h, wd, cout), out_dtype),
        grid=grid,
        in_specs=[
            pl.BlockSpec((1, h, wd, cin), lambda i, j: (i, 0, 0, 0)),
            pl.BlockSpec((3, 3 * cin, tco), lambda i, j: (0, 0, j)),
            pl.BlockSpec((1, tco), lambda i, j: (0, j)),
            pl.BlockSpec((1, tco), lambda i, j: (0, j)),
        ],
        out_specs=pl.BlockSpec((1, h, wd, tco), lambda i, j: (i, 0, 0, j)),
        scratch_shapes=[pltpu.VMEM((h * wd, tco), jnp.float32)],
        compiler_params=pltpu.CompilerParams(
            dimension_semantics=("parallel", "parallel"),
            vmem_limit_bytes=vmem_limit),
        cost_estimate=pl.CostEstimate(flops=flops, transcendentals=0,
                                      bytes_accessed=bytes_accessed),
    )(x, w_grp, scale, shift)


# ----------------------------------------------------------------------------
# Up.forward  (NCHW in / NCHW out, like PyTorch)
# ----------------------------------------------------------------------------
@jax.jit
def up_forward(params, x1_nchw, x2_nchw):
    x1 = jnp.transpose(x1_nchw, (0, 2, 3, 1)).astype(jnp.bfloat16)   # NHWC bf16
    x2 = jnp.transpose(x2_nchw, (0, 2, 3, 1)).astype(jnp.bfloat16)
    # 1) upsample: ConvTranspose2d(in_ch, in_ch//2, 2, 2)  [single fused GEMM]
    x1u = conv_transpose2x2_nhwc(x1, params["up_w"], params["up_b"])
    # 2) pad x1 to match x2 spatially (F.pad semantics; no-op when sizes match)
    # TODO(synk): fold this (rare) pad into conv1 via index offsets instead of
    # a separate XLA pad when sizes mismatch.
    diff_h = x2.shape[1] - x1u.shape[1]
    diff_w = x2.shape[2] - x1u.shape[2]
    if diff_h or diff_w:
        x1u = jnp.pad(x1u, ((0, 0),
                            (diff_h // 2, diff_h - diff_h // 2),
                            (diff_w // 2, diff_w - diff_w // 2),
                            (0, 0)))
    # 3+4a) concat [x2, x1] fused into the first (conv -> BN -> ReLU)
    y = conv3x3_bn_relu_fused_concat(
        x2, x1u, params["c1_w"], params["c1_b"],
        params["bn1_g"], params["bn1_b"], params["bn1_m"], params["bn1_v"],
        out_dtype=jnp.bfloat16)
    # 4b) second (conv -> BN -> ReLU); f32 output to match the module boundary
    y = conv3x3_bn_relu(
        y, params["c2_w"], params["c2_b"],
        params["bn2_g"], params["bn2_b"], params["bn2_m"], params["bn2_v"],
        out_dtype=jnp.float32)
    return jnp.transpose(y, (0, 3, 1, 2))  # -> NCHW


# ----------------------------------------------------------------------------
# Pure-JAX f32 reference (same math, via lax.conv) for a correctness check
# ----------------------------------------------------------------------------
def _ref_conv_bn_relu(x, w, conv_b, gamma, beta, mean, var, eps=1e-5):
    w_hwio = jnp.transpose(w, (2, 3, 1, 0))
    y = lax.conv_general_dilated(
        x, w_hwio, (1, 1), "SAME",
        dimension_numbers=("NHWC", "HWIO", "NHWC")) + conv_b
    y = (y - mean) / jnp.sqrt(var + eps) * gamma + beta
    return jnp.maximum(y, 0.0)


def up_forward_ref(params, x1_nchw, x2_nchw):
    x1 = jnp.transpose(x1_nchw, (0, 2, 3, 1))
    x2 = jnp.transpose(x2_nchw, (0, 2, 3, 1))
    N, H, W, Cin = x1.shape
    w = params["up_w"]
    Cout = w.shape[1]
    y = jnp.einsum("nijc,codk->nidjko", x1, w)  # d=di, k=dj
    x1 = y.reshape(N, 2 * H, 2 * W, Cout) + params["up_b"]
    diff_h = x2.shape[1] - x1.shape[1]
    diff_w = x2.shape[2] - x1.shape[2]
    x1 = jnp.pad(x1, ((0, 0),
                      (diff_h // 2, diff_h - diff_h // 2),
                      (diff_w // 2, diff_w - diff_w // 2),
                      (0, 0)))
    x = jnp.concatenate([x2, x1], axis=-1)
    y = _ref_conv_bn_relu(x, params["c1_w"], params["c1_b"],
                          params["bn1_g"], params["bn1_b"],
                          params["bn1_m"], params["bn1_v"])
    y = _ref_conv_bn_relu(y, params["c2_w"], params["c2_b"],
                          params["bn2_g"], params["bn2_b"],
                          params["bn2_m"], params["bn2_v"])
    return jnp.transpose(y, (0, 3, 1, 2))


# ----------------------------------------------------------------------------
def init_params(key, in_ch, out_ch):
    ks = jax.random.split(key, 12)
    half = in_ch // 2
    return {
        # ConvTranspose2d(in_ch, in_ch//2, 2, 2): weight (in_ch, in_ch//2, 2, 2)
        "up_w": 0.1 * jax.random.normal(ks[0], (in_ch, half, 2, 2), jnp.float32),
        "up_b": 0.1 * jax.random.normal(ks[1], (half,), jnp.float32),
        # Conv2d(in_ch, out_ch, 3, padding=1)
        "c1_w": 0.1 * jax.random.normal(ks[2], (out_ch, in_ch, 3, 3), jnp.float32),
        "c1_b": 0.1 * jax.random.normal(ks[3], (out_ch,), jnp.float32),
        "bn1_g": 1.0 + 0.1 * jax.random.normal(ks[4], (out_ch,), jnp.float32),
        "bn1_b": 0.1 * jax.random.normal(ks[5], (out_ch,), jnp.float32),
        "bn1_m": 0.1 * jax.random.normal(ks[6], (out_ch,), jnp.float32),
        "bn1_v": 0.5 + 0.5 * jax.random.uniform(ks[7], (out_ch,), jnp.float32),
        # Conv2d(out_ch, out_ch, 3, padding=1)
        "c2_w": 0.1 * jax.random.normal(ks[8], (out_ch, out_ch, 3, 3), jnp.float32),
        "c2_b": 0.1 * jax.random.normal(ks[9], (out_ch,), jnp.float32),
        "bn2_g": 1.0 + 0.1 * jax.random.normal(ks[10], (out_ch,), jnp.float32),
        "bn2_b": 0.1 * jax.random.normal(ks[11], (out_ch,), jnp.float32),
        "bn2_m": jnp.zeros((out_ch,), jnp.float32),
        "bn2_v": jnp.ones((out_ch,), jnp.float32),
    }


if __name__ == "__main__":
    key = jax.random.PRNGKey(0)
    k_p, k_x1, k_x2 = jax.random.split(key, 3)

    in_ch, out_ch = 8, 4
    N, H1, W1 = 2, 8, 8                       # x1: low-res feature map
    x1 = jax.random.normal(k_x1, (N, in_ch, H1, W1), jnp.float32)          # NCHW
    x2 = jax.random.normal(k_x2, (N, in_ch // 2, 2 * H1, 2 * W1), jnp.float32)

    params = init_params(k_p, in_ch, out_ch)

    out = jax.block_until_ready(up_forward(params, x1, x2))
    ref = jax.block_until_ready(up_forward_ref(params, x1, x2))

    assert out.shape == (N, out_ch, 2 * H1, 2 * W1)
    max_err = float(jnp.max(jnp.abs(out - ref)))
    # bf16 MXU inputs with f32 accumulation -> loosened tolerance vs f32 ref.
    assert jnp.allclose(out, ref, atol=3e-2, rtol=3e-2), max_err

    print("KERNEL_OK")
</pallas_src>

<mosaic_0001>
module attributes {stable_mosaic.version = 11 : i64} {
  func.func @_convt_kernel(%arg0: i32, %arg1: i32, %arg2: memref<1x8x8x8xbf16, #tpu.memory_space<vmem>>, %arg3: memref<8x16xbf16, #tpu.memory_space<vmem>>, %arg4: memref<1x16xf32, #tpu.memory_space<vmem>>, %arg5: memref<1x8x2x8x8xbf16, #tpu.memory_space<vmem>>) attributes {dimension_semantics = [#tpu.dimension_semantics<parallel>, #tpu.dimension_semantics<parallel>], iteration_bounds = array<i64: 2, 1>, scalar_prefetch = 0 : i64, scratch_operands = 0 : i64, tpu.core_type = #tpu.core_type<tc>, window_params = [{transform_indices = @transform_0, window_bounds = array<i64: 1, 8, 8, 8>}, {pipeline_mode = #tpu.pipeline_mode<synchronous>, transform_indices = @transform_1, window_bounds = array<i64: 8, 16>}, {pipeline_mode = #tpu.pipeline_mode<synchronous>, transform_indices = @transform_2, window_bounds = array<i64: 1, 16>}, {transform_indices = @transform_3, window_bounds = array<i64: 1, 8, 2, 8, 8>}]} {
    %c0 = arith.constant 0 : index
    %c0_0 = arith.constant 0 : index
    %c0_1 = arith.constant 0 : index
    %c0_2 = arith.constant 0 : index
    %0 = vector.load %arg2[%c0, %c0_0, %c0_1, %c0_2] : memref<1x8x8x8xbf16, #tpu.memory_space<vmem>>, vector<1x8x8x8xbf16>
    %1 = vector.shape_cast %0 : vector<1x8x8x8xbf16> to vector<8x8x8xbf16>
    %2 = vector.shape_cast %1 : vector<8x8x8xbf16> to vector<64x8xbf16>
    %c0_3 = arith.constant 0 : index
    %c0_4 = arith.constant 0 : index
    %3 = vector.load %arg3[%c0_3, %c0_4] : memref<8x16xbf16, #tpu.memory_space<vmem>>, vector<8x16xbf16>
    %cst = arith.constant dense<0.000000e+00> : vector<64x16xf32>
    %4 = tpu.matmul %2, %3, %cst {dimension_numbers = #tpu.dot_dimension_numbers<[1], [0], [0], [1], [0, 0, 1, 1], [], []>} : vector<64x8xbf16>, vector<8x16xbf16>, vector<64x16xf32> -> vector<64x16xf32>
    %c0_5 = arith.constant 0 : index
    %c0_6 = arith.constant 0 : index
    %5 = vector.load %arg4[%c0_5, %c0_6] : memref<1x16xf32, #tpu.memory_space<vmem>>, vector<1x16xf32>
    %6 = vector.broadcast %5 : vector<1x16xf32> to vector<64x16xf32>
    %7 = arith.addf %4, %6 : vector<64x16xf32>
    %8 = vector.extract_strided_slice %7 {offsets = [0, 0], sizes = [64, 8], strides = [1, 1]} : vector<64x16xf32> to vector<64x8xf32>
    %9 = vector.shape_cast %8 : vector<64x8xf32> to vector<8x8x8xf32>
    %10 = arith.truncf %9 : vector<8x8x8xf32> to vector<8x8x8xbf16>
    %c0_7 = arith.constant 0 : index
    %c0_8 = arith.constant 0 : index
    %c0_9 = arith.constant 0 : index
    %c0_10 = arith.constant 0 : index
    %c0_11 = arith.constant 0 : index
    %11 = vector.load %arg5[%c0_7, %c0_8, %c0_9, %c0_10, %c0_11] : memref<1x8x2x8x8xbf16, #tpu.memory_space<vmem>>, vector<1x8x1x8x8xbf16>
    %12 = vector.shape_cast %11 : vector<1x8x1x8x8xbf16> to vector<8x8x8xbf16>
    %13 = vector.shape_cast %10 : vector<8x8x8xbf16> to vector<1x8x1x8x8xbf16>
    tpu.vector_store %arg5[%c0_7, %c0_8, %c0_9, %c0_10, %c0_11], %13 {strides = array<i32>} : memref<1x8x2x8x8xbf16, #tpu.memory_space<vmem>>, vector<1x8x1x8x8xbf16>,
    %14 = vector.extract_strided_slice %7 {offsets = [0, 8], sizes = [64, 8], strides = [1, 1]} : vector<64x16xf32> to vector<64x8xf32>
    %15 = vector.shape_cast %14 : vector<64x8xf32> to vector<8x8x8xf32>
    %16 = arith.truncf %15 : vector<8x8x8xf32> to vector<8x8x8xbf16>
    %c0_12 = arith.constant 0 : index
    %c0_13 = arith.constant 0 : index
    %c1 = arith.constant 1 : index
    %c0_14 = arith.constant 0 : index
    %c0_15 = arith.constant 0 : index
    %17 = vector.load %arg5[%c0_12, %c0_13, %c1, %c0_14, %c0_15] : memref<1x8x2x8x8xbf16, #tpu.memory_space<vmem>>, vector<1x8x1x8x8xbf16>
    %18 = vector.shape_cast %17 : vector<1x8x1x8x8xbf16> to vector<8x8x8xbf16>
    %19 = vector.shape_cast %16 : vector<8x8x8xbf16> to vector<1x8x1x8x8xbf16>
    tpu.vector_store %arg5[%c0_12, %c0_13, %c1, %c0_14, %c0_15], %19 {strides = array<i32>} : memref<1x8x2x8x8xbf16, #tpu.memory_space<vmem>>, vector<1x8x1x8x8xbf16>,
    return
  }
  func.func @transform_0(%arg0: i32, %arg1: i32) -> (i32, i32, i32, i32) {
    %c0_i32 = arith.constant 0 : i32
    %c0_i32_0 = arith.constant 0 : i32
    %c0_i32_1 = arith.constant 0 : i32
    return %arg0, %arg1, %c0_i32, %c0_i32_0 : i32, i32, i32, i32
  }
  func.func @transform_1(%arg0: i32, %arg1: i32) -> (i32, i32) {
    %c0_i32 = arith.constant 0 : i32
    %c0_i32_0 = arith.constant 0 : i32
    %c0_i32_1 = arith.constant 0 : i32
    return %c0_i32, %c0_i32_0 : i32, i32
  }
  func.func @transform_2(%arg0: i32, %arg1: i32) -> (i32, i32) {
    %c0_i32 = arith.constant 0 : i32
    %c0_i32_0 = arith.constant 0 : i32
    %c0_i32_1 = arith.constant 0 : i32
    return %c0_i32, %c0_i32_0 : i32, i32
  }
  func.func @transform_3(%arg0: i32, %arg1: i32) -> (i32, i32, i32, i32, i32) {
    %c0_i32 = arith.constant 0 : i32
    %c0_i32_0 = arith.constant 0 : i32
    %c0_i32_1 = arith.constant 0 : i32
    %c0_i32_2 = arith.constant 0 : i32
    return %arg0, %arg1, %c0_i32, %c0_i32_0, %c0_i32_1 : i32, i32, i32, i32, i32
  }
}

module attributes {stable_mosaic.version = 11 : i64} {
  func.func @_conv1_kernel(%arg0: i32, %arg1: i32, %arg2: memref<1x16x16x4xbf16, #tpu.memory_space<vmem>>, %arg3: memref<1x16x16x4xbf16, #tpu.memory_space<vmem>>, %arg4: memref<3x24x4xbf16, #tpu.memory_space<vmem>>, %arg5: memref<1x4xf32, #tpu.memory_space<vmem>>, %arg6: memref<1x4xf32, #tpu.memory_space<vmem>>, %arg7: memref<1x16x16x4xbf16, #tpu.memory_space<vmem>>, %arg8: memref<256x4xf32, #tpu.memory_space<vmem>>) attributes {dimension_semantics = [#tpu.dimension_semantics<parallel>, #tpu.dimension_semantics<parallel>], iteration_bounds = array<i64: 2, 1>, scalar_prefetch = 0 : i64, scratch_operands = 1 : i64, tpu.core_type = #tpu.core_type<tc>, window_params = [{transform_indices = @transform_0, window_bounds = array<i64: 1, 16, 16, 4>}, {transform_indices = @transform_1, window_bounds = array<i64: 1, 16, 16, 4>}, {transform_indices = @transform_2, window_bounds = array<i64: 3, 24, 4>}, {transform_indices = @transform_3, window_bounds = array<i64: 1, 4>}, {transform_indices = @transform_4, window_bounds = array<i64: 1, 4>}, {transform_indices = @transform_5, window_bounds = array<i64: 1, 16, 16, 4>}]} {
    %c0 = arith.constant 0 : index
    %c0_0 = arith.constant 0 : index
    %c0_1 = arith.constant 0 : index
    %c0_2 = arith.constant 0 : index
    %0 = vector.load %arg2[%c0, %c0_0, %c0_1, %c0_2] : memref<1x16x16x4xbf16, #tpu.memory_space<vmem>>, vector<1x16x16x4xbf16>
    %1 = vector.shape_cast %0 : vector<1x16x16x4xbf16> to vector<16x16x4xbf16>
    %c0_3 = arith.constant 0 : index
    %c0_4 = arith.constant 0 : index
    %c0_5 = arith.constant 0 : index
    %c0_6 = arith.constant 0 : index
    %2 = vector.load %arg3[%c0_3, %c0_4, %c0_5, %c0_6] : memref<1x16x16x4xbf16, #tpu.memory_space<vmem>>, vector<1x16x16x4xbf16>
    %3 = vector.shape_cast %2 : vector<1x16x16x4xbf16> to vector<16x16x4xbf16>
    %4 = tpu.concatenate %1, %3 in 2 : vector<16x16x4xbf16>, vector<16x16x4xbf16> -> vector<16x16x8xbf16>
    %cst = arith.constant 0.000000e+00 : bf16
    %5 = vector.broadcast %cst : bf16 to vector<16x1x8xbf16>
    %6 = vector.extract_strided_slice %4 {offsets = [0, 0, 0], sizes = [16, 15, 8], strides = [1, 1, 1]} : vector<16x16x8xbf16> to vector<16x15x8xbf16>
    %7 = tpu.concatenate %5, %6 in 1 : vector<16x1x8xbf16>, vector<16x15x8xbf16> -> vector<16x16x8xbf16>
    %8 = vector.extract_strided_slice %4 {offsets = [0, 1, 0], sizes = [16, 15, 8], strides = [1, 1, 1]} : vector<16x16x8xbf16> to vector<16x15x8xbf16>
    %9 = tpu.concatenate %8, %5 in 1 : vector<16x15x8xbf16>, vector<16x1x8xbf16> -> vector<16x16x8xbf16>
    %10 = tpu.concatenate %7, %4, %9 in 2 : vector<16x16x8xbf16>, vector<16x16x8xbf16>, vector<16x16x8xbf16> -> vector<16x16x24xbf16>
    %11 = vector.shape_cast %10 : vector<16x16x24xbf16> to vector<256x24xbf16>
    %c1 = arith.constant 1 : index
    %c0_7 = arith.constant 0 : index
    %c0_8 = arith.constant 0 : index
    %12 = vector.load %arg4[%c1, %c0_7, %c0_8] : memref<3x24x4xbf16, #tpu.memory_space<vmem>>, vector<1x24x4xbf16>
    %13 = vector.shape_cast %12 : vector<1x24x4xbf16> to vector<24x4xbf16>
    %cst_9 = arith.constant dense<0.000000e+00> : vector<256x4xf32>
    %14 = tpu.matmul %11, %13, %cst_9 {dimension_numbers = #tpu.dot_dimension_numbers<[1], [0], [0], [1], [0, 0, 1, 1], [], []>} : vector<256x24xbf16>, vector<24x4xbf16>, vector<256x4xf32> -> vector<256x4xf32>
    %c0_10 = arith.constant 0 : index
    %c0_11 = arith.constant 0 : index
    %15 = vector.load %arg8[%c0_10, %c0_11] : memref<256x4xf32, #tpu.memory_space<vmem>>, vector<256x4xf32>
    tpu.vector_store %arg8[%c0_10, %c0_11], %14 {strides = array<i32>} : memref<256x4xf32, #tpu.memory_space<vmem>>, vector<256x4xf32>,
    %c16 = arith.constant 16 : index
    %c0_12 = arith.constant 0 : index
    %16 = vector.load %arg8[%c16, %c0_12] : memref<256x4xf32, #tpu.memory_space<vmem>>, vector<240x4xf32>
    %17 = vector.extract_strided_slice %11 {offsets = [0, 0], sizes = [240, 24], strides = [1, 1]} : vector<256x24xbf16> to vector<240x24xbf16>
    %c0_13 = arith.constant 0 : index
    %c0_14 = arith.constant 0 : index
    %c0_15 = arith.constant 0 : index
    %18 = vector.load %arg4[%c0_13, %c0_14, %c0_15] : memref<3x24x4xbf16, #tpu.memory_space<vmem>>, vector<1x24x4xbf16>
    %19 = vector.shape_cast %18 : vector<1x24x4xbf16> to vector<24x4xbf16>
    %cst_16 = arith.constant dense<0.000000e+00> : vector<240x4xf32>
    %20 = tpu.matmul %17, %19, %cst_16 {dimension_numbers = #tpu.dot_dimension_numbers<[1], [0], [0], [1], [0, 0, 1, 1], [], []>} : vector<240x24xbf16>, vector<24x4xbf16>, vector<240x4xf32> -> vector<240x4xf32>
    %21 = arith.addf %16, %20 : vector<240x4xf32>
    %c16_17 = arith.constant 16 : index
    %c0_18 = arith.constant 0 : index
    %22 = vector.load %arg8[%c16_17, %c0_18] : memref<256x4xf32, #tpu.memory_space<vmem>>, vector<240x4xf32>
    tpu.vector_store %arg8[%c16_17, %c0_18], %21 {strides = array<i32>} : memref<256x4xf32, #tpu.memory_space<vmem>>, vector<240x4xf32>,
    %c0_19 = arith.constant 0 : index
    %c0_20 = arith.constant 0 : index
    %23 = vector.load %arg8[%c0_19, %c0_20] : memref<256x4xf32, #tpu.memory_space<vmem>>, vector<240x4xf32>
    %24 = vector.extract_strided_slice %11 {offsets = [16, 0], sizes = [240, 24], strides = [1, 1]} : vector<256x24xbf16> to vector<240x24xbf16>
    %c2 = arith.constant 2 : index
    %c0_21 = arith.constant 0 : index
    %c0_22 = arith.constant 0 : index
    %25 = vector.load %arg4[%c2, %c0_21, %c0_22] : memref<3x24x4xbf16, #tpu.memory_space<vmem>>, vector<1x24x4xbf16>
    %26 = vector.shape_cast %25 : vector<1x24x4xbf16> to vector<24x4xbf16>
    %cst_23 = arith.constant dense<0.000000e+00> : vector<240x4xf32>
    %27 = tpu.matmul %24, %26, %cst_23 {dimension_numbers = #tpu.dot_dimension_numbers<[1], [0], [0], [1], [0, 0, 1, 1], [], []>} : vector<240x24xbf16>, vector<24x4xbf16>, vector<240x4xf32> -> vector<240x4xf32>
    %28 = arith.addf %23, %27 : vector<240x4xf32>
    %c0_24 = arith.constant 0 : index
    %c0_25 = arith.constant 0 : index
    %29 = vector.load %arg8[%c0_24, %c0_25] : memref<256x4xf32, #tpu.memory_space<vmem>>, vector<240x4xf32>
    tpu.vector_store %arg8[%c0_24, %c0_25], %28 {strides = array<i32>} : memref<256x4xf32, #tpu.memory_space<vmem>>, vector<240x4xf32>,
    %c0_26 = arith.constant 0 : index
    %c0_27 = arith.constant 0 : index
    %30 = vector.load %arg8[%c0_26, %c0_27] : memref<256x4xf32, #tpu.memory_space<vmem>>, vector<256x4xf32>
    %c0_28 = arith.constant 0 : index
    %c0_29 = arith.constant 0 : index
    %31 = vector.load %arg5[%c0_28, %c0_29] : memref<1x4xf32, #tpu.memory_space<vmem>>, vector<1x4xf32>
    %32 = vector.broadcast %31 : vector<1x4xf32> to vector<256x4xf32>
    %33 = arith.mulf %30, %32 : vector<256x4xf32>
    %c0_30 = arith.constant 0 : index
    %c0_31 = arith.constant 0 : index
    %34 = vector.load %arg6[%c0_30, %c0_31] : memref<1x4xf32, #tpu.memory_space<vmem>>, vector<1x4xf32>
    %35 = vector.broadcast %34 : vector<1x4xf32> to vector<256x4xf32>
    %36 = arith.addf %33, %35 : vector<256x4xf32>
    %cst_32 = arith.constant 0.000000e+00 : f32
    %37 = vector.broadcast %cst_32 : f32 to vector<256x4xf32>
    %38 = arith.maximumf %36, %37 : vector<256x4xf32>
    %39 = vector.shape_cast %38 : vector<256x4xf32> to vector<16x16x4xf32>
    %40 = arith.truncf %39 : vector<16x16x4xf32> to vector<16x16x4xbf16>
    %c0_33 = arith.constant 0 : index
    %c0_34 = arith.constant 0 : index
    %c0_35 = arith.constant 0 : index
    %c0_36 = arith.constant 0 : index
    %41 = vector.load %arg7[%c0_33, %c0_34, %c0_35, %c0_36] : memref<1x16x16x4xbf16, #tpu.memory_space<vmem>>, vector<1x16x16x4xbf16>
    %42 = vector.shape_cast %41 : vector<1x16x16x4xbf16> to vector<16x16x4xbf16>
    %43 = vector.shape_cast %40 : vector<16x16x4xbf16> to vector<1x16x16x4xbf16>
    tpu.vector_store %arg7[%c0_33, %c0_34, %c0_35, %c0_36], %43 {strides = array<i32>} : memref<1x16x16x4xbf16, #tpu.memory_space<vmem>>, vector<1x16x16x4xbf16>,
    return
  }
  func.func @transform_0(%arg0: i32, %arg1: i32) -> (i32, i32, i32, i32) {
    %c0_i32 = arith.constant 0 : i32
    %c0_i32_0 = arith.constant 0 : i32
    %c0_i32_1 = arith.constant 0 : i32
    %c0_i32_2 = arith.constant 0 : i32
    return %arg0, %c0_i32, %c0_i32_0, %c0_i32_1 : i32, i32, i32, i32
  }
  func.func @transform_1(%arg0: i32, %arg1: i32) -> (i32, i32, i32, i32) {
    %c0_i32 = arith.constant 0 : i32
    %c0_i32_0 = arith.constant 0 : i32
    %c0_i32_1 = arith.constant 0 : i32
    %c0_i32_2 = arith.constant 0 : i32
    return %arg0, %c0_i32, %c0_i32_0, %c0_i32_1 : i32, i32, i32, i32
  }
  func.func @transform_2(%arg0: i32, %arg1: i32) -> (i32, i32, i32) {
    %c0_i32 = arith.constant 0 : i32
    %c0_i32_0 = arith.constant 0 : i32
    %c0_i32_1 = arith.constant 0 : i32
    return %c0_i32, %c0_i32_0, %arg1 : i32, i32, i32
  }
  func.func @transform_3(%arg0: i32, %arg1: i32) -> (i32, i32) {
    %c0_i32 = arith.constant 0 : i32
    %c0_i32_0 = arith.constant 0 : i32
    return %c0_i32, %arg1 : i32, i32
  }
  func.func @transform_4(%arg0: i32, %arg1: i32) -> (i32, i32) {
    %c0_i32 = arith.constant 0 : i32
    %c0_i32_0 = arith.constant 0 : i32
    return %c0_i32, %arg1 : i32, i32
  }
  func.func @transform_5(%arg0: i32, %arg1: i32) -> (i32, i32, i32, i32) {
    %c0_i32 = arith.constant 0 : i32
    %c0_i32_0 = arith.constant 0 : i32
    %c0_i32_1 = arith.constant 0 : i32
    return %arg0, %c0_i32, %c0_i32_0, %arg1 : i32, i32, i32, i32
  }
}

module attributes {stable_mosaic.version = 11 : i64} {
  func.func @_conv2_kernel(%arg0: i32, %arg1: i32, %arg2: memref<1x16x16x4xbf16, #tpu.memory_space<vmem>>, %arg3: memref<3x12x4xbf16, #tpu.memory_space<vmem>>, %arg4: memref<1x4xf32, #tpu.memory_space<vmem>>, %arg5: memref<1x4xf32, #tpu.memory_space<vmem>>, %arg6: memref<1x16x16x4xf32, #tpu.memory_space<vmem>>, %arg7: memref<256x4xf32, #tpu.memory_space<vmem>>) attributes {dimension_semantics = [#tpu.dimension_semantics<parallel>, #tpu.dimension_semantics<parallel>], iteration_bounds = array<i64: 2, 1>, scalar_prefetch = 0 : i64, scratch_operands = 1 : i64, tpu.core_type = #tpu.core_type<tc>, window_params = [{transform_indices = @transform_0, window_bounds = array<i64: 1, 16, 16, 4>}, {transform_indices = @transform_1, window_bounds = array<i64: 3, 12, 4>}, {transform_indices = @transform_2, window_bounds = array<i64: 1, 4>}, {transform_indices = @transform_3, window_bounds = array<i64: 1, 4>}, {transform_indices = @transform_4, window_bounds = array<i64: 1, 16, 16, 4>}]} {
    %c0 = arith.constant 0 : index
    %c0_0 = arith.constant 0 : index
    %c0_1 = arith.constant 0 : index
    %c0_2 = arith.constant 0 : index
    %0 = vector.load %arg2[%c0, %c0_0, %c0_1, %c0_2] : memref<1x16x16x4xbf16, #tpu.memory_space<vmem>>, vector<1x16x16x4xbf16>
    %1 = vector.shape_cast %0 : vector<1x16x16x4xbf16> to vector<16x16x4xbf16>
    %cst = arith.constant 0.000000e+00 : bf16
    %2 = vector.broadcast %cst : bf16 to vector<16x1x4xbf16>
    %3 = vector.extract_strided_slice %1 {offsets = [0, 0, 0], sizes = [16, 15, 4], strides = [1, 1, 1]} : vector<16x16x4xbf16> to vector<16x15x4xbf16>
    %4 = tpu.concatenate %2, %3 in 1 : vector<16x1x4xbf16>, vector<16x15x4xbf16> -> vector<16x16x4xbf16>
    %5 = vector.extract_strided_slice %1 {offsets = [0, 1, 0], sizes = [16, 15, 4], strides = [1, 1, 1]} : vector<16x16x4xbf16> to vector<16x15x4xbf16>
    %6 = tpu.concatenate %5, %2 in 1 : vector<16x15x4xbf16>, vector<16x1x4xbf16> -> vector<16x16x4xbf16>
    %7 = tpu.concatenate %4, %1, %6 in 2 : vector<16x16x4xbf16>, vector<16x16x4xbf16>, vector<16x16x4xbf16> -> vector<16x16x12xbf16>
    %8 = vector.shape_cast %7 : vector<16x16x12xbf16> to vector<256x12xbf16>
    %c1 = arith.constant 1 : index
    %c0_3 = arith.constant 0 : index
    %c0_4 = arith.constant 0 : index
    %9 = vector.load %arg3[%c1, %c0_3, %c0_4] : memref<3x12x4xbf16, #tpu.memory_space<vmem>>, vector<1x12x4xbf16>
    %10 = vector.shape_cast %9 : vector<1x12x4xbf16> to vector<12x4xbf16>
    %cst_5 = arith.constant dense<0.000000e+00> : vector<256x4xf32>
    %11 = tpu.matmul %8, %10, %cst_5 {dimension_numbers = #tpu.dot_dimension_numbers<[1], [0], [0], [1], [0, 0, 1, 1], [], []>} : vector<256x12xbf16>, vector<12x4xbf16>, vector<256x4xf32> -> vector<256x4xf32>
    %c0_6 = arith.constant 0 : index
    %c0_7 = arith.constant 0 : index
    %12 = vector.load %arg7[%c0_6, %c0_7] : memref<256x4xf32, #tpu.memory_space<vmem>>, vector<256x4xf32>
    tpu.vector_store %arg7[%c0_6, %c0_7], %11 {strides = array<i32>} : memref<256x4xf32, #tpu.memory_space<vmem>>, vector<256x4xf32>,
    %c16 = arith.constant 16 : index
    %c0_8 = arith.constant 0 : index
    %13 = vector.load %arg7[%c16, %c0_8] : memref<256x4xf32, #tpu.memory_space<vmem>>, vector<240x4xf32>
    %14 = vector.extract_strided_slice %8 {offsets = [0, 0], sizes = [240, 12], strides = [1, 1]} : vector<256x12xbf16> to vector<240x12xbf16>
    %c0_9 = arith.constant 0 : index
    %c0_10 = arith.constant 0 : index
    %c0_11 = arith.constant 0 : index
    %15 = vector.load %arg3[%c0_9, %c0_10, %c0_11] : memref<3x12x4xbf16, #tpu.memory_space<vmem>>, vector<1x12x4xbf16>
    %16 = vector.shape_cast %15 : vector<1x12x4xbf16> to vector<12x4xbf16>
    %cst_12 = arith.constant dense<0.000000e+00> : vector<240x4xf32>
    %17 = tpu.matmul %14, %16, %cst_12 {dimension_numbers = #tpu.dot_dimension_numbers<[1], [0], [0], [1], [0, 0, 1, 1], [], []>} : vector<240x12xbf16>, vector<12x4xbf16>, vector<240x4xf32> -> vector<240x4xf32>
    %18 = arith.addf %13, %17 : vector<240x4xf32>
    %c16_13 = arith.constant 16 : index
    %c0_14 = arith.constant 0 : index
    %19 = vector.load %arg7[%c16_13, %c0_14] : memref<256x4xf32, #tpu.memory_space<vmem>>, vector<240x4xf32>
    tpu.vector_store %arg7[%c16_13, %c0_14], %18 {strides = array<i32>} : memref<256x4xf32, #tpu.memory_space<vmem>>, vector<240x4xf32>,
    %c0_15 = arith.constant 0 : index
    %c0_16 = arith.constant 0 : index
    %20 = vector.load %arg7[%c0_15, %c0_16] : memref<256x4xf32, #tpu.memory_space<vmem>>, vector<240x4xf32>
    %21 = vector.extract_strided_slice %8 {offsets = [16, 0], sizes = [240, 12], strides = [1, 1]} : vector<256x12xbf16> to vector<240x12xbf16>
    %c2 = arith.constant 2 : index
    %c0_17 = arith.constant 0 : index
    %c0_18 = arith.constant 0 : index
    %22 = vector.load %arg3[%c2, %c0_17, %c0_18] : memref<3x12x4xbf16, #tpu.memory_space<vmem>>, vector<1x12x4xbf16>
    %23 = vector.shape_cast %22 : vector<1x12x4xbf16> to vector<12x4xbf16>
    %cst_19 = arith.constant dense<0.000000e+00> : vector<240x4xf32>
    %24 = tpu.matmul %21, %23, %cst_19 {dimension_numbers = #tpu.dot_dimension_numbers<[1], [0], [0], [1], [0, 0, 1, 1], [], []>} : vector<240x12xbf16>, vector<12x4xbf16>, vector<240x4xf32> -> vector<240x4xf32>
    %25 = arith.addf %20, %24 : vector<240x4xf32>
    %c0_20 = arith.constant 0 : index
    %c0_21 = arith.constant 0 : index
    %26 = vector.load %arg7[%c0_20, %c0_21] : memref<256x4xf32, #tpu.memory_space<vmem>>, vector<240x4xf32>
    tpu.vector_store %arg7[%c0_20, %c0_21], %25 {strides = array<i32>} : memref<256x4xf32, #tpu.memory_space<vmem>>, vector<240x4xf32>,
    %c0_22 = arith.constant 0 : index
    %c0_23 = arith.constant 0 : index
    %27 = vector.load %arg7[%c0_22, %c0_23] : memref<256x4xf32, #tpu.memory_space<vmem>>, vector<256x4xf32>
    %c0_24 = arith.constant 0 : index
    %c0_25 = arith.constant 0 : index
    %28 = vector.load %arg4[%c0_24, %c0_25] : memref<1x4xf32, #tpu.memory_space<vmem>>, vector<1x4xf32>
    %29 = vector.broadcast %28 : vector<1x4xf32> to vector<256x4xf32>
    %30 = arith.mulf %27, %29 : vector<256x4xf32>
    %c0_26 = arith.constant 0 : index
    %c0_27 = arith.constant 0 : index
    %31 = vector.load %arg5[%c0_26, %c0_27] : memref<1x4xf32, #tpu.memory_space<vmem>>, vector<1x4xf32>
    %32 = vector.broadcast %31 : vector<1x4xf32> to vector<256x4xf32>
    %33 = arith.addf %30, %32 : vector<256x4xf32>
    %cst_28 = arith.constant 0.000000e+00 : f32
    %34 = vector.broadcast %cst_28 : f32 to vector<256x4xf32>
    %35 = arith.maximumf %33, %34 : vector<256x4xf32>
    %36 = vector.shape_cast %35 : vector<256x4xf32> to vector<16x16x4xf32>
    %c0_29 = arith.constant 0 : index
    %c0_30 = arith.constant 0 : index
    %c0_31 = arith.constant 0 : index
    %c0_32 = arith.constant 0 : index
    %37 = vector.load %arg6[%c0_29, %c0_30, %c0_31, %c0_32] : memref<1x16x16x4xf32, #tpu.memory_space<vmem>>, vector<1x16x16x4xf32>
    %38 = vector.shape_cast %37 : vector<1x16x16x4xf32> to vector<16x16x4xf32>
    %39 = vector.shape_cast %36 : vector<16x16x4xf32> to vector<1x16x16x4xf32>
    tpu.vector_store %arg6[%c0_29, %c0_30, %c0_31, %c0_32], %39 {strides = array<i32>} : memref<1x16x16x4xf32, #tpu.memory_space<vmem>>, vector<1x16x16x4xf32>,
    return
  }
  func.func @transform_0(%arg0: i32, %arg1: i32) -> (i32, i32, i32, i32) {
    %c0_i32 = arith.constant 0 : i32
    %c0_i32_0 = arith.constant 0 : i32
    %c0_i32_1 = arith.constant 0 : i32
    %c0_i32_2 = arith.constant 0 : i32
    return %arg0, %c0_i32, %c0_i32_0, %c0_i32_1 : i32, i32, i32, i32
  }
  func.func @transform_1(%arg0: i32, %arg1: i32) -> (i32, i32, i32) {
    %c0_i32 = arith.constant 0 : i32
    %c0_i32_0 = arith.constant 0 : i32
    %c0_i32_1 = arith.constant 0 : i32
    return %c0_i32, %c0_i32_0, %arg1 : i32, i32, i32
  }
  func.func @transform_2(%arg0: i32, %arg1: i32) -> (i32, i32) {
    %c0_i32 = arith.constant 0 : i32
    %c0_i32_0 = arith.constant 0 : i32
    return %c0_i32, %arg1 : i32, i32
  }
  func.func @transform_3(%arg0: i32, %arg1: i32) -> (i32, i32) {
    %c0_i32 = arith.constant 0 : i32
    %c0_i32_0 = arith.constant 0 : i32
    return %c0_i32, %arg1 : i32, i32
  }
  func.func @transform_4(%arg0: i32, %arg1: i32) -> (i32, i32, i32, i32) {
    %c0_i32 = arith.constant 0 : i32
    %c0_i32_0 = arith.constant 0 : i32
    %c0_i32_1 = arith.constant 0 : i32
    return %arg0, %c0_i32, %c0_i32_0, %arg1 : i32, i32, i32, i32
  }
}

</mosaic_0001>

<llo_original>
// kernel: tile.8
$region0: #{tile.8}
  #allocation0 [shape = 's32[1]{0}', space=sflag, size = 0x4, scoped, tag = 'scoped memory for tile.8']
  %s0 = inlined_call_operand.vmem [shape: f32[4], index: 0, kind: input, shape index: {}]
  %s1 = inlined_call_operand.vmem [shape: f32[4,4], index: 1, kind: output, shape index: {}]
  // Predicated region
  $region2: #{tile.8} parent=0 // pred_check
    _
  $region3: #{tile.8} parent=0 // pred_check_branch
    %3 = sbr.rel (0) target = $region5
  $region4: #{tile.8} parent=0 // pred_region
    _
  $region5: #{tile.8} parent=0 // pred_fallthru
    _
  %v4 = vld [vmem:[%s0] ss:$0 sm:$0xff]
  %5 = vst [vmem:[%s1] sm:$0xf] %v4

// kernel: tile.9
$region0: #{tile.9}
  %s0 = inlined_call_operand.vmem [shape: f32[4,4], index: 0, kind: input, shape index: {}]
  %s1 = inlined_call_operand.vmem [shape: f32[1,16], index: 1, kind: output, shape index: {}]
  $region1: #{tile.9} parent=0
    #allocation0 [shape = 'u8[4096]{0}', space=vmem, size = 0x1000, scoped, tag = 'scoped mem for output reshape']
    #allocation1 [shape = 'u8[4096]{0}', space=vmem, size = 0x1000, scoped, tag = 'scoped mem for input reshape']
    %s3 = sshllo.u32 0, 4
    %v4 = vld [vmem:[%s0] sm:%s3]
    %5 = vst [vmem:[#allocation1] sm:%s3] %v4
    %v6 = vld [vmem:[#allocation1] sm:$0x1]
    %vm7 = vcmask 31744
    %8 = vst.msk [vmem:[#allocation0] sm:$0x1] %vm7, %v6
    %s9 = scalar_lea.vmem [#allocation1], 3
    %v10 = vld [vmem:[%s9] sm:$0x1]
    %11 = vrot.lane.b32.xlu0 %v10, 12
    %v12 = vpop.permute.xlu0 %11
    %vm13 = vcmask 130144
    %14 = vst.msk [vmem:[#allocation0] sm:$0x1] %vm13, %v12
    %s15 = scalar_lea.vmem [#allocation1], 2
    %v16 = vld [vmem:[%s15] sm:$0x1]
    %17 = vrot.lane.b32.xlu0 %v16, 8
    %v18 = vpop.permute.xlu0 %17
    %vm19 = vcmask 97344
    %20 = vst.msk [vmem:[#allocation0] sm:$0x1] %vm19, %v18
    %s21 = scalar_lea.vmem [#allocation1], 1
    %v22 = vld [vmem:[%s21] sm:$0x1]
    %23 = vrot.lane.b32.xlu0 %v22, 4
    %v24 = vpop.permute.xlu0 %23
    %vm25 = vcmask 64544
    %26 = vst.msk [vmem:[#allocation0] sm:$0x1] %vm25, %v24
    %s28 = sshllo.u32 0, 1
    %v30 = vld [vmem:[#allocation0] sm:%s28]
    %s31 = sshllo.u32 0, 1
    %32 = vst [vmem:[%s1] sm:%s31] %v30

// kernel: up_forward.3
$region0: #{up_forward.3}
  #allocation0 [shape = 'u32[]', space=smem, size = 0x4, offset = 0x4, fixed_abs, tag = 'smem constant byte address 0x4 - core index']
  #allocation1 [shape = 'u32[144,128]{1,0:T(1,128)}', space=vmem, size = 0x12000, scoped, tag = 'internal scratch']
  %s0 = inlined_call_operand.vmem [shape: bf16[2,8,8,8], index: 0, kind: input, shape index: {}]
  %s1 = inlined_call_operand.vmem [shape: bf16[8,16], index: 1, kind: input, shape index: {}]
  %s2 = inlined_call_operand.vmem [shape: f32[1,16], index: 2, kind: input, shape index: {}]
  %s3 = inlined_call_operand.vmem [shape: bf16[2,8,2,8,8], index: 3, kind: output, shape index: {}]
  %s4 = sld [smem:[#allocation0]]
  $region45: #{up_forward.3} parent=0
    _
  %s6 = ssub.s32 1, %s4
  %s7 = scalar_select 0, %s6, %s4
  loop: start=0, step=1, limit=4
  $region2: #{up_forward.3} parent=0 // loop_pre_header
    _
  $region3: #{up_forward.3} parent=0 // loop_header
    %s9 = sphi 0, %s13
    %p10 = scmp.ge.s32.totalorder %s9, 4
    %s16 = sphi 0, %s28
    %s17 = sphi 0, %s24
    %s18 = sphi 0, %s16
    %s19 = sphi 0, %s17
    %s20 = sphi 0, %s18
    %s21 = sphi 0, %s19
    %s33 = sphi 0, %s35
    %s36 = sphi 0, %s33
    %s37 = sphi 0, %s36
    %s53 = sphi 0, %s37
    %s57 = sphi 0, %s57
    %s59 = sphi 0, %s57
    %s60 = sphi 0, %s59
    %s74 = sphi 0, %s60
    %s78 = sphi 0, %s78
    %s80 = sphi 0, %s78
    %s81 = sphi 0, %s80
    %s95 = sphi 0, %s81
    %s103 = sphi 0, %s105
    %s106 = sphi 0, %s103
    %s107 = sphi 0, %s106
    %s123 = sphi 0, %s107
  $region4: #{up_forward.3} parent=0 // loop_header_branch
    %12 = sbr.rel (%p10) target = $region8
  $region5: #{up_forward.3} parent=0 // loop_body
    %s14 = ssub.s32 %s9, 1
    %s15 = ssub.s32 %s9, 2
    %s22 = sadd.s32 1, %s17
    %p23 = scmp.ge.s32.totalorder %s22, 1
    %s24 = scalar_select %p23, 0, %s22
    %s25 = sadd.s32 1, %s16
    %s26 = scalar_select %p23, %s25, %s16
    %p27 = scmp.ge.s32.totalorder %s26, 2
    %s28 = scalar_select %p27, 0, %s26
    %s29 = ssub.s32 %s16, %s28
    %s30 = ssub.s32 %s17, %s24
    %s31 = sor.u32 %s29, %s30
    %p32 = scmp.eq.s32.totalorder %s31, 0
    %s34 = sadd.s32 %s33, 1
    %s35 = scalar_select %p32, %s33, %s34
    %p38 = pneg %p32
    %p39 = scmp.eq.s32.totalorder %s9, 1
    %p40 = por %p38, %p39
    %p41 = scmp.ne.s32.totalorder %s33, %s36
    %p42 = scmp.eq.s32.totalorder %s9, 0
    %p43 = por %p41, %p42
    %p44 = scmp.ne.s32.totalorder %s33, %s36
    %p45 = scmp.eq.s32.totalorder %s14, 1
    %p46 = por %p44, %p45
    %p47 = scmp.ne.s32.totalorder %s36, %s37
    %p48 = scmp.eq.s32.totalorder %s14, 0
    %p49 = por %p47, %p48
    %p50 = scmp.ne.s32.totalorder %s36, %s37
    %p51 = scmp.eq.s32.totalorder %s15, 1
    %p52 = por %p50, %p51
    %p54 = scmp.ne.s32.totalorder %s37, %s53
    %p55 = scmp.eq.s32.totalorder %s15, 0
    %p56 = por %p54, %p55
    %s58 = sadd.s32 %s57, 1
    %p61 = scmp.eq.s32.totalorder %s9, 1
    %p62 = scmp.ne.s32.totalorder %s57, %s59
    %p63 = scmp.eq.s32.totalorder %s9, 0
    %p64 = por %p62, %p63
    %p65 = scmp.ne.s32.totalorder %s57, %s59
    %p66 = scmp.eq.s32.totalorder %s14, 1
    %p67 = por %p65, %p66
    %p68 = scmp.ne.s32.totalorder %s59, %s60
    %p69 = scmp.eq.s32.totalorder %s14, 0
    %p70 = por %p68, %p69
    %p71 = scmp.ne.s32.totalorder %s59, %s60
    %p72 = scmp.eq.s32.totalorder %s15, 1
    %p73 = por %p71, %p72
    %p75 = scmp.ne.s32.totalorder %s60, %s74
    %p76 = scmp.eq.s32.totalorder %s15, 0
    %p77 = por %p75, %p76
    %s79 = sadd.s32 %s78, 1
    %p82 = scmp.eq.s32.totalorder %s9, 1
    %p83 = scmp.ne.s32.totalorder %s78, %s80
    %p84 = scmp.eq.s32.totalorder %s9, 0
    %p85 = por %p83, %p84
    %p86 = scmp.ne.s32.totalorder %s78, %s80
    %p87 = scmp.eq.s32.totalorder %s14, 1
    %p88 = por %p86, %p87
    %p89 = scmp.ne.s32.totalorder %s80, %s81
    %p90 = scmp.eq.s32.totalorder %s14, 0
    %p91 = por %p89, %p90
    %p92 = scmp.ne.s32.totalorder %s80, %s81
    %p93 = scmp.eq.s32.totalorder %s15, 1
    %p94 = por %p92, %p93
    %p96 = scmp.ne.s32.totalorder %s81, %s95
    %p97 = scmp.eq.s32.totalorder %s15, 0
    %p98 = por %p96, %p97
    %s99 = ssub.s32 %s16, %s28
    %s100 = ssub.s32 %s17, %s24
    %s101 = sor.u32 %s99, %s100
    %p102 = scmp.eq.s32.totalorder %s101, 0
    %s104 = sadd.s32 %s103, 1
    %s105 = scalar_select %p102, %s103, %s104
    %p108 = pneg %p102
    %p109 = scmp.eq.s32.totalorder %s9, 1
    %p110 = por %p108, %p109
    %p111 = scmp.ne.s32.totalorder %s103, %s106
    %p112 = scmp.eq.s32.totalorder %s9, 0
    %p113 = por %p111, %p112
    %p114 = scmp.ne.s32.totalorder %s103, %s106
    %p115 = scmp.eq.s32.totalorder %s14, 1
    %p116 = por %p114, %p115
    %p117 = scmp.ne.s32.totalorder %s106, %s107
    %p118 = scmp.eq.s32.totalorder %s14, 0
    %p119 = por %p117, %p118
    %p120 = scmp.ne.s32.totalorder %s106, %s107
    %p121 = scmp.eq.s32.totalorder %s15, 1
    %p122 = por %p120, %p121
    %p124 = scmp.ne.s32.totalorder %s107, %s123
    %p125 = scmp.eq.s32.totalorder %s15, 0
    %p126 = por %p124, %p125
    %p127 = scmp.le.s32.totalorder 1, %s9
    %p128 = scmp.lt.s32.totalorder %s9, 3
    %p129 = pnand %p127, %p128
    %p130 = pneg %p129
    // Predicated region
    $region9: #{up_forward.3} parent=5 // pred_check
      _
    $region10: #{up_forward.3} parent=5 // pred_check_branch
      %132 = sbr.rel (%p129) target = $region12
    $region11: #{up_forward.3} parent=5 // pred_region
      %s133 = ssub.s32 %s9, 1
      // Predicated region
      $region13: #{up_forward.3} parent=11 // pred_check
        %p134 = pneg %p70
      $region14: #{up_forward.3} parent=11 // pred_check_branch
        %136 = sbr.rel (%p134) target = $region16
      $region15: #{up_forward.3} parent=11 // pred_region
        _
      $region16: #{up_forward.3} parent=11 // pred_fallthru
        _
      // Predicated region
      $region17: #{up_forward.3} parent=11 // pred_check
        %p137 = pneg %p91
      $region18: #{up_forward.3} parent=11 // pred_check_branch
        %139 = sbr.rel (%p137) target = $region20
      $region19: #{up_forward.3} parent=11 // pred_region
        _
      $region20: #{up_forward.3} parent=11 // pred_fallthru
        _
    $region12: #{up_forward.3} parent=5 // pred_fallthru
      _
    %p140 = scmp.lt.s32.totalorder %s9, 2
    // Predicated region
    $region21: #{up_forward.3} parent=5 // pred_check
      %p141 = pneg %p140
    $region22: #{up_forward.3} parent=5 // pred_check_branch
      %143 = sbr.rel (%p141) target = $region24
    $region23: #{up_forward.3} parent=5 // pred_region
      // Predicated region
      $region25: #{up_forward.3} parent=23 // pred_check
        %p144 = pneg %p43
      $region26: #{up_forward.3} parent=23 // pred_check_branch
        %146 = sbr.rel (%p144) target = $region28
      $region27: #{up_forward.3} parent=23 // pred_region
        %s147 = smul.u32 8, %s17
        %p148 = scmp.lt.s32.totalorder %s16, 1
        %s149 = scalar_select %p148, %s16, 1
        %p150 = scmp.lt.s32.totalorder %s147, 7
        %s151 = scalar_select %p150, %s147, 7
        %s152 = smul.addr %s149, 8
        %s153 = sadd.s32 %s151, %s152
        %s154 = smul.addr %s153, 4
        %s155 = scalar_lea.vmem %s0, %s154
        %s156 = smul.u32 8, %s17
      $region28: #{up_forward.3} parent=23 // pred_fallthru
        _
    $region24: #{up_forward.3} parent=5 // pred_fallthru
      _
    %p157 = scmp.le.s32.totalorder 1, %s9
    %p158 = scmp.lt.s32.totalorder %s9, 3
    %p159 = pnand %p157, %p158
    %p160 = pneg %p159
    // Predicated region
    $region29: #{up_forward.3} parent=5 // pred_check
      _
    $region30: #{up_forward.3} parent=5 // pred_check_branch
      %162 = sbr.rel (%p159) target = $region32
    $region31: #{up_forward.3} parent=5 // pred_region
      %s163 = ssub.s32 %s9, 1
      %s164 = smul.u32 8, %s19
      %p165 = scmp.lt.s32.totalorder %s18, 1
      %s166 = scalar_select %p165, %s18, 1
      %p167 = scmp.lt.s32.totalorder %s164, 7
      %s168 = scalar_select %p167, %s164, 7
      %s169 = smul.addr %s166, 8
      %s170 = sadd.s32 %s168, %s169
      %s171 = smul.addr %s170, 4
      %s172 = scalar_lea.vmem %s0, %s171
      %p173 = pneg %p49
      %p174 = pneg %p46
      %p175 = pneg %p70
      %p176 = pneg %p67
      %p177 = pneg %p91
      %p178 = pneg %p88
      %p179 = pneg %p119
      %p180 = pneg %p116
      %s181 = smul.u32 8, %s19
      %p182 = scmp.lt.s32.totalorder %s18, 1
      %s183 = scalar_select %p182, %s18, 1
      %p184 = scmp.lt.s32.totalorder %s181, 7
      %s185 = scalar_select %p184, %s181, 7
      %s186 = smul.addr %s185, 2
      %s187 = smul.addr %s183, 16
      %s188 = sadd.s32 %s186, %s187
      %s189 = smul.addr %s188, 4
      %s190 = scalar_lea.vmem %s3, %s189
      %s191 = smul.u32 8, %s19
      %p192 = scmp.lt.s32.totalorder %s18, 1
      %s193 = scalar_select %p192, %s18, 1
      %p194 = scmp.lt.s32.totalorder %s191, 7
      %s195 = scalar_select %p194, %s191, 7
      %s196 = smul.addr %s193, 8
      %s197 = sadd.s32 %s195, %s196
      %s198 = smul.addr %s197, 4
      %s199 = scalar_lea.vmem %s0, %s198
      %s200 = smul.u32 8, %s19
      %s201 = smul.u32 8, %s19
      %p202 = scmp.lt.s32.totalorder %s18, 1
      %s203 = scalar_select %p202, %s18, 1
      %p204 = scmp.lt.s32.totalorder %s201, 7
      %s205 = scalar_select %p204, %s201, 7
      %s206 = smul.addr %s205, 2
      %s207 = smul.addr %s203, 16
      %s208 = sadd.s32 %s206, %s207
      %s209 = smul.addr %s208, 4
      %s210 = scalar_lea.vmem %s3, %s209
      %s211 = smul.u32 8, %s19
      %v213 = vld [vmem:[%s199] sm:$0xf]
      %v214 = vld [vmem:[%s199 + $0x4] sm:$0xf]
      %v215 = vld [vmem:[%s199 + $0x8] sm:$0xf]
      %v216 = vld [vmem:[%s199 + $0xc] sm:$0xf]
      %v217 = vld [vmem:[%s199 + $0x10] sm:$0xf]
      %v218 = vld [vmem:[%s199 + $0x14] sm:$0xf]
      %v219 = vld [vmem:[%s199 + $0x18] sm:$0xf]
      %v220 = vld [vmem:[%s199 + $0x1c] sm:$0xf]
      %v221 = vld [vmem:[%s1] sm:$0xf]
      %v222 = vld [vmem:[%s2] sm:$0x1]
      %v224 = vlaneseq
      %v225 = vshrl.u32 %v224, 7
      %v226 = vsub.s32 0, %v225
      %v227 = vrot.slane %v222, %v226
      %v237 = vunpack.c.l.b16 %v213
      %v238 = vunpack.c.l.b16 %v214
      %v239 = vunpack.c.l.b16 %v215
      %v240 = vunpack.c.l.b16 %v216
      %v241 = vunpack.c.l.b16 %v217
      %v242 = vunpack.c.l.b16 %v218
      %v243 = vunpack.c.l.b16 %v219
      %v244 = vunpack.c.l.b16 %v220
      %v245 = vpack.c.b16 %v238, %v237
      %v246 = vpack.c.b16 %v240, %v239
      %v247 = vpack.c.b16 %v242, %v241
      %v248 = vpack.c.b16 %v244, %v243
      %vm249 = vcmask 64512
      %v251 = vsel %vm249, %v245, 0
      %v254 = vsel %vm249, %v246, 0
      %v257 = vsel %vm249, %v247, 0
      %v260 = vsel %vm249, %v248, 0
      %vm262 = vcmask 1043456
      %v264 = vsel %vm262, %v221, 0
      %266 = vmatprep.subr.bf16.mxu0 0
      %267 = vmatpush1.bf16.msra.mxu0 %v264
      %268 = vmatprep.subr.bf16.mxu0 0
      %269 = vmatpush1.bf16.msra.mxu0 0
      %270 = vmatprep.subr.bf16.mxu0 0
      %271 = vmatpush1.bf16.msra.mxu0 0
      %272 = vmatprep.subr.bf16.mxu0 0
      %273 = vmatpush1.bf16.msra.mxu0 0
      %274 = vmatprep.subr.bf16.mxu0 0
      %275 = vmatpush1.bf16.msra.mxu0 0
      %276 = vmatprep.subr.bf16.mxu0 0
      %277 = vmatpush1.bf16.msra.mxu0 0
      %278 = vmatprep.subr.bf16.mxu0 0
      %279 = vmatpush1.bf16.msra.mxu0 0
      %280 = vmatprep.subr.bf16.mxu0 0
      %281 = vmatpush1.bf16.msra.mxu0 0
      %282 = vmatprep.subr.bf16.mxu0 0
      %283 = vmatpush1.bf16.msra.mxu0 0
      %284 = vmatprep.subr.bf16.mxu0 0
      %285 = vmatpush1.bf16.msra.mxu0 0
      %286 = vmatprep.subr.bf16.mxu0 0
      %287 = vmatpush1.bf16.msra.mxu0 0
      %288 = vmatprep.subr.bf16.mxu0 0
      %289 = vmatpush1.bf16.msra.mxu0 0
      %290 = vmatprep.subr.bf16.mxu0 0
      %291 = vmatpush1.bf16.msra.mxu0 0
      %292 = vmatprep.subr.bf16.mxu0 0
      %293 = vmatpush1.bf16.msra.mxu0 0
      %294 = vmatprep.subr.bf16.mxu0 0
      %295 = vmatpush1.bf16.msra.mxu0 0
      %296 = vmatprep.subr.bf16.mxu0 0
      %297 = vmatpush1.bf16.msra.mxu0 0
      %298 = vmatprep.mubr.bf16.mxu0 0
      %299 = vmatmul.mubr.bf16.gmra.mrb[0].mxu0 %v251
      %v300 = vpop.f32.mrb[0].mxu0
      %v301 = vadd.f32 %v227, %v300
      %v302 = vpop.f32.mrb[0].mxu0
      %v303 = vpop.f32.mrb[0].mxu0
      %v304 = vadd.f32 %v227, %v303
      %v305 = vpop.f32.mrb[0].mxu0
      %306 = vmatprep.mubr.bf16.mxu0 0
      %307 = vmatmul.mubr.bf16.gmra.mrb[0].mxu0 %v254
      %v308 = vpop.f32.mrb[0].mxu0
      %v309 = vadd.f32 %v227, %v308
      %v310 = vpop.f32.mrb[0].mxu0
      %v311 = vpop.f32.mrb[0].mxu0
      %v312 = vadd.f32 %v227, %v311
      %v313 = vpop.f32.mrb[0].mxu0
      %314 = vmatprep.mubr.bf16.mxu0 0
      %315 = vmatmul.mubr.bf16.gmra.mrb[0].mxu0 %v257
      %v316 = vpop.f32.mrb[0].mxu0
      %v317 = vadd.f32 %v227, %v316
      %v318 = vpop.f32.mrb[0].mxu0
      %v319 = vpop.f32.mrb[0].mxu0
      %v320 = vadd.f32 %v227, %v319
      %v321 = vpop.f32.mrb[0].mxu0
      %322 = vmatprep.mubr.bf16.mxu0 0
      %323 = vmatmul.mubr.bf16.gmra.mrb[0].mxu0 %v260
      %v324 = vpop.f32.mrb[0].mxu0
      %v325 = vadd.f32 %v227, %v324
      %v326 = vpop.f32.mrb[0].mxu0
      %v327 = vpop.f32.mrb[0].mxu0
      %v328 = vadd.f32 %v227, %v327
      %v329 = vpop.f32.mrb[0].mxu0
      %330 = vdwg.mxu0
      %v331 = vpack.c.bf16 %v301, %v301
      %v332 = vpack.c.bf16 %v304, %v304
      %v333 = vpack.c.bf16 %v309, %v309
      %v334 = vpack.c.bf16 %v312, %v312
      %v335 = vpack.c.bf16 %v317, %v317
      %v336 = vpack.c.bf16 %v320, %v320
      %v337 = vpack.c.bf16 %v325, %v325
      %v338 = vpack.c.bf16 %v328, %v328
      %vm339 = vcmask 60416
      %340 = vst.msk [vmem:[%s210] sm:$0xf] %vm339, %v331
      %341 = vst.msk [vmem:[%s210 + $0x8] sm:$0xf] %vm339, %v332
      %342 = vst.msk [vmem:[%s210 + $0x10] sm:$0xf] %vm339, %v333
      %343 = vst.msk [vmem:[%s210 + $0x18] sm:$0xf] %vm339, %v334
      %344 = vst.msk [vmem:[%s210 + $0x20] sm:$0xf] %vm339, %v335
      %345 = vst.msk [vmem:[%s210 + $0x28] sm:$0xf] %vm339, %v336
      %346 = vst.msk [vmem:[%s210 + $0x30] sm:$0xf] %vm339, %v337
      %347 = vst.msk [vmem:[%s210 + $0x38] sm:$0xf] %vm339, %v338
      %v356 = vunpack.c.l.b16 %v331
      %v357 = vunpack.c.l.b16 %v332
      %v358 = vunpack.c.l.b16 %v333
      %v359 = vunpack.c.l.b16 %v334
      %v360 = vunpack.c.l.b16 %v335
      %v361 = vunpack.c.l.b16 %v336
      %v362 = vunpack.c.l.b16 %v337
      %v363 = vunpack.c.l.b16 %v338
      %v364 = vpack.c.b16 %v356, %v356
      %v365 = vpack.c.b16 %v357, %v357
      %v366 = vpack.c.b16 %v358, %v358
      %v367 = vpack.c.b16 %v359, %v359
      %v368 = vpack.c.b16 %v360, %v360
      %v369 = vpack.c.b16 %v361, %v361
      %v370 = vpack.c.b16 %v362, %v362
      %v371 = vpack.c.b16 %v363, %v363
      %372 = vrot.lane.b32.xlu0 %v364, 120
      %v373 = vpop.permute.xlu0 %372
      %374 = vrot.lane.b32.xlu0 %v365, 120
      %v375 = vpop.permute.xlu0 %374
      %376 = vrot.lane.b32.xlu0 %v366, 120
      %v377 = vpop.permute.xlu0 %376
      %378 = vrot.lane.b32.xlu0 %v367, 120
      %v379 = vpop.permute.xlu0 %378
      %380 = vrot.lane.b32.xlu0 %v368, 120
      %v381 = vpop.permute.xlu0 %380
      %382 = vrot.lane.b32.xlu0 %v369, 120
      %v383 = vpop.permute.xlu0 %382
      %384 = vrot.lane.b32.xlu0 %v370, 120
      %v385 = vpop.permute.xlu0 %384
      %386 = vrot.lane.b32.xlu0 %v371, 120
      %v387 = vpop.permute.xlu0 %386
      %s396 = scalar_lea.vmem %s210, 4
      %397 = vst.msk [vmem:[%s396] sm:$0xf] %vm339, %v373
      %398 = vst.msk [vmem:[%s396 + $0x8] sm:$0xf] %vm339, %v375
      %399 = vst.msk [vmem:[%s396 + $0x10] sm:$0xf] %vm339, %v377
      %400 = vst.msk [vmem:[%s396 + $0x18] sm:$0xf] %vm339, %v379
      %401 = vst.msk [vmem:[%s396 + $0x20] sm:$0xf] %vm339, %v381
      %402 = vst.msk [vmem:[%s396 + $0x28] sm:$0xf] %vm339, %v383
      %403 = vst.msk [vmem:[%s396 + $0x30] sm:$0xf] %vm339, %v385
      %404 = vst.msk [vmem:[%s396 + $0x38] sm:$0xf] %vm339, %v387
      %s405 = smul.u32 8, %s19
      %p406 = scmp.lt.s32.totalorder %s18, 1
      %s407 = scalar_select %p406, %s18, 1
      %p408 = scmp.lt.s32.totalorder %s405, 7
      %s409 = scalar_select %p408, %s405, 7
      %s410 = smul.addr %s409, 2
      %s411 = smul.addr %s407, 16
      %s412 = sadd.s32 %s410, %s411
      %s413 = smul.addr %s412, 4
      %s414 = scalar_lea.vmem %s3, %s413
      // Predicated region
      $region33: #{up_forward.3} parent=31 // pred_check
        %p415 = pneg %p116
      $region34: #{up_forward.3} parent=31 // pred_check_branch
        %417 = sbr.rel (%p415) target = $region36
      $region35: #{up_forward.3} parent=31 // pred_region
        %s418 = smul.u32 8, %s19
      $region36: #{up_forward.3} parent=31 // pred_fallthru
        _
    $region32: #{up_forward.3} parent=5 // pred_fallthru
      _
    %p419 = scmp.le.s32.totalorder 2, %s9
    // Predicated region
    $region37: #{up_forward.3} parent=5 // pred_check
      %p420 = pneg %p419
    $region38: #{up_forward.3} parent=5 // pred_check_branch
      %422 = sbr.rel (%p420) target = $region40
    $region39: #{up_forward.3} parent=5 // pred_region
      %s423 = ssub.s32 %s9, 2
      // Predicated region
      $region41: #{up_forward.3} parent=39 // pred_check
        %p424 = pneg %p122
      $region42: #{up_forward.3} parent=39 // pred_check_branch
        %426 = sbr.rel (%p424) target = $region44
      $region43: #{up_forward.3} parent=39 // pred_region
        %s427 = smul.u32 8, %s21
        %p428 = scmp.lt.s32.totalorder %s20, 1
        %s429 = scalar_select %p428, %s20, 1
        %p430 = scmp.lt.s32.totalorder %s427, 7
        %s431 = scalar_select %p430, %s427, 7
        %s432 = smul.addr %s431, 2
        %s433 = smul.addr %s429, 16
        %s434 = sadd.s32 %s432, %s433
        %s435 = smul.addr %s434, 4
        %s436 = scalar_lea.vmem %s3, %s435
      $region44: #{up_forward.3} parent=39 // pred_fallthru
        _
    $region40: #{up_forward.3} parent=5 // pred_fallthru
      _
  $region6: #{up_forward.3} parent=0 // loop_footer
    %s13 = sadd.s32 1, %s9
  $region7: #{up_forward.3} parent=0 // loop_footer_branch
    %8 = sbr.rel target = $region3
  $region8: #{up_forward.3} parent=0 // loop_exit
    _

// kernel: up_forward.5
$region0: #{up_forward.5}
  #allocation0 [shape = 'u32[]', space=smem, size = 0x4, offset = 0x4, fixed_abs, tag = 'smem constant byte address 0x4 - core index']
  #allocation1 [shape = 'u32[144,128]{1,0:T(1,128)}', space=vmem, size = 0x12000, scoped, tag = 'internal scratch']
  #allocation2 [shape = 'f32[256,4]{1,0:T(8,128)}', space=vmem, size = 0x20000, scoped, tag = 'scratch operand']
  %s0 = inlined_call_operand.vmem [shape: bf16[2,16,16,4], index: 0, kind: input, shape index: {}]
  %s1 = inlined_call_operand.vmem [shape: bf16[3,12,4], index: 1, kind: input, shape index: {}]
  %s2 = inlined_call_operand.vmem [shape: f32[1,4], index: 2, kind: input, shape index: {}]
  %s3 = inlined_call_operand.vmem [shape: f32[1,4], index: 3, kind: input, shape index: {}]
  %s4 = inlined_call_operand.vmem [shape: f32[2,16,16,4], index: 4, kind: output, shape index: {}]
  %s5 = sld [smem:[#allocation0]]
  $region49: #{up_forward.5} parent=0
    _
  %s7 = ssub.s32 1, %s5
  %s8 = scalar_select 0, %s7, %s5
  loop: start=0, step=1, limit=4
  $region2: #{up_forward.5} parent=0 // loop_pre_header
    _
  $region3: #{up_forward.5} parent=0 // loop_header
    %s10 = sphi 0, %s14
    %p11 = scmp.ge.s32.totalorder %s10, 4
    %s17 = sphi 0, %s29
    %s18 = sphi 0, %s25
    %s19 = sphi 0, %s17
    %s20 = sphi 0, %s18
    %s21 = sphi 0, %s19
    %s22 = sphi 0, %s20
    %s32 = sphi 0, %s34
    %s35 = sphi 0, %s32
    %s36 = sphi 0, %s35
    %s52 = sphi 0, %s36
    %s58 = sphi 0, %s60
    %s61 = sphi 0, %s58
    %s62 = sphi 0, %s61
    %s78 = sphi 0, %s62
    %s84 = sphi 0, %s86
    %s87 = sphi 0, %s84
    %s88 = sphi 0, %s87
    %s104 = sphi 0, %s88
    %s110 = sphi 0, %s112
    %s113 = sphi 0, %s110
    %s114 = sphi 0, %s113
    %s130 = sphi 0, %s114
    %s138 = sphi 0, %s140
    %s141 = sphi 0, %s138
    %s142 = sphi 0, %s141
    %s158 = sphi 0, %s142
  $region4: #{up_forward.5} parent=0 // loop_header_branch
    %13 = sbr.rel (%p11) target = $region8
  $region5: #{up_forward.5} parent=0 // loop_body
    %s15 = ssub.s32 %s10, 1
    %s16 = ssub.s32 %s10, 2
    %s23 = sadd.s32 1, %s18
    %p24 = scmp.ge.s32.totalorder %s23, 1
    %s25 = scalar_select %p24, 0, %s23
    %s26 = sadd.s32 1, %s17
    %s27 = scalar_select %p24, %s26, %s17
    %p28 = scmp.ge.s32.totalorder %s27, 2
    %s29 = scalar_select %p28, 0, %s27
    %s30 = ssub.s32 %s17, %s29
    %p31 = scmp.eq.s32.totalorder %s30, 0
    %s33 = sadd.s32 %s32, 1
    %s34 = scalar_select %p31, %s32, %s33
    %p37 = pneg %p31
    %p38 = scmp.eq.s32.totalorder %s10, 1
    %p39 = por %p37, %p38
    %p40 = scmp.ne.s32.totalorder %s32, %s35
    %p41 = scmp.eq.s32.totalorder %s10, 0
    %p42 = por %p40, %p41
    %p43 = scmp.ne.s32.totalorder %s32, %s35
    %p44 = scmp.eq.s32.totalorder %s15, 1
    %p45 = por %p43, %p44
    %p46 = scmp.ne.s32.totalorder %s35, %s36
    %p47 = scmp.eq.s32.totalorder %s15, 0
    %p48 = por %p46, %p47
    %p49 = scmp.ne.s32.totalorder %s35, %s36
    %p50 = scmp.eq.s32.totalorder %s16, 1
    %p51 = por %p49, %p50
    %p53 = scmp.ne.s32.totalorder %s36, %s52
    %p54 = scmp.eq.s32.totalorder %s16, 0
    %p55 = por %p53, %p54
    %s56 = ssub.s32 %s18, %s25
    %p57 = scmp.eq.s32.totalorder %s56, 0
    %s59 = sadd.s32 %s58, 1
    %s60 = scalar_select %p57, %s58, %s59
    %p63 = pneg %p57
    %p64 = scmp.eq.s32.totalorder %s10, 1
    %p65 = por %p63, %p64
    %p66 = scmp.ne.s32.totalorder %s58, %s61
    %p67 = scmp.eq.s32.totalorder %s10, 0
    %p68 = por %p66, %p67
    %p69 = scmp.ne.s32.totalorder %s58, %s61
    %p70 = scmp.eq.s32.totalorder %s15, 1
    %p71 = por %p69, %p70
    %p72 = scmp.ne.s32.totalorder %s61, %s62
    %p73 = scmp.eq.s32.totalorder %s15, 0
    %p74 = por %p72, %p73
    %p75 = scmp.ne.s32.totalorder %s61, %s62
    %p76 = scmp.eq.s32.totalorder %s16, 1
    %p77 = por %p75, %p76
    %p79 = scmp.ne.s32.totalorder %s62, %s78
    %p80 = scmp.eq.s32.totalorder %s16, 0
    %p81 = por %p79, %p80
    %s82 = ssub.s32 %s18, %s25
    %p83 = scmp.eq.s32.totalorder %s82, 0
    %s85 = sadd.s32 %s84, 1
    %s86 = scalar_select %p83, %s84, %s85
    %p89 = pneg %p83
    %p90 = scmp.eq.s32.totalorder %s10, 1
    %p91 = por %p89, %p90
    %p92 = scmp.ne.s32.totalorder %s84, %s87
    %p93 = scmp.eq.s32.totalorder %s10, 0
    %p94 = por %p92, %p93
    %p95 = scmp.ne.s32.totalorder %s84, %s87
    %p96 = scmp.eq.s32.totalorder %s15, 1
    %p97 = por %p95, %p96
    %p98 = scmp.ne.s32.totalorder %s87, %s88
    %p99 = scmp.eq.s32.totalorder %s15, 0
    %p100 = por %p98, %p99
    %p101 = scmp.ne.s32.totalorder %s87, %s88
    %p102 = scmp.eq.s32.totalorder %s16, 1
    %p103 = por %p101, %p102
    %p105 = scmp.ne.s32.totalorder %s88, %s104
    %p106 = scmp.eq.s32.totalorder %s16, 0
    %p107 = por %p105, %p106
    %s108 = ssub.s32 %s18, %s25
    %p109 = scmp.eq.s32.totalorder %s108, 0
    %s111 = sadd.s32 %s110, 1
    %s112 = scalar_select %p109, %s110, %s111
    %p115 = pneg %p109
    %p116 = scmp.eq.s32.totalorder %s10, 1
    %p117 = por %p115, %p116
    %p118 = scmp.ne.s32.totalorder %s110, %s113
    %p119 = scmp.eq.s32.totalorder %s10, 0
    %p120 = por %p118, %p119
    %p121 = scmp.ne.s32.totalorder %s110, %s113
    %p122 = scmp.eq.s32.totalorder %s15, 1
    %p123 = por %p121, %p122
    %p124 = scmp.ne.s32.totalorder %s113, %s114
    %p125 = scmp.eq.s32.totalorder %s15, 0
    %p126 = por %p124, %p125
    %p127 = scmp.ne.s32.totalorder %s113, %s114
    %p128 = scmp.eq.s32.totalorder %s16, 1
    %p129 = por %p127, %p128
    %p131 = scmp.ne.s32.totalorder %s114, %s130
    %p132 = scmp.eq.s32.totalorder %s16, 0
    %p133 = por %p131, %p132
    %s134 = ssub.s32 %s17, %s29
    %s135 = ssub.s32 %s18, %s25
    %s136 = sor.u32 %s134, %s135
    %p137 = scmp.eq.s32.totalorder %s136, 0
    %s139 = sadd.s32 %s138, 1
    %s140 = scalar_select %p137, %s138, %s139
    %p143 = pneg %p137
    %p144 = scmp.eq.s32.totalorder %s10, 1
    %p145 = por %p143, %p144
    %p146 = scmp.ne.s32.totalorder %s138, %s141
    %p147 = scmp.eq.s32.totalorder %s10, 0
    %p148 = por %p146, %p147
    %p149 = scmp.ne.s32.totalorder %s138, %s141
    %p150 = scmp.eq.s32.totalorder %s15, 1
    %p151 = por %p149, %p150
    %p152 = scmp.ne.s32.totalorder %s141, %s142
    %p153 = scmp.eq.s32.totalorder %s15, 0
    %p154 = por %p152, %p153
    %p155 = scmp.ne.s32.totalorder %s141, %s142
    %p156 = scmp.eq.s32.totalorder %s16, 1
    %p157 = por %p155, %p156
    %p159 = scmp.ne.s32.totalorder %s142, %s158
    %p160 = scmp.eq.s32.totalorder %s16, 0
    %p161 = por %p159, %p160
    %p162 = scmp.le.s32.totalorder 1, %s10
    %p163 = scmp.lt.s32.totalorder %s10, 3
    %p164 = pnand %p162, %p163
    %p165 = pneg %p164
    // Predicated region
    $region9: #{up_forward.5} parent=5 // pred_check
      _
    $region10: #{up_forward.5} parent=5 // pred_check_branch
      %167 = sbr.rel (%p164) target = $region12
    $region11: #{up_forward.5} parent=5 // pred_region
      %s168 = ssub.s32 %s10, 1
      // Predicated region
      $region13: #{up_forward.5} parent=11 // pred_check
        %p169 = pneg %p74
      $region14: #{up_forward.5} parent=11 // pred_check_branch
        %171 = sbr.rel (%p169) target = $region16
      $region15: #{up_forward.5} parent=11 // pred_region
        %p172 = scmp.lt.s32.totalorder %s20, 0
        %s173 = scalar_select %p172, %s20, 0
        %s174 = smul.addr %s173, 4
        %s175 = scalar_lea.vmem %s1, %s174
      $region16: #{up_forward.5} parent=11 // pred_fallthru
        _
      // Predicated region
      $region17: #{up_forward.5} parent=11 // pred_check
        %p176 = pneg %p100
      $region18: #{up_forward.5} parent=11 // pred_check_branch
        %178 = sbr.rel (%p176) target = $region20
      $region19: #{up_forward.5} parent=11 // pred_region
        %p179 = scmp.lt.s32.totalorder %s20, 0
        %s180 = scalar_select %p179, %s20, 0
        %s181 = scalar_lea.vmem %s2, %s180
      $region20: #{up_forward.5} parent=11 // pred_fallthru
        _
      // Predicated region
      $region21: #{up_forward.5} parent=11 // pred_check
        %p182 = pneg %p126
      $region22: #{up_forward.5} parent=11 // pred_check_branch
        %184 = sbr.rel (%p182) target = $region24
      $region23: #{up_forward.5} parent=11 // pred_region
        %p185 = scmp.lt.s32.totalorder %s20, 0
        %s186 = scalar_select %p185, %s20, 0
        %s187 = scalar_lea.vmem %s3, %s186
      $region24: #{up_forward.5} parent=11 // pred_fallthru
        _
    $region12: #{up_forward.5} parent=5 // pred_fallthru
      _
    %p188 = scmp.lt.s32.totalorder %s10, 2
    // Predicated region
    $region25: #{up_forward.5} parent=5 // pred_check
      %p189 = pneg %p188
    $region26: #{up_forward.5} parent=5 // pred_check_branch
      %191 = sbr.rel (%p189) target = $region28
    $region27: #{up_forward.5} parent=5 // pred_region
      // Predicated region
      $region29: #{up_forward.5} parent=27 // pred_check
        %p192 = pneg %p42
      $region30: #{up_forward.5} parent=27 // pred_check_branch
        %194 = sbr.rel (%p192) target = $region32
      $region31: #{up_forward.5} parent=27 // pred_region
        %p195 = scmp.lt.s32.totalorder %s17, 1
        %s196 = scalar_select %p195, %s17, 1
        %s197 = smul.addr %s196, 32
        %s198 = smul.addr %s197, 4
        %s199 = scalar_lea.vmem %s0, %s198
      $region32: #{up_forward.5} parent=27 // pred_fallthru
        _
    $region28: #{up_forward.5} parent=5 // pred_fallthru
      _
    %p200 = scmp.le.s32.totalorder 1, %s10
    %p201 = scmp.lt.s32.totalorder %s10, 3
    %p202 = pnand %p200, %p201
    %p203 = pneg %p202
    // Predicated region
    $region33: #{up_forward.5} parent=5 // pred_check
      _
    $region34: #{up_forward.5} parent=5 // pred_check_branch
      %205 = sbr.rel (%p202) target = $region36
    $region35: #{up_forward.5} parent=5 // pred_region
      %s206 = ssub.s32 %s10, 1
      %p207 = scmp.lt.s32.totalorder %s19, 1
      %s208 = scalar_select %p207, %s19, 1
      %s209 = smul.addr %s208, 32
      %s210 = smul.addr %s209, 4
      %s211 = scalar_lea.vmem %s0, %s210
      %p212 = pneg %p48
      %p213 = pneg %p45
      %p214 = scmp.lt.s32.totalorder %s20, 0
      %s215 = scalar_select %p214, %s20, 0
      %s216 = smul.addr %s215, 4
      %s217 = scalar_lea.vmem %s1, %s216
      %p218 = pneg %p74
      %p219 = pneg %p71
      %p220 = scmp.lt.s32.totalorder %s20, 0
      %s221 = scalar_select %p220, %s20, 0
      %s222 = scalar_lea.vmem %s2, %s221
      %p223 = pneg %p100
      %p224 = pneg %p97
      %p225 = scmp.lt.s32.totalorder %s20, 0
      %s226 = scalar_select %p225, %s20, 0
      %s227 = scalar_lea.vmem %s3, %s226
      %p228 = pneg %p126
      %p229 = pneg %p123
      %p230 = pneg %p154
      %p231 = pneg %p151
      %p232 = scmp.lt.s32.totalorder %s19, 1
      %s233 = scalar_select %p232, %s19, 1
      %p234 = scmp.lt.s32.totalorder %s20, 0
      %s235 = scalar_select %p234, %s20, 0
      %s236 = smul.addr %s233, 32
      %s237 = sadd.s32 %s235, %s236
      %s238 = smul.addr %s237, 8
      %s239 = scalar_lea.vmem %s4, %s238
      %p240 = scmp.lt.s32.totalorder %s19, 1
      %s241 = scalar_select %p240, %s19, 1
      %s242 = smul.addr %s241, 32
      %s243 = smul.addr %s242, 4
      %s244 = scalar_lea.vmem %s0, %s243
      %p245 = scmp.lt.s32.totalorder %s20, 0
      %s246 = scalar_select %p245, %s20, 0
      %s247 = smul.addr %s246, 4
      %s248 = scalar_lea.vmem %s1, %s247
      %p249 = scmp.lt.s32.totalorder %s20, 0
      %s250 = scalar_select %p249, %s20, 0
      %s251 = scalar_lea.vmem %s2, %s250
      %p252 = scmp.lt.s32.totalorder %s20, 0
      %s253 = scalar_select %p252, %s20, 0
      %s254 = scalar_lea.vmem %s3, %s253
      %p255 = scmp.lt.s32.totalorder %s19, 1
      %s256 = scalar_select %p255, %s19, 1
      %p257 = scmp.lt.s32.totalorder %s20, 0
      %s258 = scalar_select %p257, %s20, 0
      %s259 = smul.addr %s256, 32
      %s260 = sadd.s32 %s258, %s259
      %s261 = smul.addr %s260, 8
      %s262 = scalar_lea.vmem %s4, %s261
      %v264 = vld [vmem:[%s244] sm:$0xf]
      %v265 = vld [vmem:[%s244 + $0x4] sm:$0xf]
      %v266 = vld [vmem:[%s244 + $0x8] sm:$0xf]
      %v267 = vld [vmem:[%s244 + $0xc] sm:$0xf]
      %v268 = vld [vmem:[%s244 + $0x10] sm:$0xf]
      %v269 = vld [vmem:[%s244 + $0x14] sm:$0xf]
      %v270 = vld [vmem:[%s244 + $0x18] sm:$0xf]
      %v271 = vld [vmem:[%s244 + $0x1c] sm:$0xf]
      %v272 = vld [vmem:[%s244 + $0x20] sm:$0xf]
      %v273 = vld [vmem:[%s244 + $0x24] sm:$0xf]
      %v274 = vld [vmem:[%s244 + $0x28] sm:$0xf]
      %v275 = vld [vmem:[%s244 + $0x2c] sm:$0xf]
      %v276 = vld [vmem:[%s244 + $0x30] sm:$0xf]
      %v277 = vld [vmem:[%s244 + $0x34] sm:$0xf]
      %v278 = vld [vmem:[%s244 + $0x38] sm:$0xf]
      %v279 = vld [vmem:[%s244 + $0x3c] sm:$0xf]
      %v280 = vld [vmem:[%s244 + $0x40] sm:$0xf]
      %v281 = vld [vmem:[%s244 + $0x44] sm:$0xf]
      %v282 = vld [vmem:[%s244 + $0x48] sm:$0xf]
      %v283 = vld [vmem:[%s244 + $0x4c] sm:$0xf]
      %v284 = vld [vmem:[%s244 + $0x50] sm:$0xf]
      %v285 = vld [vmem:[%s244 + $0x54] sm:$0xf]
      %v286 = vld [vmem:[%s244 + $0x58] sm:$0xf]
      %v287 = vld [vmem:[%s244 + $0x5c] sm:$0xf]
      %v288 = vld [vmem:[%s244 + $0x60] sm:$0xf]
      %v289 = vld [vmem:[%s244 + $0x64] sm:$0xf]
      %v290 = vld [vmem:[%s244 + $0x68] sm:$0xf]
      %v291 = vld [vmem:[%s244 + $0x6c] sm:$0xf]
      %v292 = vld [vmem:[%s244 + $0x70] sm:$0xf]
      %v293 = vld [vmem:[%s244 + $0x74] sm:$0xf]
      %v294 = vld [vmem:[%s244 + $0x78] sm:$0xf]
      %v295 = vld [vmem:[%s244 + $0x7c] sm:$0xf]
      %v328 = vunpack.c.l.b16 %v264
      %v329 = vunpack.c.l.b16 %v265
      %v330 = vunpack.c.l.b16 %v266
      %v331 = vunpack.c.l.b16 %v267
      %v332 = vunpack.c.l.b16 %v268
      %v333 = vunpack.c.l.b16 %v269
      %v334 = vunpack.c.l.b16 %v270
      %v335 = vunpack.c.l.b16 %v271
      %v336 = vunpack.c.l.b16 %v272
      %v337 = vunpack.c.l.b16 %v273
      %v338 = vunpack.c.l.b16 %v274
      %v339 = vunpack.c.l.b16 %v275
      %v340 = vunpack.c.l.b16 %v276
      %v341 = vunpack.c.l.b16 %v277
      %v342 = vunpack.c.l.b16 %v278
      %v343 = vunpack.c.l.b16 %v279
      %v344 = vunpack.c.l.b16 %v280
      %v345 = vunpack.c.l.b16 %v281
      %v346 = vunpack.c.l.b16 %v282
      %v347 = vunpack.c.l.b16 %v283
      %v348 = vunpack.c.l.b16 %v284
      %v349 = vunpack.c.l.b16 %v285
      %v350 = vunpack.c.l.b16 %v286
      %v351 = vunpack.c.l.b16 %v287
      %v352 = vunpack.c.l.b16 %v288
      %v353 = vunpack.c.l.b16 %v289
      %v354 = vunpack.c.l.b16 %v290
      %v355 = vunpack.c.l.b16 %v291
      %v356 = vunpack.c.l.b16 %v292
      %v357 = vunpack.c.l.b16 %v293
      %v358 = vunpack.c.l.b16 %v294
      %v359 = vunpack.c.l.b16 %v295
      %v360 = vpack.c.b16 %v329, %v328
      %v361 = vpack.c.b16 %v331, %v330
      %v362 = vpack.c.b16 %v333, %v332
      %v363 = vpack.c.b16 %v335, %v334
      %v364 = vpack.c.b16 %v337, %v336
      %v365 = vpack.c.b16 %v339, %v338
      %v366 = vpack.c.b16 %v341, %v340
      %v367 = vpack.c.b16 %v343, %v342
      %v368 = vpack.c.b16 %v345, %v344
      %v369 = vpack.c.b16 %v347, %v346
      %v370 = vpack.c.b16 %v349, %v348
      %v371 = vpack.c.b16 %v351, %v350
      %v372 = vpack.c.b16 %v353, %v352
      %v373 = vpack.c.b16 %v355, %v354
      %v374 = vpack.c.b16 %v357, %v356
      %v375 = vpack.c.b16 %v359, %v358
      %v377 = vshrl.u32 %v360, 16
      %v379 = vrot.slane %v377, 7
      %v380 = vshll.u32 %v360, 16
      %v382 = vor.u32 %v379, %v380
      %v384 = vshrl.u32 %v361, 16
      %v386 = vrot.slane %v384, 7
      %v387 = vshll.u32 %v361, 16
      %v389 = vor.u32 %v386, %v387
      %v391 = vshrl.u32 %v362, 16
      %v393 = vrot.slane %v391, 7
      %v394 = vshll.u32 %v362, 16
      %v396 = vor.u32 %v393, %v394
      %v398 = vshrl.u32 %v363, 16
      %v400 = vrot.slane %v398, 7
      %v401 = vshll.u32 %v363, 16
      %v403 = vor.u32 %v400, %v401
      %v405 = vshrl.u32 %v364, 16
      %v407 = vrot.slane %v405, 7
      %v408 = vshll.u32 %v364, 16
      %v410 = vor.u32 %v407, %v408
      %v412 = vshrl.u32 %v365, 16
      %v414 = vrot.slane %v412, 7
      %v415 = vshll.u32 %v365, 16
      %v417 = vor.u32 %v414, %v415
      %v419 = vshrl.u32 %v366, 16
      %v421 = vrot.slane %v419, 7
      %v422 = vshll.u32 %v366, 16
      %v424 = vor.u32 %v421, %v422
      %v426 = vshrl.u32 %v367, 16
      %v428 = vrot.slane %v426, 7
      %v429 = vshll.u32 %v367, 16
      %v431 = vor.u32 %v428, %v429
      %v433 = vshrl.u32 %v368, 16
      %v435 = vrot.slane %v433, 7
      %v436 = vshll.u32 %v368, 16
      %v438 = vor.u32 %v435, %v436
      %v440 = vshrl.u32 %v369, 16
      %v442 = vrot.slane %v440, 7
      %v443 = vshll.u32 %v369, 16
      %v445 = vor.u32 %v442, %v443
      %v447 = vshrl.u32 %v370, 16
      %v449 = vrot.slane %v447, 7
      %v450 = vshll.u32 %v370, 16
      %v452 = vor.u32 %v449, %v450
      %v454 = vshrl.u32 %v371, 16
      %v456 = vrot.slane %v454, 7
      %v457 = vshll.u32 %v371, 16
      %v459 = vor.u32 %v456, %v457
      %v461 = vshrl.u32 %v372, 16
      %v463 = vrot.slane %v461, 7
      %v464 = vshll.u32 %v372, 16
      %v466 = vor.u32 %v463, %v464
      %v468 = vshrl.u32 %v373, 16
      %v470 = vrot.slane %v468, 7
      %v471 = vshll.u32 %v373, 16
      %v473 = vor.u32 %v470, %v471
      %v475 = vshrl.u32 %v374, 16
      %v477 = vrot.slane %v475, 7
      %v478 = vshll.u32 %v374, 16
      %v480 = vor.u32 %v477, %v478
      %v482 = vshrl.u32 %v375, 16
      %v484 = vrot.slane %v482, 7
      %v485 = vshll.u32 %v375, 16
      %v487 = vor.u32 %v484, %v485
      %vm504 = vcmask 1040384
      %vm505 = vsmask.f32 256
      %vm506 = vmand %vm504, %vm505
      %v507 = vsel %vm506, 0, %v382
      %v508 = vsel %vm506, 0, %v389
      %v509 = vsel %vm506, 0, %v396
      %v510 = vsel %vm506, 0, %v403
      %v511 = vsel %vm506, 0, %v410
      %v512 = vsel %vm506, 0, %v417
      %v513 = vsel %vm506, 0, %v424
      %v514 = vsel %vm506, 0, %v431
      %v515 = vsel %vm506, 0, %v438
      %v516 = vsel %vm506, 0, %v445
      %v517 = vsel %vm506, 0, %v452
      %v518 = vsel %vm506, 0, %v459
      %v519 = vsel %vm506, 0, %v466
      %v520 = vsel %vm506, 0, %v473
      %v521 = vsel %vm506, 0, %v480
      %v522 = vsel %vm506, 0, %v487
      %v523 = vrot.slane %v380, 1
      %v524 = vor.u32 %v377, %v523
      %v525 = vrot.slane %v387, 1
      %v526 = vor.u32 %v384, %v525
      %v527 = vrot.slane %v394, 1
      %v528 = vor.u32 %v391, %v527
      %v529 = vrot.slane %v401, 1
      %v530 = vor.u32 %v398, %v529
      %v531 = vrot.slane %v408, 1
      %v532 = vor.u32 %v405, %v531
      %v533 = vrot.slane %v415, 1
      %v534 = vor.u32 %v412, %v533
      %v535 = vrot.slane %v422, 1
      %v536 = vor.u32 %v419, %v535
      %v537 = vrot.slane %v429, 1
      %v538 = vor.u32 %v426, %v537
      %v539 = vrot.slane %v436, 1
      %v540 = vor.u32 %v433, %v539
      %v541 = vrot.slane %v443, 1
      %v542 = vor.u32 %v440, %v541
      %v543 = vrot.slane %v450, 1
      %v544 = vor.u32 %v447, %v543
      %v545 = vrot.slane %v457, 1
      %v546 = vor.u32 %v454, %v545
      %v547 = vrot.slane %v464, 1
      %v548 = vor.u32 %v461, %v547
      %v549 = vrot.slane %v471, 1
      %v550 = vor.u32 %v468, %v549
      %v551 = vrot.slane %v478, 1
      %v552 = vor.u32 %v475, %v551
      %v553 = vrot.slane %v485, 1
      %v554 = vor.u32 %v482, %v553
      %vm571 = vcmask 1047552
      %vm572 = vsmask.f32 7424
      %vm573 = vmand %vm571, %vm572
      %v574 = vsel %vm573, %v524, 0
      %v575 = vsel %vm573, %v526, 0
      %v576 = vsel %vm573, %v528, 0
      %v577 = vsel %vm573, %v530, 0
      %v578 = vsel %vm573, %v532, 0
      %v579 = vsel %vm573, %v534, 0
      %v580 = vsel %vm573, %v536, 0
      %v581 = vsel %vm573, %v538, 0
      %v582 = vsel %vm573, %v540, 0
      %v583 = vsel %vm573, %v542, 0
      %v584 = vsel %vm573, %v544, 0
      %v585 = vsel %vm573, %v546, 0
      %v586 = vsel %vm573, %v548, 0
      %v587 = vsel %vm573, %v550, 0
      %v588 = vsel %vm573, %v552, 0
      %v589 = vsel %vm573, %v554, 0
      %590 = vrot.lane.b32.xlu0 %v360, 4
      %v591 = vpop.permute.xlu0 %590
      %592 = vrot.lane.b32.xlu0 %v361, 4
      %v593 = vpop.permute.xlu0 %592
      %594 = vrot.lane.b32.xlu0 %v362, 4
      %v595 = vpop.permute.xlu0 %594
      %596 = vrot.lane.b32.xlu0 %v363, 4
      %v597 = vpop.permute.xlu0 %596
      %598 = vrot.lane.b32.xlu0 %v364, 4
      %v599 = vpop.permute.xlu0 %598
      %600 = vrot.lane.b32.xlu0 %v365, 4
      %v601 = vpop.permute.xlu0 %600
      %602 = vrot.lane.b32.xlu0 %v366, 4
      %v603 = vpop.permute.xlu0 %602
      %604 = vrot.lane.b32.xlu0 %v367, 4
      %v605 = vpop.permute.xlu0 %604
      %606 = vrot.lane.b32.xlu0 %v368, 4
      %v607 = vpop.permute.xlu0 %606
      %608 = vrot.lane.b32.xlu0 %v369, 4
      %v609 = vpop.permute.xlu0 %608
      %610 = vrot.lane.b32.xlu0 %v370, 4
      %v611 = vpop.permute.xlu0 %610
      %612 = vrot.lane.b32.xlu0 %v371, 4
      %v613 = vpop.permute.xlu0 %612
      %614 = vrot.lane.b32.xlu0 %v372, 4
      %v615 = vpop.permute.xlu0 %614
      %616 = vrot.lane.b32.xlu0 %v373, 4
      %v617 = vpop.permute.xlu0 %616
      %618 = vrot.lane.b32.xlu0 %v374, 4
      %v619 = vpop.permute.xlu0 %618
      %620 = vrot.lane.b32.xlu0 %v375, 4
      %v621 = vpop.permute.xlu0 %620
      %638 = vrot.lane.b32.xlu0 %v574, 8
      %v639 = vpop.permute.xlu0 %638
      %640 = vrot.lane.b32.xlu0 %v575, 8
      %v641 = vpop.permute.xlu0 %640
      %642 = vrot.lane.b32.xlu0 %v576, 8
      %v643 = vpop.permute.xlu0 %642
      %644 = vrot.lane.b32.xlu0 %v577, 8
      %v645 = vpop.permute.xlu0 %644
      %646 = vrot.lane.b32.xlu0 %v578, 8
      %v647 = vpop.permute.xlu0 %646
      %648 = vrot.lane.b32.xlu0 %v579, 8
      %v649 = vpop.permute.xlu0 %648
      %650 = vrot.lane.b32.xlu0 %v580, 8
      %v651 = vpop.permute.xlu0 %650
      %652 = vrot.lane.b32.xlu0 %v581, 8
      %v653 = vpop.permute.xlu0 %652
      %654 = vrot.lane.b32.xlu0 %v582, 8
      %v655 = vpop.permute.xlu0 %654
      %656 = vrot.lane.b32.xlu0 %v583, 8
      %v657 = vpop.permute.xlu0 %656
      %658 = vrot.lane.b32.xlu0 %v584, 8
      %v659 = vpop.permute.xlu0 %658
      %660 = vrot.lane.b32.xlu0 %v585, 8
      %v661 = vpop.permute.xlu0 %660
      %662 = vrot.lane.b32.xlu0 %v586, 8
      %v663 = vpop.permute.xlu0 %662
      %664 = vrot.lane.b32.xlu0 %v587, 8
      %v665 = vpop.permute.xlu0 %664
      %666 = vrot.lane.b32.xlu0 %v588, 8
      %v667 = vpop.permute.xlu0 %666
      %668 = vrot.lane.b32.xlu0 %v589, 8
      %v669 = vpop.permute.xlu0 %668
      %vm670 = vcmask 31744
      %v673 = vsel %vm670, %v507, %v591
      %v676 = vsel %vm670, %v508, %v593
      %v679 = vsel %vm670, %v509, %v595
      %v682 = vsel %vm670, %v510, %v597
      %v685 = vsel %vm670, %v511, %v599
      %v688 = vsel %vm670, %v512, %v601
      %v691 = vsel %vm670, %v513, %v603
      %v694 = vsel %vm670, %v514, %v605
      %v697 = vsel %vm670, %v515, %v607
      %v700 = vsel %vm670, %v516, %v609
      %v703 = vsel %vm670, %v517, %v611
      %v706 = vsel %vm670, %v518, %v613
      %v709 = vsel %vm670, %v519, %v615
      %v712 = vsel %vm670, %v520, %v617
      %v715 = vsel %vm670, %v521, %v619
      %v718 = vsel %vm670, %v522, %v621
      %vm719 = vcmask 64512
      %v721 = vsel %vm719, %v673, %v639
      %v723 = vsel %vm719, %v676, %v641
      %v725 = vsel %vm719, %v679, %v643
      %v727 = vsel %vm719, %v682, %v645
      %v729 = vsel %vm719, %v685, %v647
      %v731 = vsel %vm719, %v688, %v649
      %v733 = vsel %vm719, %v691, %v651
      %v735 = vsel %vm719, %v694, %v653
      %v737 = vsel %vm719, %v697, %v655
      %v739 = vsel %vm719, %v700, %v657
      %v741 = vsel %vm719, %v703, %v659
      %v743 = vsel %vm719, %v706, %v661
      %v745 = vsel %vm719, %v709, %v663
      %v747 = vsel %vm719, %v712, %v665
      %v749 = vsel %vm719, %v715, %v667
      %v751 = vsel %vm719, %v718, %v669
      %s752 = scalar_lea.vmem %s248, 8
      %v753 = vld [vmem:[%s752] sm:$0xf]
      %v754 = vld [vmem:[%s752 + $0x4] sm:$0x3]
      %v757 = vunpack.c.l.b16 %v753
      %v758 = vunpack.c.l.b16 %v754
      %v759 = vpack.c.b16 %v758, %v757
      %vm760 = vcmask 97280
      %v761 = vsel %vm760, %v721, 0
      %v763 = vsel %vm760, %v723, 0
      %v765 = vsel %vm760, %v725, 0
      %v767 = vsel %vm760, %v727, 0
      %v769 = vsel %vm760, %v729, 0
      %v771 = vsel %vm760, %v731, 0
      %v773 = vsel %vm760, %v733, 0
      %v775 = vsel %vm760, %v735, 0
      %v777 = vsel %vm760, %v737, 0
      %v779 = vsel %vm760, %v739, 0
      %v781 = vsel %vm760, %v741, 0
      %v783 = vsel %vm760, %v743, 0
      %v785 = vsel %vm760, %v745, 0
      %v787 = vsel %vm760, %v747, 0
      %v789 = vsel %vm760, %v749, 0
      %v791 = vsel %vm760, %v751, 0
      %vm793 = vcmask 1045504
      %v795 = vsel %vm793, %v759, 0
      %797 = vmatprep.subr.bf16.mxu0 0
      %798 = vmatpush1.bf16.msra.mxu0 %v795
      %799 = vmatprep.subr.bf16.mxu0 0
      %800 = vmatpush1.bf16.msra.mxu0 0
      %801 = vmatprep.subr.bf16.mxu0 0
      %802 = vmatpush1.bf16.msra.mxu0 0
      %803 = vmatprep.subr.bf16.mxu0 0
      %804 = vmatpush1.bf16.msra.mxu0 0
      %805 = vmatprep.subr.bf16.mxu0 0
      %806 = vmatpush1.bf16.msra.mxu0 0
      %807 = vmatprep.subr.bf16.mxu0 0
      %808 = vmatpush1.bf16.msra.mxu0 0
      %809 = vmatprep.subr.bf16.mxu0 0
      %810 = vmatpush1.bf16.msra.mxu0 0
      %811 = vmatprep.subr.bf16.mxu0 0
      %812 = vmatpush1.bf16.msra.mxu0 0
      %813 = vmatprep.subr.bf16.mxu0 0
      %814 = vmatpush1.bf16.msra.mxu0 0
      %815 = vmatprep.subr.bf16.mxu0 0
      %816 = vmatpush1.bf16.msra.mxu0 0
      %817 = vmatprep.subr.bf16.mxu0 0
      %818 = vmatpush1.bf16.msra.mxu0 0
      %819 = vmatprep.subr.bf16.mxu0 0
      %820 = vmatpush1.bf16.msra.mxu0 0
      %821 = vmatprep.subr.bf16.mxu0 0
      %822 = vmatpush1.bf16.msra.mxu0 0
      %823 = vmatprep.subr.bf16.mxu0 0
      %824 = vmatpush1.bf16.msra.mxu0 0
      %825 = vmatprep.subr.bf16.mxu0 0
      %826 = vmatpush1.bf16.msra.mxu0 0
      %827 = vmatprep.subr.bf16.mxu0 0
      %828 = vmatpush1.bf16.msra.mxu0 0
      %829 = vmatprep.mubr.bf16.mxu0 0
      %830 = vmatmul.mubr.bf16.gmra.mrb[0].mxu0 %v761
      %v831 = vpop.f32.mrb[0].mxu0
      %v832 = vadd.f32 0.0, %v831
      %v833 = vpop.f32.mrb[0].mxu0
      %v834 = vpop.f32.mrb[0].mxu0
      %v835 = vadd.f32 0.0, %v834
      %v836 = vpop.f32.mrb[0].mxu0
      %837 = vmatprep.mubr.bf16.mxu0 0
      %838 = vmatmul.mubr.bf16.gmra.mrb[0].mxu0 %v763
      %v839 = vpop.f32.mrb[0].mxu0
      %v840 = vadd.f32 0.0, %v839
      %v841 = vpop.f32.mrb[0].mxu0
      %v842 = vpop.f32.mrb[0].mxu0
      %v843 = vadd.f32 0.0, %v842
      %v844 = vpop.f32.mrb[0].mxu0
      %845 = vmatprep.mubr.bf16.mxu0 0
      %846 = vmatmul.mubr.bf16.gmra.mrb[0].mxu0 %v765
      %v847 = vpop.f32.mrb[0].mxu0
      %v848 = vadd.f32 0.0, %v847
      %v849 = vpop.f32.mrb[0].mxu0
      %v850 = vpop.f32.mrb[0].mxu0
      %v851 = vadd.f32 0.0, %v850
      %v852 = vpop.f32.mrb[0].mxu0
      %853 = vmatprep.mubr.bf16.mxu0 0
      %854 = vmatmul.mubr.bf16.gmra.mrb[0].mxu0 %v767
      %v855 = vpop.f32.mrb[0].mxu0
      %v856 = vadd.f32 0.0, %v855
      %v857 = vpop.f32.mrb[0].mxu0
      %v858 = vpop.f32.mrb[0].mxu0
      %v859 = vadd.f32 0.0, %v858
      %v860 = vpop.f32.mrb[0].mxu0
      %861 = vmatprep.mubr.bf16.mxu0 0
      %862 = vmatmul.mubr.bf16.gmra.mrb[0].mxu0 %v769
      %v863 = vpop.f32.mrb[0].mxu0
      %v864 = vadd.f32 0.0, %v863
      %v865 = vpop.f32.mrb[0].mxu0
      %v866 = vpop.f32.mrb[0].mxu0
      %v867 = vadd.f32 0.0, %v866
      %v868 = vpop.f32.mrb[0].mxu0
      %869 = vmatprep.mubr.bf16.mxu0 0
      %870 = vmatmul.mubr.bf16.gmra.mrb[0].mxu0 %v771
      %v871 = vpop.f32.mrb[0].mxu0
      %v872 = vadd.f32 0.0, %v871
      %v873 = vpop.f32.mrb[0].mxu0
      %v874 = vpop.f32.mrb[0].mxu0
      %v875 = vadd.f32 0.0, %v874
      %v876 = vpop.f32.mrb[0].mxu0
      %877 = vmatprep.mubr.bf16.mxu0 0
      %878 = vmatmul.mubr.bf16.gmra.mrb[0].mxu0 %v773
      %v879 = vpop.f32.mrb[0].mxu0
      %v880 = vadd.f32 0.0, %v879
      %v881 = vpop.f32.mrb[0].mxu0
      %v882 = vpop.f32.mrb[0].mxu0
      %v883 = vadd.f32 0.0, %v882
      %v884 = vpop.f32.mrb[0].mxu0
      %885 = vmatprep.mubr.bf16.mxu0 0
      %886 = vmatmul.mubr.bf16.gmra.mrb[0].mxu0 %v775
      %v887 = vpop.f32.mrb[0].mxu0
      %v888 = vadd.f32 0.0, %v887
      %v889 = vpop.f32.mrb[0].mxu0
      %v890 = vpop.f32.mrb[0].mxu0
      %v891 = vadd.f32 0.0, %v890
      %v892 = vpop.f32.mrb[0].mxu0
      %893 = vmatprep.mubr.bf16.mxu0 0
      %894 = vmatmul.mubr.bf16.gmra.mrb[0].mxu0 %v777
      %v895 = vpop.f32.mrb[0].mxu0
      %v896 = vadd.f32 0.0, %v895
      %v897 = vpop.f32.mrb[0].mxu0
      %v898 = vpop.f32.mrb[0].mxu0
      %v899 = vadd.f32 0.0, %v898
      %v900 = vpop.f32.mrb[0].mxu0
      %901 = vmatprep.mubr.bf16.mxu0 0
      %902 = vmatmul.mubr.bf16.gmra.mrb[0].mxu0 %v779
      %v903 = vpop.f32.mrb[0].mxu0
      %v904 = vadd.f32 0.0, %v903
      %v905 = vpop.f32.mrb[0].mxu0
      %v906 = vpop.f32.mrb[0].mxu0
      %v907 = vadd.f32 0.0, %v906
      %v908 = vpop.f32.mrb[0].mxu0
      %909 = vmatprep.mubr.bf16.mxu0 0
      %910 = vmatmul.mubr.bf16.gmra.mrb[0].mxu0 %v781
      %v911 = vpop.f32.mrb[0].mxu0
      %v912 = vadd.f32 0.0, %v911
      %v913 = vpop.f32.mrb[0].mxu0
      %v914 = vpop.f32.mrb[0].mxu0
      %v915 = vadd.f32 0.0, %v914
      %v916 = vpop.f32.mrb[0].mxu0
      %917 = vmatprep.mubr.bf16.mxu0 0
      %918 = vmatmul.mubr.bf16.gmra.mrb[0].mxu0 %v783
      %v919 = vpop.f32.mrb[0].mxu0
      %v920 = vadd.f32 0.0, %v919
      %v921 = vpop.f32.mrb[0].mxu0
      %v922 = vpop.f32.mrb[0].mxu0
      %v923 = vadd.f32 0.0, %v922
      %v924 = vpop.f32.mrb[0].mxu0
      %925 = vmatprep.mubr.bf16.mxu0 0
      %926 = vmatmul.mubr.bf16.gmra.mrb[0].mxu0 %v785
      %v927 = vpop.f32.mrb[0].mxu0
      %v928 = vadd.f32 0.0, %v927
      %v929 = vpop.f32.mrb[0].mxu0
      %v930 = vpop.f32.mrb[0].mxu0
      %v931 = vadd.f32 0.0, %v930
      %v932 = vpop.f32.mrb[0].mxu0
      %933 = vmatprep.mubr.bf16.mxu0 0
      %934 = vmatmul.mubr.bf16.gmra.mrb[0].mxu0 %v787
      %v935 = vpop.f32.mrb[0].mxu0
      %v936 = vadd.f32 0.0, %v935
      %v937 = vpop.f32.mrb[0].mxu0
      %v938 = vpop.f32.mrb[0].mxu0
      %v939 = vadd.f32 0.0, %v938
      %v940 = vpop.f32.mrb[0].mxu0
      %941 = vmatprep.mubr.bf16.mxu0 0
      %942 = vmatmul.mubr.bf16.gmra.mrb[0].mxu0 %v789
      %v943 = vpop.f32.mrb[0].mxu0
      %v944 = vadd.f32 0.0, %v943
      %v945 = vpop.f32.mrb[0].mxu0
      %v946 = vpop.f32.mrb[0].mxu0
      %v947 = vadd.f32 0.0, %v946
      %v948 = vpop.f32.mrb[0].mxu0
      %949 = vmatprep.mubr.bf16.mxu0 0
      %950 = vmatmul.mubr.bf16.gmra.mrb[0].mxu0 %v791
      %v951 = vpop.f32.mrb[0].mxu0
      %v952 = vadd.f32 0.0, %v951
      %v953 = vpop.f32.mrb[0].mxu0
      %v954 = vpop.f32.mrb[0].mxu0
      %v955 = vadd.f32 0.0, %v954
      %v956 = vpop.f32.mrb[0].mxu0
      %957 = vdwg.mxu0
      %958 = vst.msk [vmem:[#allocation2] sm:$0xff] %vm670, %v832
      %959 = vst.msk [vmem:[#allocation2 + $0x8] sm:$0xff] %vm670, %v835
      %960 = vst.msk [vmem:[#allocation2 + $0x10] sm:$0xff] %vm670, %v840
      %961 = vst.msk [vmem:[#allocation2 + $0x18] sm:$0xff] %vm670, %v843
      %962 = vst.msk [vmem:[#allocation2 + $0x20] sm:$0xff] %vm670, %v848
      %963 = vst.msk [vmem:[#allocation2 + $0x28] sm:$0xff] %vm670, %v851
      %964 = vst.msk [vmem:[#allocation2 + $0x30] sm:$0xff] %vm670, %v856
      %965 = vst.msk [vmem:[#allocation2 + $0x38] sm:$0xff] %vm670, %v859
      %966 = vst.msk [vmem:[#allocation2 + $0x40] sm:$0xff] %vm670, %v864
      %967 = vst.msk [vmem:[#allocation2 + $0x48] sm:$0xff] %vm670, %v867
      %968 = vst.msk [vmem:[#allocation2 + $0x50] sm:$0xff] %vm670, %v872
      %969 = vst.msk [vmem:[#allocation2 + $0x58] sm:$0xff] %vm670, %v875
      %970 = vst.msk [vmem:[#allocation2 + $0x60] sm:$0xff] %vm670, %v880
      %971 = vst.msk [vmem:[#allocation2 + $0x68] sm:$0xff] %vm670, %v883
      %972 = vst.msk [vmem:[#allocation2 + $0x70] sm:$0xff] %vm670, %v888
      %973 = vst.msk [vmem:[#allocation2 + $0x78] sm:$0xff] %vm670, %v891
      %974 = vst.msk [vmem:[#allocation2 + $0x80] sm:$0xff] %vm670, %v896
      %975 = vst.msk [vmem:[#allocation2 + $0x88] sm:$0xff] %vm670, %v899
      %976 = vst.msk [vmem:[#allocation2 + $0x90] sm:$0xff] %vm670, %v904
      %977 = vst.msk [vmem:[#allocation2 + $0x98] sm:$0xff] %vm670, %v907
      %978 = vst.msk [vmem:[#allocation2 + $0xa0] sm:$0xff] %vm670, %v912
      %979 = vst.msk [vmem:[#allocation2 + $0xa8] sm:$0xff] %vm670, %v915
      %980 = vst.msk [vmem:[#allocation2 + $0xb0] sm:$0xff] %vm670, %v920
      %981 = vst.msk [vmem:[#allocation2 + $0xb8] sm:$0xff] %vm670, %v923
      %982 = vst.msk [vmem:[#allocation2 + $0xc0] sm:$0xff] %vm670, %v928
      %983 = vst.msk [vmem:[#allocation2 + $0xc8] sm:$0xff] %vm670, %v931
      %984 = vst.msk [vmem:[#allocation2 + $0xd0] sm:$0xff] %vm670, %v936
      %985 = vst.msk [vmem:[#allocation2 + $0xd8] sm:$0xff] %vm670, %v939
      %986 = vst.msk [vmem:[#allocation2 + $0xe0] sm:$0xff] %vm670, %v944
      %987 = vst.msk [vmem:[#allocation2 + $0xe8] sm:$0xff] %vm670, %v947
      %988 = vst.msk [vmem:[#allocation2 + $0xf0] sm:$0xff] %vm670, %v952
      %989 = vst.msk [vmem:[#allocation2 + $0xf8] sm:$0xff] %vm670, %v955
      %v990 = vld [vmem:[#allocation2 + $0x10] sm:$0xff]
      %v991 = vld [vmem:[#allocation2 + $0x18] sm:$0xff]
      %v992 = vld [vmem:[#allocation2 + $0x20] sm:$0xff]
      %v993 = vld [vmem:[#allocation2 + $0x28] sm:$0xff]
      %v994 = vld [vmem:[#allocation2 + $0x30] sm:$0xff]
      %v995 = vld [vmem:[#allocation2 + $0x38] sm:$0xff]
      %v996 = vld [vmem:[#allocation2 + $0x40] sm:$0xff]
      %v997 = vld [vmem:[#allocation2 + $0x48] sm:$0xff]
      %v998 = vld [vmem:[#allocation2 + $0x50] sm:$0xff]
      %v999 = vld [vmem:[#allocation2 + $0x58] sm:$0xff]
      %v1000 = vld [vmem:[#allocation2 + $0x60] sm:$0xff]
      %v1001 = vld [vmem:[#allocation2 + $0x68] sm:$0xff]
      %v1002 = vld [vmem:[#allocation2 + $0x70] sm:$0xff]
      %v1003 = vld [vmem:[#allocation2 + $0x78] sm:$0xff]
      %v1004 = vld [vmem:[#allocation2 + $0x80] sm:$0xff]
      %v1005 = vld [vmem:[#allocation2 + $0x88] sm:$0xff]
      %v1006 = vld [vmem:[#allocation2 + $0x90] sm:$0xff]
      %v1007 = vld [vmem:[#allocation2 + $0x98] sm:$0xff]
      %v1008 = vld [vmem:[#allocation2 + $0xa0] sm:$0xff]
      %v1009 = vld [vmem:[#allocation2 + $0xa8] sm:$0xff]
      %v1010 = vld [vmem:[#allocation2 + $0xb0] sm:$0xff]
      %v1011 = vld [vmem:[#allocation2 + $0xb8] sm:$0xff]
      %v1012 = vld [vmem:[#allocation2 + $0xc0] sm:$0xff]
      %v1013 = vld [vmem:[#allocation2 + $0xc8] sm:$0xff]
      %v1014 = vld [vmem:[#allocation2 + $0xd0] sm:$0xff]
      %v1015 = vld [vmem:[#allocation2 + $0xd8] sm:$0xff]
      %v1016 = vld [vmem:[#allocation2 + $0xe0] sm:$0xff]
      %v1017 = vld [vmem:[#allocation2 + $0xe8] sm:$0xff]
      %v1018 = vld [vmem:[#allocation2 + $0xf0] sm:$0xff]
      %v1019 = vld [vmem:[#allocation2 + $0xf8] sm:$0xff]
      %v1020 = vld [vmem:[%s248] sm:$0xf]
      %v1021 = vld [vmem:[%s248 + $0x4] sm:$0x3]
      %v1024 = vunpack.c.l.b16 %v1020
      %v1025 = vunpack.c.l.b16 %v1021
      %v1026 = vpack.c.b16 %v1025, %v1024
      %v1028 = vsel %vm793, %v1026, 0
      %1030 = vmatprep.subr.bf16.mxu0 0
      %1031 = vmatpush1.bf16.msra.mxu0 %v1028
      %1032 = vmatprep.subr.bf16.mxu0 0
      %1033 = vmatpush1.bf16.msra.mxu0 0
      %1034 = vmatprep.subr.bf16.mxu0 0
      %1035 = vmatpush1.bf16.msra.mxu0 0
      %1036 = vmatprep.subr.bf16.mxu0 0
      %1037 = vmatpush1.bf16.msra.mxu0 0
      %1038 = vmatprep.subr.bf16.mxu0 0
      %1039 = vmatpush1.bf16.msra.mxu0 0
      %1040 = vmatprep.subr.bf16.mxu0 0
      %1041 = vmatpush1.bf16.msra.mxu0 0
      %1042 = vmatprep.subr.bf16.mxu0 0
      %1043 = vmatpush1.bf16.msra.mxu0 0
      %1044 = vmatprep.subr.bf16.mxu0 0
      %1045 = vmatpush1.bf16.msra.mxu0 0
      %1046 = vmatprep.subr.bf16.mxu0 0
      %1047 = vmatpush1.bf16.msra.mxu0 0
      %1048 = vmatprep.subr.bf16.mxu0 0
      %1049 = vmatpush1.bf16.msra.mxu0 0
      %1050 = vmatprep.subr.bf16.mxu0 0
      %1051 = vmatpush1.bf16.msra.mxu0 0
      %1052 = vmatprep.subr.bf16.mxu0 0
      %1053 = vmatpush1.bf16.msra.mxu0 0
      %1054 = vmatprep.subr.bf16.mxu0 0
      %1055 = vmatpush1.bf16.msra.mxu0 0
      %1056 = vmatprep.subr.bf16.mxu0 0
      %1057 = vmatpush1.bf16.msra.mxu0 0
      %1058 = vmatprep.subr.bf16.mxu0 0
      %1059 = vmatpush1.bf16.msra.mxu0 0
      %1060 = vmatprep.subr.bf16.mxu0 0
      %1061 = vmatpush1.bf16.msra.mxu0 0
      %1062 = vmatprep.mubr.bf16.mxu0 0
      %1063 = vmatmul.mubr.bf16.gmra.mrb[0].mxu0 %v761
      %v1064 = vpop.f32.mrb[0].mxu0
      %v1065 = vadd.f32 0.0, %v1064
      %v1066 = vpop.f32.mrb[0].mxu0
      %v1067 = vpop.f32.mrb[0].mxu0
      %v1068 = vadd.f32 0.0, %v1067
      %v1069 = vpop.f32.mrb[0].mxu0
      %1070 = vmatprep.mubr.bf16.mxu0 0
      %1071 = vmatmul.mubr.bf16.gmra.mrb[0].mxu0 %v763
      %v1072 = vpop.f32.mrb[0].mxu0
      %v1073 = vadd.f32 0.0, %v1072
      %v1074 = vpop.f32.mrb[0].mxu0
      %v1075 = vpop.f32.mrb[0].mxu0
      %v1076 = vadd.f32 0.0, %v1075
      %v1077 = vpop.f32.mrb[0].mxu0
      %1078 = vmatprep.mubr.bf16.mxu0 0
      %1079 = vmatmul.mubr.bf16.gmra.mrb[0].mxu0 %v765
      %v1080 = vpop.f32.mrb[0].mxu0
      %v1081 = vadd.f32 0.0, %v1080
      %v1082 = vpop.f32.mrb[0].mxu0
      %v1083 = vpop.f32.mrb[0].mxu0
      %v1084 = vadd.f32 0.0, %v1083
      %v1085 = vpop.f32.mrb[0].mxu0
      %1086 = vmatprep.mubr.bf16.mxu0 0
      %1087 = vmatmul.mubr.bf16.gmra.mrb[0].mxu0 %v767
      %v1088 = vpop.f32.mrb[0].mxu0
      %v1089 = vadd.f32 0.0, %v1088
      %v1090 = vpop.f32.mrb[0].mxu0
      %v1091 = vpop.f32.mrb[0].mxu0
      %v1092 = vadd.f32 0.0, %v1091
      %v1093 = vpop.f32.mrb[0].mxu0
      %1094 = vmatprep.mubr.bf16.mxu0 0
      %1095 = vmatmul.mubr.bf16.gmra.mrb[0].mxu0 %v769
      %v1096 = vpop.f32.mrb[0].mxu0
      %v1097 = vadd.f32 0.0, %v1096
      %v1098 = vpop.f32.mrb[0].mxu0
      %v1099 = vpop.f32.mrb[0].mxu0
      %v1100 = vadd.f32 0.0, %v1099
      %v1101 = vpop.f32.mrb[0].mxu0
      %1102 = vmatprep.mubr.bf16.mxu0 0
      %1103 = vmatmul.mubr.bf16.gmra.mrb[0].mxu0 %v771
      %v1104 = vpop.f32.mrb[0].mxu0
      %v1105 = vadd.f32 0.0, %v1104
      %v1106 = vpop.f32.mrb[0].mxu0
      %v1107 = vpop.f32.mrb[0].mxu0
      %v1108 = vadd.f32 0.0, %v1107
      %v1109 = vpop.f32.mrb[0].mxu0
      %1110 = vmatprep.mubr.bf16.mxu0 0
      %1111 = vmatmul.mubr.bf16.gmra.mrb[0].mxu0 %v773
      %v1112 = vpop.f32.mrb[0].mxu0
      %v1113 = vadd.f32 0.0, %v1112
      %v1114 = vpop.f32.mrb[0].mxu0
      %v1115 = vpop.f32.mrb[0].mxu0
      %v1116 = vadd.f32 0.0, %v1115
      %v1117 = vpop.f32.mrb[0].mxu0
      %1118 = vmatprep.mubr.bf16.mxu0 0
      %1119 = vmatmul.mubr.bf16.gmra.mrb[0].mxu0 %v775
      %v1120 = vpop.f32.mrb[0].mxu0
      %v1121 = vadd.f32 0.0, %v1120
      %v1122 = vpop.f32.mrb[0].mxu0
      %v1123 = vpop.f32.mrb[0].mxu0
      %v1124 = vadd.f32 0.0, %v1123
      %v1125 = vpop.f32.mrb[0].mxu0
      %1126 = vmatprep.mubr.bf16.mxu0 0
      %1127 = vmatmul.mubr.bf16.gmra.mrb[0].mxu0 %v777
      %v1128 = vpop.f32.mrb[0].mxu0
      %v1129 = vadd.f32 0.0, %v1128
      %v1130 = vpop.f32.mrb[0].mxu0
      %v1131 = vpop.f32.mrb[0].mxu0
      %v1132 = vadd.f32 0.0, %v1131
      %v1133 = vpop.f32.mrb[0].mxu0
      %1134 = vmatprep.mubr.bf16.mxu0 0
      %1135 = vmatmul.mubr.bf16.gmra.mrb[0].mxu0 %v779
      %v1136 = vpop.f32.mrb[0].mxu0
      %v1137 = vadd.f32 0.0, %v1136
      %v1138 = vpop.f32.mrb[0].mxu0
      %v1139 = vpop.f32.mrb[0].mxu0
      %v1140 = vadd.f32 0.0, %v1139
      %v1141 = vpop.f32.mrb[0].mxu0
      %1142 = vmatprep.mubr.bf16.mxu0 0
      %1143 = vmatmul.mubr.bf16.gmra.mrb[0].mxu0 %v781
      %v1144 = vpop.f32.mrb[0].mxu0
      %v1145 = vadd.f32 0.0, %v1144
      %v1146 = vpop.f32.mrb[0].mxu0
      %v1147 = vpop.f32.mrb[0].mxu0
      %v1148 = vadd.f32 0.0, %v1147
      %v1149 = vpop.f32.mrb[0].mxu0
      %1150 = vmatprep.mubr.bf16.mxu0 0
      %1151 = vmatmul.mubr.bf16.gmra.mrb[0].mxu0 %v783
      %v1152 = vpop.f32.mrb[0].mxu0
      %v1153 = vadd.f32 0.0, %v1152
      %v1154 = vpop.f32.mrb[0].mxu0
      %v1155 = vpop.f32.mrb[0].mxu0
      %v1156 = vadd.f32 0.0, %v1155
      %v1157 = vpop.f32.mrb[0].mxu0
      %1158 = vmatprep.mubr.bf16.mxu0 0
      %1159 = vmatmul.mubr.bf16.gmra.mrb[0].mxu0 %v785
      %v1160 = vpop.f32.mrb[0].mxu0
      %v1161 = vadd.f32 0.0, %v1160
      %v1162 = vpop.f32.mrb[0].mxu0
      %v1163 = vpop.f32.mrb[0].mxu0
      %v1164 = vadd.f32 0.0, %v1163
      %v1165 = vpop.f32.mrb[0].mxu0
      %1166 = vmatprep.mubr.bf16.mxu0 0
      %1167 = vmatmul.mubr.bf16.gmra.mrb[0].mxu0 %v787
      %v1168 = vpop.f32.mrb[0].mxu0
      %v1169 = vadd.f32 0.0, %v1168
      %v1170 = vpop.f32.mrb[0].mxu0
      %v1171 = vpop.f32.mrb[0].mxu0
      %v1172 = vadd.f32 0.0, %v1171
      %v1173 = vpop.f32.mrb[0].mxu0
      %1174 = vmatprep.mubr.bf16.mxu0 0
      %1175 = vmatmul.mubr.bf16.gmra.mrb[0].mxu0 %v789
      %v1176 = vpop.f32.mrb[0].mxu0
      %v1177 = vadd.f32 0.0, %v1176
      %v1178 = vpop.f32.mrb[0].mxu0
      %v1179 = vpop.f32.mrb[0].mxu0
      %v1180 = vadd.f32 0.0, %v1179
      %v1181 = vpop.f32.mrb[0].mxu0
      %1182 = vdwg.mxu0
      %v1183 = vadd.f32 %v990, %v1065
      %v1184 = vadd.f32 %v991, %v1068
      %v1185 = vadd.f32 %v992, %v1073
      %v1186 = vadd.f32 %v993, %v1076
      %v1187 = vadd.f32 %v994, %v1081
      %v1188 = vadd.f32 %v995, %v1084
      %v1189 = vadd.f32 %v996, %v1089
      %v1190 = vadd.f32 %v997, %v1092
      %v1191 = vadd.f32 %v998, %v1097
      %v1192 = vadd.f32 %v999, %v1100
      %v1193 = vadd.f32 %v1000, %v1105
      %v1194 = vadd.f32 %v1001, %v1108
      %v1195 = vadd.f32 %v1002, %v1113
      %v1196 = vadd.f32 %v1003, %v1116
      %v1197 = vadd.f32 %v1004, %v1121
      %v1198 = vadd.f32 %v1005, %v1124
      %v1199 = vadd.f32 %v1006, %v1129
      %v1200 = vadd.f32 %v1007, %v1132
      %v1201 = vadd.f32 %v1008, %v1137
      %v1202 = vadd.f32 %v1009, %v1140
      %v1203 = vadd.f32 %v1010, %v1145
      %v1204 = vadd.f32 %v1011, %v1148
      %v1205 = vadd.f32 %v1012, %v1153
      %v1206 = vadd.f32 %v1013, %v1156
      %v1207 = vadd.f32 %v1014, %v1161
      %v1208 = vadd.f32 %v1015, %v1164
      %v1209 = vadd.f32 %v1016, %v1169
      %v1210 = vadd.f32 %v1017, %v1172
      %v1211 = vadd.f32 %v1018, %v1177
      %v1212 = vadd.f32 %v1019, %v1180
      %1213 = vst.msk [vmem:[#allocation2 + $0x10] sm:$0xff] %vm670, %v1183
      %1214 = vst.msk [vmem:[#allocation2 + $0x18] sm:$0xff] %vm670, %v1184
      %1215 = vst.msk [vmem:[#allocation2 + $0x20] sm:$0xff] %vm670, %v1185
      %1216 = vst.msk [vmem:[#allocation2 + $0x28] sm:$0xff] %vm670, %v1186
      %1217 = vst.msk [vmem:[#allocation2 + $0x30] sm:$0xff] %vm670, %v1187
      %1218 = vst.msk [vmem:[#allocation2 + $0x38] sm:$0xff] %vm670, %v1188
      %1219 = vst.msk [vmem:[#allocation2 + $0x40] sm:$0xff] %vm670, %v1189
      %1220 = vst.msk [vmem:[#allocation2 + $0x48] sm:$0xff] %vm670, %v1190
      %1221 = vst.msk [vmem:[#allocation2 + $0x50] sm:$0xff] %vm670, %v1191
      %1222 = vst.msk [vmem:[#allocation2 + $0x58] sm:$0xff] %vm670, %v1192
      %1223 = vst.msk [vmem:[#allocation2 + $0x60] sm:$0xff] %vm670, %v1193
      %1224 = vst.msk [vmem:[#allocation2 + $0x68] sm:$0xff] %vm670, %v1194
      %1225 = vst.msk [vmem:[#allocation2 + $0x70] sm:$0xff] %vm670, %v1195
      %1226 = vst.msk [vmem:[#allocation2 + $0x78] sm:$0xff] %vm670, %v1196
      %1227 = vst.msk [vmem:[#allocation2 + $0x80] sm:$0xff] %vm670, %v1197
      %1228 = vst.msk [vmem:[#allocation2 + $0x88] sm:$0xff] %vm670, %v1198
      %1229 = vst.msk [vmem:[#allocation2 + $0x90] sm:$0xff] %vm670, %v1199
      %1230 = vst.msk [vmem:[#allocation2 + $0x98] sm:$0xff] %vm670, %v1200
      %1231 = vst.msk [vmem:[#allocation2 + $0xa0] sm:$0xff] %vm670, %v1201
      %1232 = vst.msk [vmem:[#allocation2 + $0xa8] sm:$0xff] %vm670, %v1202
      %1233 = vst.msk [vmem:[#allocation2 + $0xb0] sm:$0xff] %vm670, %v1203
      %1234 = vst.msk [vmem:[#allocation2 + $0xb8] sm:$0xff] %vm670, %v1204
      %1235 = vst.msk [vmem:[#allocation2 + $0xc0] sm:$0xff] %vm670, %v1205
      %1236 = vst.msk [vmem:[#allocation2 + $0xc8] sm:$0xff] %vm670, %v1206
      %1237 = vst.msk [vmem:[#allocation2 + $0xd0] sm:$0xff] %vm670, %v1207
      %1238 = vst.msk [vmem:[#allocation2 + $0xd8] sm:$0xff] %vm670, %v1208
      %1239 = vst.msk [vmem:[#allocation2 + $0xe0] sm:$0xff] %vm670, %v1209
      %1240 = vst.msk [vmem:[#allocation2 + $0xe8] sm:$0xff] %vm670, %v1210
      %1241 = vst.msk [vmem:[#allocation2 + $0xf0] sm:$0xff] %vm670, %v1211
      %1242 = vst.msk [vmem:[#allocation2 + $0xf8] sm:$0xff] %vm670, %v1212
      %v1243 = vld [vmem:[#allocation2] sm:$0xff]
      %v1244 = vld [vmem:[#allocation2 + $0x8] sm:$0xff]
      %v1245 = vld [vmem:[#allocation2 + $0x10] sm:$0xff]
      %v1246 = vld [vmem:[#allocation2 + $0x18] sm:$0xff]
      %v1247 = vld [vmem:[#allocation2 + $0x20] sm:$0xff]
      %v1248 = vld [vmem:[#allocation2 + $0x28] sm:$0xff]
      %v1249 = vld [vmem:[#allocation2 + $0x30] sm:$0xff]
      %v1250 = vld [vmem:[#allocation2 + $0x38] sm:$0xff]
      %v1251 = vld [vmem:[#allocation2 + $0x40] sm:$0xff]
      %v1252 = vld [vmem:[#allocation2 + $0x48] sm:$0xff]
      %v1253 = vld [vmem:[#allocation2 + $0x50] sm:$0xff]
      %v1254 = vld [vmem:[#allocation2 + $0x58] sm:$0xff]
      %v1255 = vld [vmem:[#allocation2 + $0x60] sm:$0xff]
      %v1256 = vld [vmem:[#allocation2 + $0x68] sm:$0xff]
      %v1257 = vld [vmem:[#allocation2 + $0x70] sm:$0xff]
      %v1258 = vld [vmem:[#allocation2 + $0x78] sm:$0xff]
      %v1259 = vld [vmem:[#allocation2 + $0x80] sm:$0xff]
      %v1260 = vld [vmem:[#allocation2 + $0x88] sm:$0xff]
      %v1261 = vld [vmem:[#allocation2 + $0x90] sm:$0xff]
      %v1262 = vld [vmem:[#allocation2 + $0x98] sm:$0xff]
      %v1263 = vld [vmem:[#allocation2 + $0xa0] sm:$0xff]
      %v1264 = vld [vmem:[#allocation2 + $0xa8] sm:$0xff]
      %v1265 = vld [vmem:[#allocation2 + $0xb0] sm:$0xff]
      %v1266 = vld [vmem:[#allocation2 + $0xb8] sm:$0xff]
      %v1267 = vld [vmem:[#allocation2 + $0xc0] sm:$0xff]
      %v1268 = vld [vmem:[#allocation2 + $0xc8] sm:$0xff]
      %v1269 = vld [vmem:[#allocation2 + $0xd0] sm:$0xff]
      %v1270 = vld [vmem:[#allocation2 + $0xd8] sm:$0xff]
      %v1271 = vld [vmem:[#allocation2 + $0xe0] sm:$0xff]
      %v1272 = vld [vmem:[#allocation2 + $0xe8] sm:$0xff]
      %s1273 = scalar_lea.vmem %s248, 16
      %v1274 = vld [vmem:[%s1273] sm:$0xf]
      %v1275 = vld [vmem:[%s1273 + $0x4] sm:$0x3]
      %v1278 = vunpack.c.l.b16 %v1274
      %v1279 = vunpack.c.l.b16 %v1275
      %v1280 = vpack.c.b16 %v1279, %v1278
      %v1282 = vsel %vm793, %v1280, 0
      %1284 = vmatprep.subr.bf16.mxu0 0
      %1285 = vmatpush1.bf16.msra.mxu0 %v1282
      %1286 = vmatprep.subr.bf16.mxu0 0
      %1287 = vmatpush1.bf16.msra.mxu0 0
      %1288 = vmatprep.subr.bf16.mxu0 0
      %1289 = vmatpush1.bf16.msra.mxu0 0
      %1290 = vmatprep.subr.bf16.mxu0 0
      %1291 = vmatpush1.bf16.msra.mxu0 0
      %1292 = vmatprep.subr.bf16.mxu0 0
      %1293 = vmatpush1.bf16.msra.mxu0 0
      %1294 = vmatprep.subr.bf16.mxu0 0
      %1295 = vmatpush1.bf16.msra.mxu0 0
      %1296 = vmatprep.subr.bf16.mxu0 0
      %1297 = vmatpush1.bf16.msra.mxu0 0
      %1298 = vmatprep.subr.bf16.mxu0 0
      %1299 = vmatpush1.bf16.msra.mxu0 0
      %1300 = vmatprep.subr.bf16.mxu0 0
      %1301 = vmatpush1.bf16.msra.mxu0 0
      %1302 = vmatprep.subr.bf16.mxu0 0
      %1303 = vmatpush1.bf16.msra.mxu0 0
      %1304 = vmatprep.subr.bf16.mxu0 0
      %1305 = vmatpush1.bf16.msra.mxu0 0
      %1306 = vmatprep.subr.bf16.mxu0 0
      %1307 = vmatpush1.bf16.msra.mxu0 0
      %1308 = vmatprep.subr.bf16.mxu0 0
      %1309 = vmatpush1.bf16.msra.mxu0 0
      %1310 = vmatprep.subr.bf16.mxu0 0
      %1311 = vmatpush1.bf16.msra.mxu0 0
      %1312 = vmatprep.subr.bf16.mxu0 0
      %1313 = vmatpush1.bf16.msra.mxu0 0
      %1314 = vmatprep.subr.bf16.mxu0 0
      %1315 = vmatpush1.bf16.msra.mxu0 0
      %1316 = vmatprep.mubr.bf16.mxu0 0
      %1317 = vmatmul.mubr.bf16.gmra.mrb[0].mxu0 %v763
      %v1318 = vpop.f32.mrb[0].mxu0
      %v1319 = vadd.f32 0.0, %v1318
      %v1320 = vpop.f32.mrb[0].mxu0
      %v1321 = vpop.f32.mrb[0].mxu0
      %v1322 = vadd.f32 0.0, %v1321
      %v1323 = vpop.f32.mrb[0].mxu0
      %1324 = vmatprep.mubr.bf16.mxu0 0
      %1325 = vmatmul.mubr.bf16.gmra.mrb[0].mxu0 %v765
      %v1326 = vpop.f32.mrb[0].mxu0
      %v1327 = vadd.f32 0.0, %v1326
      %v1328 = vpop.f32.mrb[0].mxu0
      %v1329 = vpop.f32.mrb[0].mxu0
      %v1330 = vadd.f32 0.0, %v1329
      %v1331 = vpop.f32.mrb[0].mxu0
      %1332 = vmatprep.mubr.bf16.mxu0 0
      %1333 = vmatmul.mubr.bf16.gmra.mrb[0].mxu0 %v767
      %v1334 = vpop.f32.mrb[0].mxu0
      %v1335 = vadd.f32 0.0, %v1334
      %v1336 = vpop.f32.mrb[0].mxu0
      %v1337 = vpop.f32.mrb[0].mxu0
      %v1338 = vadd.f32 0.0, %v1337
      %v1339 = vpop.f32.mrb[0].mxu0
      %1340 = vmatprep.mubr.bf16.mxu0 0
      %1341 = vmatmul.mubr.bf16.gmra.mrb[0].mxu0 %v769
      %v1342 = vpop.f32.mrb[0].mxu0
      %v1343 = vadd.f32 0.0, %v1342
      %v1344 = vpop.f32.mrb[0].mxu0
      %v1345 = vpop.f32.mrb[0].mxu0
      %v1346 = vadd.f32 0.0, %v1345
      %v1347 = vpop.f32.mrb[0].mxu0
      %1348 = vmatprep.mubr.bf16.mxu0 0
      %1349 = vmatmul.mubr.bf16.gmra.mrb[0].mxu0 %v771
      %v1350 = vpop.f32.mrb[0].mxu0
      %v1351 = vadd.f32 0.0, %v1350
      %v1352 = vpop.f32.mrb[0].mxu0
      %v1353 = vpop.f32.mrb[0].mxu0
      %v1354 = vadd.f32 0.0, %v1353
      %v1355 = vpop.f32.mrb[0].mxu0
      %1356 = vmatprep.mubr.bf16.mxu0 0
      %1357 = vmatmul.mubr.bf16.gmra.mrb[0].mxu0 %v773
      %v1358 = vpop.f32.mrb[0].mxu0
      %v1359 = vadd.f32 0.0, %v1358
      %v1360 = vpop.f32.mrb[0].mxu0
      %v1361 = vpop.f32.mrb[0].mxu0
      %v1362 = vadd.f32 0.0, %v1361
      %v1363 = vpop.f32.mrb[0].mxu0
      %1364 = vmatprep.mubr.bf16.mxu0 0
      %1365 = vmatmul.mubr.bf16.gmra.mrb[0].mxu0 %v775
      %v1366 = vpop.f32.mrb[0].mxu0
      %v1367 = vadd.f32 0.0, %v1366
      %v1368 = vpop.f32.mrb[0].mxu0
      %v1369 = vpop.f32.mrb[0].mxu0
      %v1370 = vadd.f32 0.0, %v1369
      %v1371 = vpop.f32.mrb[0].mxu0
      %1372 = vmatprep.mubr.bf16.mxu0 0
      %1373 = vmatmul.mubr.bf16.gmra.mrb[0].mxu0 %v777
      %v1374 = vpop.f32.mrb[0].mxu0
      %v1375 = vadd.f32 0.0, %v1374
      %v1376 = vpop.f32.mrb[0].mxu0
      %v1377 = vpop.f32.mrb[0].mxu0
      %v1378 = vadd.f32 0.0, %v1377
      %v1379 = vpop.f32.mrb[0].mxu0
      %1380 = vmatprep.mubr.bf16.mxu0 0
      %1381 = vmatmul.mubr.bf16.gmra.mrb[0].mxu0 %v779
      %v1382 = vpop.f32.mrb[0].mxu0
      %v1383 = vadd.f32 0.0, %v1382
      %v1384 = vpop.f32.mrb[0].mxu0
      %v1385 = vpop.f32.mrb[0].mxu0
      %v1386 = vadd.f32 0.0, %v1385
      %v1387 = vpop.f32.mrb[0].mxu0
      %1388 = vmatprep.mubr.bf16.mxu0 0
      %1389 = vmatmul.mubr.bf16.gmra.mrb[0].mxu0 %v781
      %v1390 = vpop.f32.mrb[0].mxu0
      %v1391 = vadd.f32 0.0, %v1390
      %v1392 = vpop.f32.mrb[0].mxu0
      %v1393 = vpop.f32.mrb[0].mxu0
      %v1394 = vadd.f32 0.0, %v1393
      %v1395 = vpop.f32.mrb[0].mxu0
      %1396 = vmatprep.mubr.bf16.mxu0 0
      %1397 = vmatmul.mubr.bf16.gmra.mrb[0].mxu0 %v783
      %v1398 = vpop.f32.mrb[0].mxu0
      %v1399 = vadd.f32 0.0, %v1398
      %v1400 = vpop.f32.mrb[0].mxu0
      %v1401 = vpop.f32.mrb[0].mxu0
      %v1402 = vadd.f32 0.0, %v1401
      %v1403 = vpop.f32.mrb[0].mxu0
      %1404 = vmatprep.mubr.bf16.mxu0 0
      %1405 = vmatmul.mubr.bf16.gmra.mrb[0].mxu0 %v785
      %v1406 = vpop.f32.mrb[0].mxu0
      %v1407 = vadd.f32 0.0, %v1406
      %v1408 = vpop.f32.mrb[0].mxu0
      %v1409 = vpop.f32.mrb[0].mxu0
      %v1410 = vadd.f32 0.0, %v1409
      %v1411 = vpop.f32.mrb[0].mxu0
      %1412 = vmatprep.mubr.bf16.mxu0 0
      %1413 = vmatmul.mubr.bf16.gmra.mrb[0].mxu0 %v787
      %v1414 = vpop.f32.mrb[0].mxu0
      %v1415 = vadd.f32 0.0, %v1414
      %v1416 = vpop.f32.mrb[0].mxu0
      %v1417 = vpop.f32.mrb[0].mxu0
      %v1418 = vadd.f32 0.0, %v1417
      %v1419 = vpop.f32.mrb[0].mxu0
      %1420 = vmatprep.mubr.bf16.mxu0 0
      %1421 = vmatmul.mubr.bf16.gmra.mrb[0].mxu0 %v789
      %v1422 = vpop.f32.mrb[0].mxu0
      %v1423 = vadd.f32 0.0, %v1422
      %v1424 = vpop.f32.mrb[0].mxu0
      %v1425 = vpop.f32.mrb[0].mxu0
      %v1426 = vadd.f32 0.0, %v1425
      %v1427 = vpop.f32.mrb[0].mxu0
      %1428 = vmatprep.mubr.bf16.mxu0 0
      %1429 = vmatmul.mubr.bf16.gmra.mrb[0].mxu0 %v791
      %v1430 = vpop.f32.mrb[0].mxu0
      %v1431 = vadd.f32 0.0, %v1430
      %v1432 = vpop.f32.mrb[0].mxu0
      %v1433 = vpop.f32.mrb[0].mxu0
      %v1434 = vadd.f32 0.0, %v1433
      %v1435 = vpop.f32.mrb[0].mxu0
      %1436 = vdwg.mxu0
      %v1437 = vadd.f32 %v1243, %v1319
      %v1438 = vadd.f32 %v1244, %v1322
      %v1439 = vadd.f32 %v1245, %v1327
      %v1440 = vadd.f32 %v1246, %v1330
      %v1441 = vadd.f32 %v1247, %v1335
      %v1442 = vadd.f32 %v1248, %v1338
      %v1443 = vadd.f32 %v1249, %v1343
      %v1444 = vadd.f32 %v1250, %v1346
      %v1445 = vadd.f32 %v1251, %v1351
      %v1446 = vadd.f32 %v1252, %v1354
      %v1447 = vadd.f32 %v1253, %v1359
      %v1448 = vadd.f32 %v1254, %v1362
      %v1449 = vadd.f32 %v1255, %v1367
      %v1450 = vadd.f32 %v1256, %v1370
      %v1451 = vadd.f32 %v1257, %v1375
      %v1452 = vadd.f32 %v1258, %v1378
      %v1453 = vadd.f32 %v1259, %v1383
      %v1454 = vadd.f32 %v1260, %v1386
      %v1455 = vadd.f32 %v1261, %v1391
      %v1456 = vadd.f32 %v1262, %v1394
      %v1457 = vadd.f32 %v1263, %v1399
      %v1458 = vadd.f32 %v1264, %v1402
      %v1459 = vadd.f32 %v1265, %v1407
      %v1460 = vadd.f32 %v1266, %v1410
      %v1461 = vadd.f32 %v1267, %v1415
      %v1462 = vadd.f32 %v1268, %v1418
      %v1463 = vadd.f32 %v1269, %v1423
      %v1464 = vadd.f32 %v1270, %v1426
      %v1465 = vadd.f32 %v1271, %v1431
      %v1466 = vadd.f32 %v1272, %v1434
      %1467 = vst.msk [vmem:[#allocation2] sm:$0xff] %vm670, %v1437
      %1468 = vst.msk [vmem:[#allocation2 + $0x8] sm:$0xff] %vm670, %v1438
      %1469 = vst.msk [vmem:[#allocation2 + $0x10] sm:$0xff] %vm670, %v1439
      %1470 = vst.msk [vmem:[#allocation2 + $0x18] sm:$0xff] %vm670, %v1440
      %1471 = vst.msk [vmem:[#allocation2 + $0x20] sm:$0xff] %vm670, %v1441
      %1472 = vst.msk [vmem:[#allocation2 + $0x28] sm:$0xff] %vm670, %v1442
      %1473 = vst.msk [vmem:[#allocation2 + $0x30] sm:$0xff] %vm670, %v1443
      %1474 = vst.msk [vmem:[#allocation2 + $0x38] sm:$0xff] %vm670, %v1444
      %1475 = vst.msk [vmem:[#allocation2 + $0x40] sm:$0xff] %vm670, %v1445
      %1476 = vst.msk [vmem:[#allocation2 + $0x48] sm:$0xff] %vm670, %v1446
      %1477 = vst.msk [vmem:[#allocation2 + $0x50] sm:$0xff] %vm670, %v1447
      %1478 = vst.msk [vmem:[#allocation2 + $0x58] sm:$0xff] %vm670, %v1448
      %1479 = vst.msk [vmem:[#allocation2 + $0x60] sm:$0xff] %vm670, %v1449
      %1480 = vst.msk [vmem:[#allocation2 + $0x68] sm:$0xff] %vm670, %v1450
      %1481 = vst.msk [vmem:[#allocation2 + $0x70] sm:$0xff] %vm670, %v1451
      %1482 = vst.msk [vmem:[#allocation2 + $0x78] sm:$0xff] %vm670, %v1452
      %1483 = vst.msk [vmem:[#allocation2 + $0x80] sm:$0xff] %vm670, %v1453
      %1484 = vst.msk [vmem:[#allocation2 + $0x88] sm:$0xff] %vm670, %v1454
      %1485 = vst.msk [vmem:[#allocation2 + $0x90] sm:$0xff] %vm670, %v1455
      %1486 = vst.msk [vmem:[#allocation2 + $0x98] sm:$0xff] %vm670, %v1456
      %1487 = vst.msk [vmem:[#allocation2 + $0xa0] sm:$0xff] %vm670, %v1457
      %1488 = vst.msk [vmem:[#allocation2 + $0xa8] sm:$0xff] %vm670, %v1458
      %1489 = vst.msk [vmem:[#allocation2 + $0xb0] sm:$0xff] %vm670, %v1459
      %1490 = vst.msk [vmem:[#allocation2 + $0xb8] sm:$0xff] %vm670, %v1460
      %1491 = vst.msk [vmem:[#allocation2 + $0xc0] sm:$0xff] %vm670, %v1461
      %1492 = vst.msk [vmem:[#allocation2 + $0xc8] sm:$0xff] %vm670, %v1462
      %1493 = vst.msk [vmem:[#allocation2 + $0xd0] sm:$0xff] %vm670, %v1463
      %1494 = vst.msk [vmem:[#allocation2 + $0xd8] sm:$0xff] %vm670, %v1464
      %1495 = vst.msk [vmem:[#allocation2 + $0xe0] sm:$0xff] %vm670, %v1465
      %1496 = vst.msk [vmem:[#allocation2 + $0xe8] sm:$0xff] %vm670, %v1466
      %v1497 = vld [vmem:[#allocation2] sm:$0xff]
      %v1498 = vld [vmem:[#allocation2 + $0x8] sm:$0xff]
      %v1499 = vld [vmem:[#allocation2 + $0x10] sm:$0xff]
      %v1500 = vld [vmem:[#allocation2 + $0x18] sm:$0xff]
      %v1501 = vld [vmem:[#allocation2 + $0x20] sm:$0xff]
      %v1502 = vld [vmem:[#allocation2 + $0x28] sm:$0xff]
      %v1503 = vld [vmem:[#allocation2 + $0x30] sm:$0xff]
      %v1504 = vld [vmem:[#allocation2 + $0x38] sm:$0xff]
      %v1505 = vld [vmem:[#allocation2 + $0x40] sm:$0xff]
      %v1506 = vld [vmem:[#allocation2 + $0x48] sm:$0xff]
      %v1507 = vld [vmem:[#allocation2 + $0x50] sm:$0xff]
      %v1508 = vld [vmem:[#allocation2 + $0x58] sm:$0xff]
      %v1509 = vld [vmem:[#allocation2 + $0x60] sm:$0xff]
      %v1510 = vld [vmem:[#allocation2 + $0x68] sm:$0xff]
      %v1511 = vld [vmem:[#allocation2 + $0x70] sm:$0xff]
      %v1512 = vld [vmem:[#allocation2 + $0x78] sm:$0xff]
      %v1513 = vld [vmem:[#allocation2 + $0x80] sm:$0xff]
      %v1514 = vld [vmem:[#allocation2 + $0x88] sm:$0xff]
      %v1515 = vld [vmem:[#allocation2 + $0x90] sm:$0xff]
      %v1516 = vld [vmem:[#allocation2 + $0x98] sm:$0xff]
      %v1517 = vld [vmem:[#allocation2 + $0xa0] sm:$0xff]
      %v1518 = vld [vmem:[#allocation2 + $0xa8] sm:$0xff]
      %v1519 = vld [vmem:[#allocation2 + $0xb0] sm:$0xff]
      %v1520 = vld [vmem:[#allocation2 + $0xb8] sm:$0xff]
      %v1521 = vld [vmem:[#allocation2 + $0xc0] sm:$0xff]
      %v1522 = vld [vmem:[#allocation2 + $0xc8] sm:$0xff]
      %v1523 = vld [vmem:[#allocation2 + $0xd0] sm:$0xff]
      %v1524 = vld [vmem:[#allocation2 + $0xd8] sm:$0xff]
      %v1525 = vld [vmem:[#allocation2 + $0xe0] sm:$0xff]
      %v1526 = vld [vmem:[#allocation2 + $0xe8] sm:$0xff]
      %v1527 = vld [vmem:[#allocation2 + $0xf0] sm:$0xff]
      %v1528 = vld [vmem:[#allocation2 + $0xf8] sm:$0xff]
      %v1529 = vld [vmem:[%s251] sm:$0x1]
      %v1531 = vlaneseq
      %v1532 = vshrl.u32 %v1531, 7
      %v1533 = vsub.s32 0, %v1532
      %v1534 = vrot.slane %v1529, %v1533
      %v1536 = vmul.f32 %v1497, %v1534
      %v1537 = vmul.f32 %v1498, %v1534
      %v1538 = vmul.f32 %v1499, %v1534
      %v1539 = vmul.f32 %v1500, %v1534
      %v1540 = vmul.f32 %v1501, %v1534
      %v1541 = vmul.f32 %v1502, %v1534
      %v1542 = vmul.f32 %v1503, %v1534
      %v1543 = vmul.f32 %v1504, %v1534
      %v1544 = vmul.f32 %v1505, %v1534
      %v1545 = vmul.f32 %v1506, %v1534
      %v1546 = vmul.f32 %v1507, %v1534
      %v1547 = vmul.f32 %v1508, %v1534
      %v1548 = vmul.f32 %v1509, %v1534
      %v1549 = vmul.f32 %v1510, %v1534
      %v1550 = vmul.f32 %v1511, %v1534
      %v1551 = vmul.f32 %v1512, %v1534
      %v1552 = vmul.f32 %v1513, %v1534
      %v1553 = vmul.f32 %v1514, %v1534
      %v1554 = vmul.f32 %v1515, %v1534
      %v1555 = vmul.f32 %v1516, %v1534
      %v1556 = vmul.f32 %v1517, %v1534
      %v1557 = vmul.f32 %v1518, %v1534
      %v1558 = vmul.f32 %v1519, %v1534
      %v1559 = vmul.f32 %v1520, %v1534
      %v1560 = vmul.f32 %v1521, %v1534
      %v1561 = vmul.f32 %v1522, %v1534
      %v1562 = vmul.f32 %v1523, %v1534
      %v1563 = vmul.f32 %v1524, %v1534
      %v1564 = vmul.f32 %v1525, %v1534
      %v1565 = vmul.f32 %v1526, %v1534
      %v1566 = vmul.f32 %v1527, %v1534
      %v1567 = vmul.f32 %v1528, %v1534
      %v1568 = vld [vmem:[%s254] sm:$0x1]
      %v1570 = vlaneseq
      %v1571 = vshrl.u32 %v1570, 7
      %v1572 = vsub.s32 0, %v1571
      %v1573 = vrot.slane %v1568, %v1572
      %v1575 = vadd.f32 %v1536, %v1573
      %v1576 = vadd.f32 %v1537, %v1573
      %v1577 = vadd.f32 %v1538, %v1573
      %v1578 = vadd.f32 %v1539, %v1573
      %v1579 = vadd.f32 %v1540, %v1573
      %v1580 = vadd.f32 %v1541, %v1573
      %v1581 = vadd.f32 %v1542, %v1573
      %v1582 = vadd.f32 %v1543, %v1573
      %v1583 = vadd.f32 %v1544, %v1573
      %v1584 = vadd.f32 %v1545, %v1573
      %v1585 = vadd.f32 %v1546, %v1573
      %v1586 = vadd.f32 %v1547, %v1573
      %v1587 = vadd.f32 %v1548, %v1573
      %v1588 = vadd.f32 %v1549, %v1573
      %v1589 = vadd.f32 %v1550, %v1573
      %v1590 = vadd.f32 %v1551, %v1573
      %v1591 = vadd.f32 %v1552, %v1573
      %v1592 = vadd.f32 %v1553, %v1573
      %v1593 = vadd.f32 %v1554, %v1573
      %v1594 = vadd.f32 %v1555, %v1573
      %v1595 = vadd.f32 %v1556, %v1573
      %v1596 = vadd.f32 %v1557, %v1573
      %v1597 = vadd.f32 %v1558, %v1573
      %v1598 = vadd.f32 %v1559, %v1573
      %v1599 = vadd.f32 %v1560, %v1573
      %v1600 = vadd.f32 %v1561, %v1573
      %v1601 = vadd.f32 %v1562, %v1573
      %v1602 = vadd.f32 %v1563, %v1573
      %v1603 = vadd.f32 %v1564, %v1573
      %v1604 = vadd.f32 %v1565, %v1573
      %v1605 = vadd.f32 %v1566, %v1573
      %v1606 = vadd.f32 %v1567, %v1573
      %v1607 = vmax.f32 %v1575, 0.0
      %v1608 = vmax.f32 %v1576, 0.0
      %v1609 = vmax.f32 %v1577, 0.0
      %v1610 = vmax.f32 %v1578, 0.0
      %v1611 = vmax.f32 %v1579, 0.0
      %v1612 = vmax.f32 %v1580, 0.0
      %v1613 = vmax.f32 %v1581, 0.0
      %v1614 = vmax.f32 %v1582, 0.0
      %v1615 = vmax.f32 %v1583, 0.0
      %v1616 = vmax.f32 %v1584, 0.0
      %v1617 = vmax.f32 %v1585, 0.0
      %v1618 = vmax.f32 %v1586, 0.0
      %v1619 = vmax.f32 %v1587, 0.0
      %v1620 = vmax.f32 %v1588, 0.0
      %v1621 = vmax.f32 %v1589, 0.0
      %v1622 = vmax.f32 %v1590, 0.0
      %v1623 = vmax.f32 %v1591, 0.0
      %v1624 = vmax.f32 %v1592, 0.0
      %v1625 = vmax.f32 %v1593, 0.0
      %v1626 = vmax.f32 %v1594, 0.0
      %v1627 = vmax.f32 %v1595, 0.0
      %v1628 = vmax.f32 %v1596, 0.0
      %v1629 = vmax.f32 %v1597, 0.0
      %v1630 = vmax.f32 %v1598, 0.0
      %v1631 = vmax.f32 %v1599, 0.0
      %v1632 = vmax.f32 %v1600, 0.0
      %v1633 = vmax.f32 %v1601, 0.0
      %v1634 = vmax.f32 %v1602, 0.0
      %v1635 = vmax.f32 %v1603, 0.0
      %v1636 = vmax.f32 %v1604, 0.0
      %v1637 = vmax.f32 %v1605, 0.0
      %v1638 = vmax.f32 %v1606, 0.0
      %1639 = vst.msk [vmem:[%s262] sm:$0xff] %vm670, %v1607
      %1640 = vst.msk [vmem:[%s262 + $0x8] sm:$0xff] %vm670, %v1608
      %1641 = vst.msk [vmem:[%s262 + $0x10] sm:$0xff] %vm670, %v1609
      %1642 = vst.msk [vmem:[%s262 + $0x18] sm:$0xff] %vm670, %v1610
      %1643 = vst.msk [vmem:[%s262 + $0x20] sm:$0xff] %vm670, %v1611
      %1644 = vst.msk [vmem:[%s262 + $0x28] sm:$0xff] %vm670, %v1612
      %1645 = vst.msk [vmem:[%s262 + $0x30] sm:$0xff] %vm670, %v1613
      %1646 = vst.msk [vmem:[%s262 + $0x38] sm:$0xff] %vm670, %v1614
      %1647 = vst.msk [vmem:[%s262 + $0x40] sm:$0xff] %vm670, %v1615
      %1648 = vst.msk [vmem:[%s262 + $0x48] sm:$0xff] %vm670, %v1616
      %1649 = vst.msk [vmem:[%s262 + $0x50] sm:$0xff] %vm670, %v1617
      %1650 = vst.msk [vmem:[%s262 + $0x58] sm:$0xff] %vm670, %v1618
      %1651 = vst.msk [vmem:[%s262 + $0x60] sm:$0xff] %vm670, %v1619
      %1652 = vst.msk [vmem:[%s262 + $0x68] sm:$0xff] %vm670, %v1620
      %1653 = vst.msk [vmem:[%s262 + $0x70] sm:$0xff] %vm670, %v1621
      %1654 = vst.msk [vmem:[%s262 + $0x78] sm:$0xff] %vm670, %v1622
      %1655 = vst.msk [vmem:[%s262 + $0x80] sm:$0xff] %vm670, %v1623
      %1656 = vst.msk [vmem:[%s262 + $0x88] sm:$0xff] %vm670, %v1624
      %1657 = vst.msk [vmem:[%s262 + $0x90] sm:$0xff] %vm670, %v1625
      %1658 = vst.msk [vmem:[%s262 + $0x98] sm:$0xff] %vm670, %v1626
      %1659 = vst.msk [vmem:[%s262 + $0xa0] sm:$0xff] %vm670, %v1627
      %1660 = vst.msk [vmem:[%s262 + $0xa8] sm:$0xff] %vm670, %v1628
      %1661 = vst.msk [vmem:[%s262 + $0xb0] sm:$0xff] %vm670, %v1629
      %1662 = vst.msk [vmem:[%s262 + $0xb8] sm:$0xff] %vm670, %v1630
      %1663 = vst.msk [vmem:[%s262 + $0xc0] sm:$0xff] %vm670, %v1631
      %1664 = vst.msk [vmem:[%s262 + $0xc8] sm:$0xff] %vm670, %v1632
      %1665 = vst.msk [vmem:[%s262 + $0xd0] sm:$0xff] %vm670, %v1633
      %1666 = vst.msk [vmem:[%s262 + $0xd8] sm:$0xff] %vm670, %v1634
      %1667 = vst.msk [vmem:[%s262 + $0xe0] sm:$0xff] %vm670, %v1635
      %1668 = vst.msk [vmem:[%s262 + $0xe8] sm:$0xff] %vm670, %v1636
      %1669 = vst.msk [vmem:[%s262 + $0xf0] sm:$0xff] %vm670, %v1637
      %1670 = vst.msk [vmem:[%s262 + $0xf8] sm:$0xff] %vm670, %v1638
      %p1671 = scmp.lt.s32.totalorder %s19, 1
      %s1672 = scalar_select %p1671, %s19, 1
      %p1673 = scmp.lt.s32.totalorder %s20, 0
      %s1674 = scalar_select %p1673, %s20, 0
      %s1675 = smul.addr %s1672, 32
      %s1676 = sadd.s32 %s1674, %s1675
      %s1677 = smul.addr %s1676, 8
      %s1678 = scalar_lea.vmem %s4, %s1677
      // Predicated region
      $region37: #{up_forward.5} parent=35 // pred_check
        %p1679 = pneg %p151
      $region38: #{up_forward.5} parent=35 // pred_check_branch
        %1681 = sbr.rel (%p1679) target = $region40
      $region39: #{up_forward.5} parent=35 // pred_region
        _
      $region40: #{up_forward.5} parent=35 // pred_fallthru
        _
    $region36: #{up_forward.5} parent=5 // pred_fallthru
      _
    %p1682 = scmp.le.s32.totalorder 2, %s10
    // Predicated region
    $region41: #{up_forward.5} parent=5 // pred_check
      %p1683 = pneg %p1682
    $region42: #{up_forward.5} parent=5 // pred_check_branch
      %1685 = sbr.rel (%p1683) target = $region44
    $region43: #{up_forward.5} parent=5 // pred_region
      %s1686 = ssub.s32 %s10, 2
      // Predicated region
      $region45: #{up_forward.5} parent=43 // pred_check
        %p1687 = pneg %p157
      $region46: #{up_forward.5} parent=43 // pred_check_branch
        %1689 = sbr.rel (%p1687) target = $region48
      $region47: #{up_forward.5} parent=43 // pred_region
        %p1690 = scmp.lt.s32.totalorder %s21, 1
        %s1691 = scalar_select %p1690, %s21, 1
        %p1692 = scmp.lt.s32.totalorder %s22, 0
        %s1693 = scalar_select %p1692, %s22, 0
        %s1694 = smul.addr %s1691, 32
        %s1695 = sadd.s32 %s1693, %s1694
        %s1696 = smul.addr %s1695, 8
        %s1697 = scalar_lea.vmem %s4, %s1696
      $region48: #{up_forward.5} parent=43 // pred_fallthru
        _
    $region44: #{up_forward.5} parent=5 // pred_fallthru
      _
  $region6: #{up_forward.5} parent=0 // loop_footer
    %s14 = sadd.s32 1, %s10
  $region7: #{up_forward.5} parent=0 // loop_footer_branch
    %9 = sbr.rel target = $region3
  $region8: #{up_forward.5} parent=0 // loop_exit
    _

// kernel: up_forward.4
$region0: #{up_forward.4}
  #allocation0 [shape = 'u32[]', space=smem, size = 0x4, offset = 0x4, fixed_abs, tag = 'smem constant byte address 0x4 - core index']
  #allocation1 [shape = 'u32[144,128]{1,0:T(1,128)}', space=vmem, size = 0x12000, scoped, tag = 'internal scratch']
  #allocation2 [shape = 'f32[256,4]{1,0:T(8,128)}', space=vmem, size = 0x20000, scoped, tag = 'scratch operand']
  %s0 = inlined_call_operand.vmem [shape: bf16[2,16,16,4], index: 0, kind: input, shape index: {}]
  %s1 = inlined_call_operand.vmem [shape: bf16[2,16,16,4], index: 1, kind: input, shape index: {}]
  %s2 = inlined_call_operand.vmem [shape: bf16[3,24,4], index: 2, kind: input, shape index: {}]
  %s3 = inlined_call_operand.vmem [shape: f32[1,4], index: 3, kind: input, shape index: {}]
  %s4 = inlined_call_operand.vmem [shape: f32[1,4], index: 4, kind: input, shape index: {}]
  %s5 = inlined_call_operand.vmem [shape: bf16[2,16,16,4], index: 5, kind: output, shape index: {}]
  %s6 = sld [smem:[#allocation0]]
  $region53: #{up_forward.4} parent=0
    _
  %s8 = ssub.s32 1, %s6
  %s9 = scalar_select 0, %s8, %s6
  loop: start=0, step=1, limit=4
  $region2: #{up_forward.4} parent=0 // loop_pre_header
    _
  $region3: #{up_forward.4} parent=0 // loop_header
    %s11 = sphi 0, %s15
    %p12 = scmp.ge.s32.totalorder %s11, 4
    %s18 = sphi 0, %s30
    %s19 = sphi 0, %s26
    %s20 = sphi 0, %s18
    %s21 = sphi 0, %s19
    %s22 = sphi 0, %s20
    %s23 = sphi 0, %s21
    %s33 = sphi 0, %s35
    %s36 = sphi 0, %s33
    %s37 = sphi 0, %s36
    %s53 = sphi 0, %s37
    %s59 = sphi 0, %s61
    %s62 = sphi 0, %s59
    %s63 = sphi 0, %s62
    %s79 = sphi 0, %s63
    %s85 = sphi 0, %s87
    %s88 = sphi 0, %s85
    %s89 = sphi 0, %s88
    %s105 = sphi 0, %s89
    %s111 = sphi 0, %s113
    %s114 = sphi 0, %s111
    %s115 = sphi 0, %s114
    %s131 = sphi 0, %s115
    %s137 = sphi 0, %s139
    %s140 = sphi 0, %s137
    %s141 = sphi 0, %s140
    %s157 = sphi 0, %s141
    %s165 = sphi 0, %s167
    %s168 = sphi 0, %s165
    %s169 = sphi 0, %s168
    %s185 = sphi 0, %s169
  $region4: #{up_forward.4} parent=0 // loop_header_branch
    %14 = sbr.rel (%p12) target = $region8
  $region5: #{up_forward.4} parent=0 // loop_body
    %s16 = ssub.s32 %s11, 1
    %s17 = ssub.s32 %s11, 2
    %s24 = sadd.s32 1, %s19
    %p25 = scmp.ge.s32.totalorder %s24, 1
    %s26 = scalar_select %p25, 0, %s24
    %s27 = sadd.s32 1, %s18
    %s28 = scalar_select %p25, %s27, %s18
    %p29 = scmp.ge.s32.totalorder %s28, 2
    %s30 = scalar_select %p29, 0, %s28
    %s31 = ssub.s32 %s18, %s30
    %p32 = scmp.eq.s32.totalorder %s31, 0
    %s34 = sadd.s32 %s33, 1
    %s35 = scalar_select %p32, %s33, %s34
    %p38 = pneg %p32
    %p39 = scmp.eq.s32.totalorder %s11, 1
    %p40 = por %p38, %p39
    %p41 = scmp.ne.s32.totalorder %s33, %s36
    %p42 = scmp.eq.s32.totalorder %s11, 0
    %p43 = por %p41, %p42
    %p44 = scmp.ne.s32.totalorder %s33, %s36
    %p45 = scmp.eq.s32.totalorder %s16, 1
    %p46 = por %p44, %p45
    %p47 = scmp.ne.s32.totalorder %s36, %s37
    %p48 = scmp.eq.s32.totalorder %s16, 0
    %p49 = por %p47, %p48
    %p50 = scmp.ne.s32.totalorder %s36, %s37
    %p51 = scmp.eq.s32.totalorder %s17, 1
    %p52 = por %p50, %p51
    %p54 = scmp.ne.s32.totalorder %s37, %s53
    %p55 = scmp.eq.s32.totalorder %s17, 0
    %p56 = por %p54, %p55
    %s57 = ssub.s32 %s18, %s30
    %p58 = scmp.eq.s32.totalorder %s57, 0
    %s60 = sadd.s32 %s59, 1
    %s61 = scalar_select %p58, %s59, %s60
    %p64 = pneg %p58
    %p65 = scmp.eq.s32.totalorder %s11, 1
    %p66 = por %p64, %p65
    %p67 = scmp.ne.s32.totalorder %s59, %s62
    %p68 = scmp.eq.s32.totalorder %s11, 0
    %p69 = por %p67, %p68
    %p70 = scmp.ne.s32.totalorder %s59, %s62
    %p71 = scmp.eq.s32.totalorder %s16, 1
    %p72 = por %p70, %p71
    %p73 = scmp.ne.s32.totalorder %s62, %s63
    %p74 = scmp.eq.s32.totalorder %s16, 0
    %p75 = por %p73, %p74
    %p76 = scmp.ne.s32.totalorder %s62, %s63
    %p77 = scmp.eq.s32.totalorder %s17, 1
    %p78 = por %p76, %p77
    %p80 = scmp.ne.s32.totalorder %s63, %s79
    %p81 = scmp.eq.s32.totalorder %s17, 0
    %p82 = por %p80, %p81
    %s83 = ssub.s32 %s19, %s26
    %p84 = scmp.eq.s32.totalorder %s83, 0
    %s86 = sadd.s32 %s85, 1
    %s87 = scalar_select %p84, %s85, %s86
    %p90 = pneg %p84
    %p91 = scmp.eq.s32.totalorder %s11, 1
    %p92 = por %p90, %p91
    %p93 = scmp.ne.s32.totalorder %s85, %s88
    %p94 = scmp.eq.s32.totalorder %s11, 0
    %p95 = por %p93, %p94
    %p96 = scmp.ne.s32.totalorder %s85, %s88
    %p97 = scmp.eq.s32.totalorder %s16, 1
    %p98 = por %p96, %p97
    %p99 = scmp.ne.s32.totalorder %s88, %s89
    %p100 = scmp.eq.s32.totalorder %s16, 0
    %p101 = por %p99, %p100
    %p102 = scmp.ne.s32.totalorder %s88, %s89
    %p103 = scmp.eq.s32.totalorder %s17, 1
    %p104 = por %p102, %p103
    %p106 = scmp.ne.s32.totalorder %s89, %s105
    %p107 = scmp.eq.s32.totalorder %s17, 0
    %p108 = por %p106, %p107
    %s109 = ssub.s32 %s19, %s26
    %p110 = scmp.eq.s32.totalorder %s109, 0
    %s112 = sadd.s32 %s111, 1
    %s113 = scalar_select %p110, %s111, %s112
    %p116 = pneg %p110
    %p117 = scmp.eq.s32.totalorder %s11, 1
    %p118 = por %p116, %p117
    %p119 = scmp.ne.s32.totalorder %s111, %s114
    %p120 = scmp.eq.s32.totalorder %s11, 0
    %p121 = por %p119, %p120
    %p122 = scmp.ne.s32.totalorder %s111, %s114
    %p123 = scmp.eq.s32.totalorder %s16, 1
    %p124 = por %p122, %p123
    %p125 = scmp.ne.s32.totalorder %s114, %s115
    %p126 = scmp.eq.s32.totalorder %s16, 0
    %p127 = por %p125, %p126
    %p128 = scmp.ne.s32.totalorder %s114, %s115
    %p129 = scmp.eq.s32.totalorder %s17, 1
    %p130 = por %p128, %p129
    %p132 = scmp.ne.s32.totalorder %s115, %s131
    %p133 = scmp.eq.s32.totalorder %s17, 0
    %p134 = por %p132, %p133
    %s135 = ssub.s32 %s19, %s26
    %p136 = scmp.eq.s32.totalorder %s135, 0
    %s138 = sadd.s32 %s137, 1
    %s139 = scalar_select %p136, %s137, %s138
    %p142 = pneg %p136
    %p143 = scmp.eq.s32.totalorder %s11, 1
    %p144 = por %p142, %p143
    %p145 = scmp.ne.s32.totalorder %s137, %s140
    %p146 = scmp.eq.s32.totalorder %s11, 0
    %p147 = por %p145, %p146
    %p148 = scmp.ne.s32.totalorder %s137, %s140
    %p149 = scmp.eq.s32.totalorder %s16, 1
    %p150 = por %p148, %p149
    %p151 = scmp.ne.s32.totalorder %s140, %s141
    %p152 = scmp.eq.s32.totalorder %s16, 0
    %p153 = por %p151, %p152
    %p154 = scmp.ne.s32.totalorder %s140, %s141
    %p155 = scmp.eq.s32.totalorder %s17, 1
    %p156 = por %p154, %p155
    %p158 = scmp.ne.s32.totalorder %s141, %s157
    %p159 = scmp.eq.s32.totalorder %s17, 0
    %p160 = por %p158, %p159
    %s161 = ssub.s32 %s18, %s30
    %s162 = ssub.s32 %s19, %s26
    %s163 = sor.u32 %s161, %s162
    %p164 = scmp.eq.s32.totalorder %s163, 0
    %s166 = sadd.s32 %s165, 1
    %s167 = scalar_select %p164, %s165, %s166
    %p170 = pneg %p164
    %p171 = scmp.eq.s32.totalorder %s11, 1
    %p172 = por %p170, %p171
    %p173 = scmp.ne.s32.totalorder %s165, %s168
    %p174 = scmp.eq.s32.totalorder %s11, 0
    %p175 = por %p173, %p174
    %p176 = scmp.ne.s32.totalorder %s165, %s168
    %p177 = scmp.eq.s32.totalorder %s16, 1
    %p178 = por %p176, %p177
    %p179 = scmp.ne.s32.totalorder %s168, %s169
    %p180 = scmp.eq.s32.totalorder %s16, 0
    %p181 = por %p179, %p180
    %p182 = scmp.ne.s32.totalorder %s168, %s169
    %p183 = scmp.eq.s32.totalorder %s17, 1
    %p184 = por %p182, %p183
    %p186 = scmp.ne.s32.totalorder %s169, %s185
    %p187 = scmp.eq.s32.totalorder %s17, 0
    %p188 = por %p186, %p187
    %p189 = scmp.le.s32.totalorder 1, %s11
    %p190 = scmp.lt.s32.totalorder %s11, 3
    %p191 = pnand %p189, %p190
    %p192 = pneg %p191
    // Predicated region
    $region9: #{up_forward.4} parent=5 // pred_check
      _
    $region10: #{up_forward.4} parent=5 // pred_check_branch
      %194 = sbr.rel (%p191) target = $region12
    $region11: #{up_forward.4} parent=5 // pred_region
      %s195 = ssub.s32 %s11, 1
      // Predicated region
      $region13: #{up_forward.4} parent=11 // pred_check
        %p196 = pneg %p101
      $region14: #{up_forward.4} parent=11 // pred_check_branch
        %198 = sbr.rel (%p196) target = $region16
      $region15: #{up_forward.4} parent=11 // pred_region
        %p199 = scmp.lt.s32.totalorder %s21, 0
        %s200 = scalar_select %p199, %s21, 0
        %s201 = smul.addr %s200, 4
        %s202 = scalar_lea.vmem %s2, %s201
      $region16: #{up_forward.4} parent=11 // pred_fallthru
        _
      // Predicated region
      $region17: #{up_forward.4} parent=11 // pred_check
        %p203 = pneg %p127
      $region18: #{up_forward.4} parent=11 // pred_check_branch
        %205 = sbr.rel (%p203) target = $region20
      $region19: #{up_forward.4} parent=11 // pred_region
        %p206 = scmp.lt.s32.totalorder %s21, 0
        %s207 = scalar_select %p206, %s21, 0
        %s208 = scalar_lea.vmem %s3, %s207
      $region20: #{up_forward.4} parent=11 // pred_fallthru
        _
      // Predicated region
      $region21: #{up_forward.4} parent=11 // pred_check
        %p209 = pneg %p153
      $region22: #{up_forward.4} parent=11 // pred_check_branch
        %211 = sbr.rel (%p209) target = $region24
      $region23: #{up_forward.4} parent=11 // pred_region
        %p212 = scmp.lt.s32.totalorder %s21, 0
        %s213 = scalar_select %p212, %s21, 0
        %s214 = scalar_lea.vmem %s4, %s213
      $region24: #{up_forward.4} parent=11 // pred_fallthru
        _
    $region12: #{up_forward.4} parent=5 // pred_fallthru
      _
    %p215 = scmp.lt.s32.totalorder %s11, 2
    // Predicated region
    $region25: #{up_forward.4} parent=5 // pred_check
      %p216 = pneg %p215
    $region26: #{up_forward.4} parent=5 // pred_check_branch
      %218 = sbr.rel (%p216) target = $region28
    $region27: #{up_forward.4} parent=5 // pred_region
      // Predicated region
      $region29: #{up_forward.4} parent=27 // pred_check
        %p219 = pneg %p43
      $region30: #{up_forward.4} parent=27 // pred_check_branch
        %221 = sbr.rel (%p219) target = $region32
      $region31: #{up_forward.4} parent=27 // pred_region
        %p222 = scmp.lt.s32.totalorder %s18, 1
        %s223 = scalar_select %p222, %s18, 1
        %s224 = smul.addr %s223, 32
        %s225 = smul.addr %s224, 4
        %s226 = scalar_lea.vmem %s0, %s225
      $region32: #{up_forward.4} parent=27 // pred_fallthru
        _
      // Predicated region
      $region33: #{up_forward.4} parent=27 // pred_check
        %p227 = pneg %p69
      $region34: #{up_forward.4} parent=27 // pred_check_branch
        %229 = sbr.rel (%p227) target = $region36
      $region35: #{up_forward.4} parent=27 // pred_region
        %p230 = scmp.lt.s32.totalorder %s18, 1
        %s231 = scalar_select %p230, %s18, 1
        %s232 = smul.addr %s231, 32
        %s233 = smul.addr %s232, 4
        %s234 = scalar_lea.vmem %s1, %s233
      $region36: #{up_forward.4} parent=27 // pred_fallthru
        _
    $region28: #{up_forward.4} parent=5 // pred_fallthru
      _
    %p235 = scmp.le.s32.totalorder 1, %s11
    %p236 = scmp.lt.s32.totalorder %s11, 3
    %p237 = pnand %p235, %p236
    %p238 = pneg %p237
    // Predicated region
    $region37: #{up_forward.4} parent=5 // pred_check
      _
    $region38: #{up_forward.4} parent=5 // pred_check_branch
      %240 = sbr.rel (%p237) target = $region40
    $region39: #{up_forward.4} parent=5 // pred_region
      %s241 = ssub.s32 %s11, 1
      %p242 = scmp.lt.s32.totalorder %s20, 1
      %s243 = scalar_select %p242, %s20, 1
      %s244 = smul.addr %s243, 32
      %s245 = smul.addr %s244, 4
      %s246 = scalar_lea.vmem %s0, %s245
      %p247 = pneg %p49
      %p248 = pneg %p46
      %p249 = scmp.lt.s32.totalorder %s20, 1
      %s250 = scalar_select %p249, %s20, 1
      %s251 = smul.addr %s250, 32
      %s252 = smul.addr %s251, 4
      %s253 = scalar_lea.vmem %s1, %s252
      %p254 = pneg %p75
      %p255 = pneg %p72
      %p256 = scmp.lt.s32.totalorder %s21, 0
      %s257 = scalar_select %p256, %s21, 0
      %s258 = smul.addr %s257, 4
      %s259 = scalar_lea.vmem %s2, %s258
      %p260 = pneg %p101
      %p261 = pneg %p98
      %p262 = scmp.lt.s32.totalorder %s21, 0
      %s263 = scalar_select %p262, %s21, 0
      %s264 = scalar_lea.vmem %s3, %s263
      %p265 = pneg %p127
      %p266 = pneg %p124
      %p267 = scmp.lt.s32.totalorder %s21, 0
      %s268 = scalar_select %p267, %s21, 0
      %s269 = scalar_lea.vmem %s4, %s268
      %p270 = pneg %p153
      %p271 = pneg %p150
      %p272 = pneg %p181
      %p273 = pneg %p178
      %p274 = scmp.lt.s32.totalorder %s20, 1
      %s275 = scalar_select %p274, %s20, 1
      %p276 = scmp.lt.s32.totalorder %s21, 0
      %s277 = scalar_select %p276, %s21, 0
      %s278 = smul.addr %s275, 32
      %s279 = sadd.s32 %s277, %s278
      %s280 = smul.addr %s279, 4
      %s281 = scalar_lea.vmem %s5, %s280
      %p282 = scmp.lt.s32.totalorder %s20, 1
      %s283 = scalar_select %p282, %s20, 1
      %s284 = smul.addr %s283, 32
      %s285 = smul.addr %s284, 4
      %s286 = scalar_lea.vmem %s0, %s285
      %p287 = scmp.lt.s32.totalorder %s20, 1
      %s288 = scalar_select %p287, %s20, 1
      %s289 = smul.addr %s288, 32
      %s290 = smul.addr %s289, 4
      %s291 = scalar_lea.vmem %s1, %s290
      %p292 = scmp.lt.s32.totalorder %s21, 0
      %s293 = scalar_select %p292, %s21, 0
      %s294 = smul.addr %s293, 4
      %s295 = scalar_lea.vmem %s2, %s294
      %p296 = scmp.lt.s32.totalorder %s21, 0
      %s297 = scalar_select %p296, %s21, 0
      %s298 = scalar_lea.vmem %s3, %s297
      %p299 = scmp.lt.s32.totalorder %s21, 0
      %s300 = scalar_select %p299, %s21, 0
      %s301 = scalar_lea.vmem %s4, %s300
      %p302 = scmp.lt.s32.totalorder %s20, 1
      %s303 = scalar_select %p302, %s20, 1
      %p304 = scmp.lt.s32.totalorder %s21, 0
      %s305 = scalar_select %p304, %s21, 0
      %s306 = smul.addr %s303, 32
      %s307 = sadd.s32 %s305, %s306
      %s308 = smul.addr %s307, 4
      %s309 = scalar_lea.vmem %s5, %s308
      %v311 = vld [vmem:[%s286] sm:$0xf]
      %v312 = vld [vmem:[%s286 + $0x4] sm:$0xf]
      %v313 = vld [vmem:[%s286 + $0x8] sm:$0xf]
      %v314 = vld [vmem:[%s286 + $0xc] sm:$0xf]
      %v315 = vld [vmem:[%s286 + $0x10] sm:$0xf]
      %v316 = vld [vmem:[%s286 + $0x14] sm:$0xf]
      %v317 = vld [vmem:[%s286 + $0x18] sm:$0xf]
      %v318 = vld [vmem:[%s286 + $0x1c] sm:$0xf]
      %v319 = vld [vmem:[%s286 + $0x20] sm:$0xf]
      %v320 = vld [vmem:[%s286 + $0x24] sm:$0xf]
      %v321 = vld [vmem:[%s286 + $0x28] sm:$0xf]
      %v322 = vld [vmem:[%s286 + $0x2c] sm:$0xf]
      %v323 = vld [vmem:[%s286 + $0x30] sm:$0xf]
      %v324 = vld [vmem:[%s286 + $0x34] sm:$0xf]
      %v325 = vld [vmem:[%s286 + $0x38] sm:$0xf]
      %v326 = vld [vmem:[%s286 + $0x3c] sm:$0xf]
      %v327 = vld [vmem:[%s286 + $0x40] sm:$0xf]
      %v328 = vld [vmem:[%s286 + $0x44] sm:$0xf]
      %v329 = vld [vmem:[%s286 + $0x48] sm:$0xf]
      %v330 = vld [vmem:[%s286 + $0x4c] sm:$0xf]
      %v331 = vld [vmem:[%s286 + $0x50] sm:$0xf]
      %v332 = vld [vmem:[%s286 + $0x54] sm:$0xf]
      %v333 = vld [vmem:[%s286 + $0x58] sm:$0xf]
      %v334 = vld [vmem:[%s286 + $0x5c] sm:$0xf]
      %v335 = vld [vmem:[%s286 + $0x60] sm:$0xf]
      %v336 = vld [vmem:[%s286 + $0x64] sm:$0xf]
      %v337 = vld [vmem:[%s286 + $0x68] sm:$0xf]
      %v338 = vld [vmem:[%s286 + $0x6c] sm:$0xf]
      %v339 = vld [vmem:[%s286 + $0x70] sm:$0xf]
      %v340 = vld [vmem:[%s286 + $0x74] sm:$0xf]
      %v341 = vld [vmem:[%s286 + $0x78] sm:$0xf]
      %v342 = vld [vmem:[%s286 + $0x7c] sm:$0xf]
      %v343 = vld [vmem:[%s291] sm:$0xf]
      %v344 = vld [vmem:[%s291 + $0x4] sm:$0xf]
      %v345 = vld [vmem:[%s291 + $0x8] sm:$0xf]
      %v346 = vld [vmem:[%s291 + $0xc] sm:$0xf]
      %v347 = vld [vmem:[%s291 + $0x10] sm:$0xf]
      %v348 = vld [vmem:[%s291 + $0x14] sm:$0xf]
      %v349 = vld [vmem:[%s291 + $0x18] sm:$0xf]
      %v350 = vld [vmem:[%s291 + $0x1c] sm:$0xf]
      %v351 = vld [vmem:[%s291 + $0x20] sm:$0xf]
      %v352 = vld [vmem:[%s291 + $0x24] sm:$0xf]
      %v353 = vld [vmem:[%s291 + $0x28] sm:$0xf]
      %v354 = vld [vmem:[%s291 + $0x2c] sm:$0xf]
      %v355 = vld [vmem:[%s291 + $0x30] sm:$0xf]
      %v356 = vld [vmem:[%s291 + $0x34] sm:$0xf]
      %v357 = vld [vmem:[%s291 + $0x38] sm:$0xf]
      %v358 = vld [vmem:[%s291 + $0x3c] sm:$0xf]
      %v359 = vld [vmem:[%s291 + $0x40] sm:$0xf]
      %v360 = vld [vmem:[%s291 + $0x44] sm:$0xf]
      %v361 = vld [vmem:[%s291 + $0x48] sm:$0xf]
      %v362 = vld [vmem:[%s291 + $0x4c] sm:$0xf]
      %v363 = vld [vmem:[%s291 + $0x50] sm:$0xf]
      %v364 = vld [vmem:[%s291 + $0x54] sm:$0xf]
      %v365 = vld [vmem:[%s291 + $0x58] sm:$0xf]
      %v366 = vld [vmem:[%s291 + $0x5c] sm:$0xf]
      %v367 = vld [vmem:[%s291 + $0x60] sm:$0xf]
      %v368 = vld [vmem:[%s291 + $0x64] sm:$0xf]
      %v369 = vld [vmem:[%s291 + $0x68] sm:$0xf]
      %v370 = vld [vmem:[%s291 + $0x6c] sm:$0xf]
      %v371 = vld [vmem:[%s291 + $0x70] sm:$0xf]
      %v372 = vld [vmem:[%s291 + $0x74] sm:$0xf]
      %v373 = vld [vmem:[%s291 + $0x78] sm:$0xf]
      %v374 = vld [vmem:[%s291 + $0x7c] sm:$0xf]
      %v407 = vunpack.c.l.b16 %v311
      %v408 = vunpack.c.l.b16 %v312
      %v409 = vunpack.c.l.b16 %v313
      %v410 = vunpack.c.l.b16 %v314
      %v411 = vunpack.c.l.b16 %v315
      %v412 = vunpack.c.l.b16 %v316
      %v413 = vunpack.c.l.b16 %v317
      %v414 = vunpack.c.l.b16 %v318
      %v415 = vunpack.c.l.b16 %v319
      %v416 = vunpack.c.l.b16 %v320
      %v417 = vunpack.c.l.b16 %v321
      %v418 = vunpack.c.l.b16 %v322
      %v419 = vunpack.c.l.b16 %v323
      %v420 = vunpack.c.l.b16 %v324
      %v421 = vunpack.c.l.b16 %v325
      %v422 = vunpack.c.l.b16 %v326
      %v423 = vunpack.c.l.b16 %v327
      %v424 = vunpack.c.l.b16 %v328
      %v425 = vunpack.c.l.b16 %v329
      %v426 = vunpack.c.l.b16 %v330
      %v427 = vunpack.c.l.b16 %v331
      %v428 = vunpack.c.l.b16 %v332
      %v429 = vunpack.c.l.b16 %v333
      %v430 = vunpack.c.l.b16 %v334
      %v431 = vunpack.c.l.b16 %v335
      %v432 = vunpack.c.l.b16 %v336
      %v433 = vunpack.c.l.b16 %v337
      %v434 = vunpack.c.l.b16 %v338
      %v435 = vunpack.c.l.b16 %v339
      %v436 = vunpack.c.l.b16 %v340
      %v437 = vunpack.c.l.b16 %v341
      %v438 = vunpack.c.l.b16 %v342
      %v439 = vpack.c.b16 %v408, %v407
      %v440 = vpack.c.b16 %v410, %v409
      %v441 = vpack.c.b16 %v412, %v411
      %v442 = vpack.c.b16 %v414, %v413
      %v443 = vpack.c.b16 %v416, %v415
      %v444 = vpack.c.b16 %v418, %v417
      %v445 = vpack.c.b16 %v420, %v419
      %v446 = vpack.c.b16 %v422, %v421
      %v447 = vpack.c.b16 %v424, %v423
      %v448 = vpack.c.b16 %v426, %v425
      %v449 = vpack.c.b16 %v428, %v427
      %v450 = vpack.c.b16 %v430, %v429
      %v451 = vpack.c.b16 %v432, %v431
      %v452 = vpack.c.b16 %v434, %v433
      %v453 = vpack.c.b16 %v436, %v435
      %v454 = vpack.c.b16 %v438, %v437
      %v487 = vunpack.c.l.b16 %v343
      %v488 = vunpack.c.l.b16 %v344
      %v489 = vunpack.c.l.b16 %v345
      %v490 = vunpack.c.l.b16 %v346
      %v491 = vunpack.c.l.b16 %v347
      %v492 = vunpack.c.l.b16 %v348
      %v493 = vunpack.c.l.b16 %v349
      %v494 = vunpack.c.l.b16 %v350
      %v495 = vunpack.c.l.b16 %v351
      %v496 = vunpack.c.l.b16 %v352
      %v497 = vunpack.c.l.b16 %v353
      %v498 = vunpack.c.l.b16 %v354
      %v499 = vunpack.c.l.b16 %v355
      %v500 = vunpack.c.l.b16 %v356
      %v501 = vunpack.c.l.b16 %v357
      %v502 = vunpack.c.l.b16 %v358
      %v503 = vunpack.c.l.b16 %v359
      %v504 = vunpack.c.l.b16 %v360
      %v505 = vunpack.c.l.b16 %v361
      %v506 = vunpack.c.l.b16 %v362
      %v507 = vunpack.c.l.b16 %v363
      %v508 = vunpack.c.l.b16 %v364
      %v509 = vunpack.c.l.b16 %v365
      %v510 = vunpack.c.l.b16 %v366
      %v511 = vunpack.c.l.b16 %v367
      %v512 = vunpack.c.l.b16 %v368
      %v513 = vunpack.c.l.b16 %v369
      %v514 = vunpack.c.l.b16 %v370
      %v515 = vunpack.c.l.b16 %v371
      %v516 = vunpack.c.l.b16 %v372
      %v517 = vunpack.c.l.b16 %v373
      %v518 = vunpack.c.l.b16 %v374
      %v519 = vpack.c.b16 %v488, %v487
      %v520 = vpack.c.b16 %v490, %v489
      %v521 = vpack.c.b16 %v492, %v491
      %v522 = vpack.c.b16 %v494, %v493
      %v523 = vpack.c.b16 %v496, %v495
      %v524 = vpack.c.b16 %v498, %v497
      %v525 = vpack.c.b16 %v500, %v499
      %v526 = vpack.c.b16 %v502, %v501
      %v527 = vpack.c.b16 %v504, %v503
      %v528 = vpack.c.b16 %v506, %v505
      %v529 = vpack.c.b16 %v508, %v507
      %v530 = vpack.c.b16 %v510, %v509
      %v531 = vpack.c.b16 %v512, %v511
      %v532 = vpack.c.b16 %v514, %v513
      %v533 = vpack.c.b16 %v516, %v515
      %v534 = vpack.c.b16 %v518, %v517
      %535 = vrot.lane.b32.xlu0 %v519, 4
      %v536 = vpop.permute.xlu0 %535
      %537 = vrot.lane.b32.xlu0 %v520, 4
      %v538 = vpop.permute.xlu0 %537
      %539 = vrot.lane.b32.xlu0 %v521, 4
      %v540 = vpop.permute.xlu0 %539
      %541 = vrot.lane.b32.xlu0 %v522, 4
      %v542 = vpop.permute.xlu0 %541
      %543 = vrot.lane.b32.xlu0 %v523, 4
      %v544 = vpop.permute.xlu0 %543
      %545 = vrot.lane.b32.xlu0 %v524, 4
      %v546 = vpop.permute.xlu0 %545
      %547 = vrot.lane.b32.xlu0 %v525, 4
      %v548 = vpop.permute.xlu0 %547
      %549 = vrot.lane.b32.xlu0 %v526, 4
      %v550 = vpop.permute.xlu0 %549
      %551 = vrot.lane.b32.xlu0 %v527, 4
      %v552 = vpop.permute.xlu0 %551
      %553 = vrot.lane.b32.xlu0 %v528, 4
      %v554 = vpop.permute.xlu0 %553
      %555 = vrot.lane.b32.xlu0 %v529, 4
      %v556 = vpop.permute.xlu0 %555
      %557 = vrot.lane.b32.xlu0 %v530, 4
      %v558 = vpop.permute.xlu0 %557
      %559 = vrot.lane.b32.xlu0 %v531, 4
      %v560 = vpop.permute.xlu0 %559
      %561 = vrot.lane.b32.xlu0 %v532, 4
      %v562 = vpop.permute.xlu0 %561
      %563 = vrot.lane.b32.xlu0 %v533, 4
      %v564 = vpop.permute.xlu0 %563
      %565 = vrot.lane.b32.xlu0 %v534, 4
      %v566 = vpop.permute.xlu0 %565
      %vm567 = vcmask 31744
      %v570 = vsel %vm567, %v439, %v536
      %v573 = vsel %vm567, %v440, %v538
      %v576 = vsel %vm567, %v441, %v540
      %v579 = vsel %vm567, %v442, %v542
      %v582 = vsel %vm567, %v443, %v544
      %v585 = vsel %vm567, %v444, %v546
      %v588 = vsel %vm567, %v445, %v548
      %v591 = vsel %vm567, %v446, %v550
      %v594 = vsel %vm567, %v447, %v552
      %v597 = vsel %vm567, %v448, %v554
      %v600 = vsel %vm567, %v449, %v556
      %v603 = vsel %vm567, %v450, %v558
      %v606 = vsel %vm567, %v451, %v560
      %v609 = vsel %vm567, %v452, %v562
      %v612 = vsel %vm567, %v453, %v564
      %v615 = vsel %vm567, %v454, %v566
      %v616 = vshrl.u32 %v570, 16
      %v618 = vrot.slane %v616, 7
      %v619 = vshll.u32 %v570, 16
      %v621 = vor.u32 %v618, %v619
      %v622 = vshrl.u32 %v573, 16
      %v624 = vrot.slane %v622, 7
      %v625 = vshll.u32 %v573, 16
      %v627 = vor.u32 %v624, %v625
      %v628 = vshrl.u32 %v576, 16
      %v630 = vrot.slane %v628, 7
      %v631 = vshll.u32 %v576, 16
      %v633 = vor.u32 %v630, %v631
      %v634 = vshrl.u32 %v579, 16
      %v636 = vrot.slane %v634, 7
      %v637 = vshll.u32 %v579, 16
      %v639 = vor.u32 %v636, %v637
      %v640 = vshrl.u32 %v582, 16
      %v642 = vrot.slane %v640, 7
      %v643 = vshll.u32 %v582, 16
      %v645 = vor.u32 %v642, %v643
      %v646 = vshrl.u32 %v585, 16
      %v648 = vrot.slane %v646, 7
      %v649 = vshll.u32 %v585, 16
      %v651 = vor.u32 %v648, %v649
      %v652 = vshrl.u32 %v588, 16
      %v654 = vrot.slane %v652, 7
      %v655 = vshll.u32 %v588, 16
      %v657 = vor.u32 %v654, %v655
      %v658 = vshrl.u32 %v591, 16
      %v660 = vrot.slane %v658, 7
      %v661 = vshll.u32 %v591, 16
      %v663 = vor.u32 %v660, %v661
      %v664 = vshrl.u32 %v594, 16
      %v666 = vrot.slane %v664, 7
      %v667 = vshll.u32 %v594, 16
      %v669 = vor.u32 %v666, %v667
      %v670 = vshrl.u32 %v597, 16
      %v672 = vrot.slane %v670, 7
      %v673 = vshll.u32 %v597, 16
      %v675 = vor.u32 %v672, %v673
      %v676 = vshrl.u32 %v600, 16
      %v678 = vrot.slane %v676, 7
      %v679 = vshll.u32 %v600, 16
      %v681 = vor.u32 %v678, %v679
      %v682 = vshrl.u32 %v603, 16
      %v684 = vrot.slane %v682, 7
      %v685 = vshll.u32 %v603, 16
      %v687 = vor.u32 %v684, %v685
      %v688 = vshrl.u32 %v606, 16
      %v690 = vrot.slane %v688, 7
      %v691 = vshll.u32 %v606, 16
      %v693 = vor.u32 %v690, %v691
      %v694 = vshrl.u32 %v609, 16
      %v696 = vrot.slane %v694, 7
      %v697 = vshll.u32 %v609, 16
      %v699 = vor.u32 %v696, %v697
      %v700 = vshrl.u32 %v612, 16
      %v702 = vrot.slane %v700, 7
      %v703 = vshll.u32 %v612, 16
      %v705 = vor.u32 %v702, %v703
      %v706 = vshrl.u32 %v615, 16
      %v708 = vrot.slane %v706, 7
      %v709 = vshll.u32 %v615, 16
      %v711 = vor.u32 %v708, %v709
      %vm728 = vcmask 1040384
      %vm729 = vsmask.f32 256
      %vm730 = vmand %vm728, %vm729
      %v731 = vsel %vm730, 0, %v621
      %v732 = vsel %vm730, 0, %v627
      %v733 = vsel %vm730, 0, %v633
      %v734 = vsel %vm730, 0, %v639
      %v735 = vsel %vm730, 0, %v645
      %v736 = vsel %vm730, 0, %v651
      %v737 = vsel %vm730, 0, %v657
      %v738 = vsel %vm730, 0, %v663
      %v739 = vsel %vm730, 0, %v669
      %v740 = vsel %vm730, 0, %v675
      %v741 = vsel %vm730, 0, %v681
      %v742 = vsel %vm730, 0, %v687
      %v743 = vsel %vm730, 0, %v693
      %v744 = vsel %vm730, 0, %v699
      %v745 = vsel %vm730, 0, %v705
      %v746 = vsel %vm730, 0, %v711
      %v747 = vrot.slane %v619, 1
      %v748 = vor.u32 %v616, %v747
      %v749 = vrot.slane %v625, 1
      %v750 = vor.u32 %v622, %v749
      %v751 = vrot.slane %v631, 1
      %v752 = vor.u32 %v628, %v751
      %v753 = vrot.slane %v637, 1
      %v754 = vor.u32 %v634, %v753
      %v755 = vrot.slane %v643, 1
      %v756 = vor.u32 %v640, %v755
      %v757 = vrot.slane %v649, 1
      %v758 = vor.u32 %v646, %v757
      %v759 = vrot.slane %v655, 1
      %v760 = vor.u32 %v652, %v759
      %v761 = vrot.slane %v661, 1
      %v762 = vor.u32 %v658, %v761
      %v763 = vrot.slane %v667, 1
      %v764 = vor.u32 %v664, %v763
      %v765 = vrot.slane %v673, 1
      %v766 = vor.u32 %v670, %v765
      %v767 = vrot.slane %v679, 1
      %v768 = vor.u32 %v676, %v767
      %v769 = vrot.slane %v685, 1
      %v770 = vor.u32 %v682, %v769
      %v771 = vrot.slane %v691, 1
      %v772 = vor.u32 %v688, %v771
      %v773 = vrot.slane %v697, 1
      %v774 = vor.u32 %v694, %v773
      %v775 = vrot.slane %v703, 1
      %v776 = vor.u32 %v700, %v775
      %v777 = vrot.slane %v709, 1
      %v778 = vor.u32 %v706, %v777
      %vm795 = vcmask 1047552
      %vm796 = vsmask.f32 7424
      %vm797 = vmand %vm795, %vm796
      %v798 = vsel %vm797, %v748, 0
      %v799 = vsel %vm797, %v750, 0
      %v800 = vsel %vm797, %v752, 0
      %v801 = vsel %vm797, %v754, 0
      %v802 = vsel %vm797, %v756, 0
      %v803 = vsel %vm797, %v758, 0
      %v804 = vsel %vm797, %v760, 0
      %v805 = vsel %vm797, %v762, 0
      %v806 = vsel %vm797, %v764, 0
      %v807 = vsel %vm797, %v766, 0
      %v808 = vsel %vm797, %v768, 0
      %v809 = vsel %vm797, %v770, 0
      %v810 = vsel %vm797, %v772, 0
      %v811 = vsel %vm797, %v774, 0
      %v812 = vsel %vm797, %v776, 0
      %v813 = vsel %vm797, %v778, 0
      %830 = vrot.lane.b32.xlu0 %v570, 8
      %v831 = vpop.permute.xlu0 %830
      %832 = vrot.lane.b32.xlu0 %v573, 8
      %v833 = vpop.permute.xlu0 %832
      %834 = vrot.lane.b32.xlu0 %v576, 8
      %v835 = vpop.permute.xlu0 %834
      %836 = vrot.lane.b32.xlu0 %v579, 8
      %v837 = vpop.permute.xlu0 %836
      %838 = vrot.lane.b32.xlu0 %v582, 8
      %v839 = vpop.permute.xlu0 %838
      %840 = vrot.lane.b32.xlu0 %v585, 8
      %v841 = vpop.permute.xlu0 %840
      %842 = vrot.lane.b32.xlu0 %v588, 8
      %v843 = vpop.permute.xlu0 %842
      %844 = vrot.lane.b32.xlu0 %v591, 8
      %v845 = vpop.permute.xlu0 %844
      %846 = vrot.lane.b32.xlu0 %v594, 8
      %v847 = vpop.permute.xlu0 %846
      %848 = vrot.lane.b32.xlu0 %v597, 8
      %v849 = vpop.permute.xlu0 %848
      %850 = vrot.lane.b32.xlu0 %v600, 8
      %v851 = vpop.permute.xlu0 %850
      %852 = vrot.lane.b32.xlu0 %v603, 8
      %v853 = vpop.permute.xlu0 %852
      %854 = vrot.lane.b32.xlu0 %v606, 8
      %v855 = vpop.permute.xlu0 %854
      %856 = vrot.lane.b32.xlu0 %v609, 8
      %v857 = vpop.permute.xlu0 %856
      %858 = vrot.lane.b32.xlu0 %v612, 8
      %v859 = vpop.permute.xlu0 %858
      %860 = vrot.lane.b32.xlu0 %v615, 8
      %v861 = vpop.permute.xlu0 %860
      %878 = vrot.lane.b32.xlu0 %v798, 16
      %v879 = vpop.permute.xlu0 %878
      %880 = vrot.lane.b32.xlu0 %v799, 16
      %v881 = vpop.permute.xlu0 %880
      %882 = vrot.lane.b32.xlu0 %v800, 16
      %v883 = vpop.permute.xlu0 %882
      %884 = vrot.lane.b32.xlu0 %v801, 16
      %v885 = vpop.permute.xlu0 %884
      %886 = vrot.lane.b32.xlu0 %v802, 16
      %v887 = vpop.permute.xlu0 %886
      %888 = vrot.lane.b32.xlu0 %v803, 16
      %v889 = vpop.permute.xlu0 %888
      %890 = vrot.lane.b32.xlu0 %v804, 16
      %v891 = vpop.permute.xlu0 %890
      %892 = vrot.lane.b32.xlu0 %v805, 16
      %v893 = vpop.permute.xlu0 %892
      %894 = vrot.lane.b32.xlu0 %v806, 16
      %v895 = vpop.permute.xlu0 %894
      %896 = vrot.lane.b32.xlu0 %v807, 16
      %v897 = vpop.permute.xlu0 %896
      %898 = vrot.lane.b32.xlu0 %v808, 16
      %v899 = vpop.permute.xlu0 %898
      %900 = vrot.lane.b32.xlu0 %v809, 16
      %v901 = vpop.permute.xlu0 %900
      %902 = vrot.lane.b32.xlu0 %v810, 16
      %v903 = vpop.permute.xlu0 %902
      %904 = vrot.lane.b32.xlu0 %v811, 16
      %v905 = vpop.permute.xlu0 %904
      %906 = vrot.lane.b32.xlu0 %v812, 16
      %v907 = vpop.permute.xlu0 %906
      %908 = vrot.lane.b32.xlu0 %v813, 16
      %v909 = vpop.permute.xlu0 %908
      %vm910 = vcmask 64512
      %v913 = vsel %vm910, %v731, %v831
      %v916 = vsel %vm910, %v732, %v833
      %v919 = vsel %vm910, %v733, %v835
      %v922 = vsel %vm910, %v734, %v837
      %v925 = vsel %vm910, %v735, %v839
      %v928 = vsel %vm910, %v736, %v841
      %v931 = vsel %vm910, %v737, %v843
      %v934 = vsel %vm910, %v738, %v845
      %v937 = vsel %vm910, %v739, %v847
      %v940 = vsel %vm910, %v740, %v849
      %v943 = vsel %vm910, %v741, %v851
      %v946 = vsel %vm910, %v742, %v853
      %v949 = vsel %vm910, %v743, %v855
      %v952 = vsel %vm910, %v744, %v857
      %v955 = vsel %vm910, %v745, %v859
      %v958 = vsel %vm910, %v746, %v861
      %vm959 = vcmask 130048
      %v961 = vsel %vm959, %v913, %v879
      %v963 = vsel %vm959, %v916, %v881
      %v965 = vsel %vm959, %v919, %v883
      %v967 = vsel %vm959, %v922, %v885
      %v969 = vsel %vm959, %v925, %v887
      %v971 = vsel %vm959, %v928, %v889
      %v973 = vsel %vm959, %v931, %v891
      %v975 = vsel %vm959, %v934, %v893
      %v977 = vsel %vm959, %v937, %v895
      %v979 = vsel %vm959, %v940, %v897
      %v981 = vsel %vm959, %v943, %v899
      %v983 = vsel %vm959, %v946, %v901
      %v985 = vsel %vm959, %v949, %v903
      %v987 = vsel %vm959, %v952, %v905
      %v989 = vsel %vm959, %v955, %v907
      %v991 = vsel %vm959, %v958, %v909
      %s992 = scalar_lea.vmem %s295, 12
      %v993 = vld [vmem:[%s992] sm:$0xf]
      %v994 = vld [vmem:[%s992 + $0x4] sm:$0xf]
      %v995 = vld [vmem:[%s992 + $0x8] sm:$0xf]
      %v999 = vunpack.c.l.b16 %v993
      %v1000 = vunpack.c.l.b16 %v994
      %v1001 = vunpack.c.l.b16 %v995
      %v1002 = vpack.c.b16 %v1000, %v999
      %v1003 = vpack.c.b16 %v1001, %v1001
      %vm1005 = vcmask 195584
      %v1006 = vsel %vm1005, %v961, 0
      %v1008 = vsel %vm1005, %v963, 0
      %v1010 = vsel %vm1005, %v965, 0
      %v1012 = vsel %vm1005, %v967, 0
      %v1014 = vsel %vm1005, %v969, 0
      %v1016 = vsel %vm1005, %v971, 0
      %v1018 = vsel %vm1005, %v973, 0
      %v1020 = vsel %vm1005, %v975, 0
      %v1022 = vsel %vm1005, %v977, 0
      %v1024 = vsel %vm1005, %v979, 0
      %v1026 = vsel %vm1005, %v981, 0
      %v1028 = vsel %vm1005, %v983, 0
      %v1030 = vsel %vm1005, %v985, 0
      %v1032 = vsel %vm1005, %v987, 0
      %v1034 = vsel %vm1005, %v989, 0
      %v1036 = vsel %vm1005, %v991, 0
      %vm1038 = vcmask 1043456
      %v1040 = vsel %vm1038, %v1003, 0
      %1042 = vmatprep.subr.bf16.mxu0 0
      %1043 = vmatpush1.bf16.msra.mxu0 %v1002
      %1044 = vmatprep.subr.bf16.mxu0 0
      %1045 = vmatpush1.bf16.msra.mxu0 %v1040
      %1046 = vmatprep.subr.bf16.mxu0 0
      %1047 = vmatpush1.bf16.msra.mxu0 0
      %1048 = vmatprep.subr.bf16.mxu0 0
      %1049 = vmatpush1.bf16.msra.mxu0 0
      %1050 = vmatprep.subr.bf16.mxu0 0
      %1051 = vmatpush1.bf16.msra.mxu0 0
      %1052 = vmatprep.subr.bf16.mxu0 0
      %1053 = vmatpush1.bf16.msra.mxu0 0
      %1054 = vmatprep.subr.bf16.mxu0 0
      %1055 = vmatpush1.bf16.msra.mxu0 0
      %1056 = vmatprep.subr.bf16.mxu0 0
      %1057 = vmatpush1.bf16.msra.mxu0 0
      %1058 = vmatprep.subr.bf16.mxu0 0
      %1059 = vmatpush1.bf16.msra.mxu0 0
      %1060 = vmatprep.subr.bf16.mxu0 0
      %1061 = vmatpush1.bf16.msra.mxu0 0
      %1062 = vmatprep.subr.bf16.mxu0 0
      %1063 = vmatpush1.bf16.msra.mxu0 0
      %1064 = vmatprep.subr.bf16.mxu0 0
      %1065 = vmatpush1.bf16.msra.mxu0 0
      %1066 = vmatprep.subr.bf16.mxu0 0
      %1067 = vmatpush1.bf16.msra.mxu0 0
      %1068 = vmatprep.subr.bf16.mxu0 0
      %1069 = vmatpush1.bf16.msra.mxu0 0
      %1070 = vmatprep.subr.bf16.mxu0 0
      %1071 = vmatpush1.bf16.msra.mxu0 0
      %1072 = vmatprep.subr.bf16.mxu0 0
      %1073 = vmatpush1.bf16.msra.mxu0 0
      %1074 = vmatprep.mubr.bf16.mxu0 0
      %1075 = vmatmul.mubr.bf16.gmra.mrb[0].mxu0 %v1006
      %v1076 = vpop.f32.mrb[0].mxu0
      %v1077 = vadd.f32 0.0, %v1076
      %v1078 = vpop.f32.mrb[0].mxu0
      %v1079 = vpop.f32.mrb[0].mxu0
      %v1080 = vadd.f32 0.0, %v1079
      %v1081 = vpop.f32.mrb[0].mxu0
      %1082 = vmatprep.mubr.bf16.mxu0 0
      %1083 = vmatmul.mubr.bf16.gmra.mrb[0].mxu0 %v1008
      %v1084 = vpop.f32.mrb[0].mxu0
      %v1085 = vadd.f32 0.0, %v1084
      %v1086 = vpop.f32.mrb[0].mxu0
      %v1087 = vpop.f32.mrb[0].mxu0
      %v1088 = vadd.f32 0.0, %v1087
      %v1089 = vpop.f32.mrb[0].mxu0
      %1090 = vmatprep.mubr.bf16.mxu0 0
      %1091 = vmatmul.mubr.bf16.gmra.mrb[0].mxu0 %v1010
      %v1092 = vpop.f32.mrb[0].mxu0
      %v1093 = vadd.f32 0.0, %v1092
      %v1094 = vpop.f32.mrb[0].mxu0
      %v1095 = vpop.f32.mrb[0].mxu0
      %v1096 = vadd.f32 0.0, %v1095
      %v1097 = vpop.f32.mrb[0].mxu0
      %1098 = vmatprep.mubr.bf16.mxu0 0
      %1099 = vmatmul.mubr.bf16.gmra.mrb[0].mxu0 %v1012
      %v1100 = vpop.f32.mrb[0].mxu0
      %v1101 = vadd.f32 0.0, %v1100
      %v1102 = vpop.f32.mrb[0].mxu0
      %v1103 = vpop.f32.mrb[0].mxu0
      %v1104 = vadd.f32 0.0, %v1103
      %v1105 = vpop.f32.mrb[0].mxu0
      %1106 = vmatprep.mubr.bf16.mxu0 0
      %1107 = vmatmul.mubr.bf16.gmra.mrb[0].mxu0 %v1014
      %v1108 = vpop.f32.mrb[0].mxu0
      %v1109 = vadd.f32 0.0, %v1108
      %v1110 = vpop.f32.mrb[0].mxu0
      %v1111 = vpop.f32.mrb[0].mxu0
      %v1112 = vadd.f32 0.0, %v1111
      %v1113 = vpop.f32.mrb[0].mxu0
      %1114 = vmatprep.mubr.bf16.mxu0 0
      %1115 = vmatmul.mubr.bf16.gmra.mrb[0].mxu0 %v1016
      %v1116 = vpop.f32.mrb[0].mxu0
      %v1117 = vadd.f32 0.0, %v1116
      %v1118 = vpop.f32.mrb[0].mxu0
      %v1119 = vpop.f32.mrb[0].mxu0
      %v1120 = vadd.f32 0.0, %v1119
      %v1121 = vpop.f32.mrb[0].mxu0
      %1122 = vmatprep.mubr.bf16.mxu0 0
      %1123 = vmatmul.mubr.bf16.gmra.mrb[0].mxu0 %v1018
      %v1124 = vpop.f32.mrb[0].mxu0
      %v1125 = vadd.f32 0.0, %v1124
      %v1126 = vpop.f32.mrb[0].mxu0
      %v1127 = vpop.f32.mrb[0].mxu0
      %v1128 = vadd.f32 0.0, %v1127
      %v1129 = vpop.f32.mrb[0].mxu0
      %1130 = vmatprep.mubr.bf16.mxu0 0
      %1131 = vmatmul.mubr.bf16.gmra.mrb[0].mxu0 %v1020
      %v1132 = vpop.f32.mrb[0].mxu0
      %v1133 = vadd.f32 0.0, %v1132
      %v1134 = vpop.f32.mrb[0].mxu0
      %v1135 = vpop.f32.mrb[0].mxu0
      %v1136 = vadd.f32 0.0, %v1135
      %v1137 = vpop.f32.mrb[0].mxu0
      %1138 = vmatprep.mubr.bf16.mxu0 0
      %1139 = vmatmul.mubr.bf16.gmra.mrb[0].mxu0 %v1022
      %v1140 = vpop.f32.mrb[0].mxu0
      %v1141 = vadd.f32 0.0, %v1140
      %v1142 = vpop.f32.mrb[0].mxu0
      %v1143 = vpop.f32.mrb[0].mxu0
      %v1144 = vadd.f32 0.0, %v1143
      %v1145 = vpop.f32.mrb[0].mxu0
      %1146 = vmatprep.mubr.bf16.mxu0 0
      %1147 = vmatmul.mubr.bf16.gmra.mrb[0].mxu0 %v1024
      %v1148 = vpop.f32.mrb[0].mxu0
      %v1149 = vadd.f32 0.0, %v1148
      %v1150 = vpop.f32.mrb[0].mxu0
      %v1151 = vpop.f32.mrb[0].mxu0
      %v1152 = vadd.f32 0.0, %v1151
      %v1153 = vpop.f32.mrb[0].mxu0
      %1154 = vmatprep.mubr.bf16.mxu0 0
      %1155 = vmatmul.mubr.bf16.gmra.mrb[0].mxu0 %v1026
      %v1156 = vpop.f32.mrb[0].mxu0
      %v1157 = vadd.f32 0.0, %v1156
      %v1158 = vpop.f32.mrb[0].mxu0
      %v1159 = vpop.f32.mrb[0].mxu0
      %v1160 = vadd.f32 0.0, %v1159
      %v1161 = vpop.f32.mrb[0].mxu0
      %1162 = vmatprep.mubr.bf16.mxu0 0
      %1163 = vmatmul.mubr.bf16.gmra.mrb[0].mxu0 %v1028
      %v1164 = vpop.f32.mrb[0].mxu0
      %v1165 = vadd.f32 0.0, %v1164
      %v1166 = vpop.f32.mrb[0].mxu0
      %v1167 = vpop.f32.mrb[0].mxu0
      %v1168 = vadd.f32 0.0, %v1167
      %v1169 = vpop.f32.mrb[0].mxu0
      %1170 = vmatprep.mubr.bf16.mxu0 0
      %1171 = vmatmul.mubr.bf16.gmra.mrb[0].mxu0 %v1030
      %v1172 = vpop.f32.mrb[0].mxu0
      %v1173 = vadd.f32 0.0, %v1172
      %v1174 = vpop.f32.mrb[0].mxu0
      %v1175 = vpop.f32.mrb[0].mxu0
      %v1176 = vadd.f32 0.0, %v1175
      %v1177 = vpop.f32.mrb[0].mxu0
      %1178 = vmatprep.mubr.bf16.mxu0 0
      %1179 = vmatmul.mubr.bf16.gmra.mrb[0].mxu0 %v1032
      %v1180 = vpop.f32.mrb[0].mxu0
      %v1181 = vadd.f32 0.0, %v1180
      %v1182 = vpop.f32.mrb[0].mxu0
      %v1183 = vpop.f32.mrb[0].mxu0
      %v1184 = vadd.f32 0.0, %v1183
      %v1185 = vpop.f32.mrb[0].mxu0
      %1186 = vmatprep.mubr.bf16.mxu0 0
      %1187 = vmatmul.mubr.bf16.gmra.mrb[0].mxu0 %v1034
      %v1188 = vpop.f32.mrb[0].mxu0
      %v1189 = vadd.f32 0.0, %v1188
      %v1190 = vpop.f32.mrb[0].mxu0
      %v1191 = vpop.f32.mrb[0].mxu0
      %v1192 = vadd.f32 0.0, %v1191
      %v1193 = vpop.f32.mrb[0].mxu0
      %1194 = vmatprep.mubr.bf16.mxu0 0
      %1195 = vmatmul.mubr.bf16.gmra.mrb[0].mxu0 %v1036
      %v1196 = vpop.f32.mrb[0].mxu0
      %v1197 = vadd.f32 0.0, %v1196
      %v1198 = vpop.f32.mrb[0].mxu0
      %v1199 = vpop.f32.mrb[0].mxu0
      %v1200 = vadd.f32 0.0, %v1199
      %v1201 = vpop.f32.mrb[0].mxu0
      %1202 = vdwg.mxu0
      %1203 = vst.msk [vmem:[#allocation2] sm:$0xff] %vm567, %v1077
      %1204 = vst.msk [vmem:[#allocation2 + $0x8] sm:$0xff] %vm567, %v1080
      %1205 = vst.msk [vmem:[#allocation2 + $0x10] sm:$0xff] %vm567, %v1085
      %1206 = vst.msk [vmem:[#allocation2 + $0x18] sm:$0xff] %vm567, %v1088
      %1207 = vst.msk [vmem:[#allocation2 + $0x20] sm:$0xff] %vm567, %v1093
      %1208 = vst.msk [vmem:[#allocation2 + $0x28] sm:$0xff] %vm567, %v1096
      %1209 = vst.msk [vmem:[#allocation2 + $0x30] sm:$0xff] %vm567, %v1101
      %1210 = vst.msk [vmem:[#allocation2 + $0x38] sm:$0xff] %vm567, %v1104
      %1211 = vst.msk [vmem:[#allocation2 + $0x40] sm:$0xff] %vm567, %v1109
      %1212 = vst.msk [vmem:[#allocation2 + $0x48] sm:$0xff] %vm567, %v1112
      %1213 = vst.msk [vmem:[#allocation2 + $0x50] sm:$0xff] %vm567, %v1117
      %1214 = vst.msk [vmem:[#allocation2 + $0x58] sm:$0xff] %vm567, %v1120
      %1215 = vst.msk [vmem:[#allocation2 + $0x60] sm:$0xff] %vm567, %v1125
      %1216 = vst.msk [vmem:[#allocation2 + $0x68] sm:$0xff] %vm567, %v1128
      %1217 = vst.msk [vmem:[#allocation2 + $0x70] sm:$0xff] %vm567, %v1133
      %1218 = vst.msk [vmem:[#allocation2 + $0x78] sm:$0xff] %vm567, %v1136
      %1219 = vst.msk [vmem:[#allocation2 + $0x80] sm:$0xff] %vm567, %v1141
      %1220 = vst.msk [vmem:[#allocation2 + $0x88] sm:$0xff] %vm567, %v1144
      %1221 = vst.msk [vmem:[#allocation2 + $0x90] sm:$0xff] %vm567, %v1149
      %1222 = vst.msk [vmem:[#allocation2 + $0x98] sm:$0xff] %vm567, %v1152
      %1223 = vst.msk [vmem:[#allocation2 + $0xa0] sm:$0xff] %vm567, %v1157
      %1224 = vst.msk [vmem:[#allocation2 + $0xa8] sm:$0xff] %vm567, %v1160
      %1225 = vst.msk [vmem:[#allocation2 + $0xb0] sm:$0xff] %vm567, %v1165
      %1226 = vst.msk [vmem:[#allocation2 + $0xb8] sm:$0xff] %vm567, %v1168
      %1227 = vst.msk [vmem:[#allocation2 + $0xc0] sm:$0xff] %vm567, %v1173
      %1228 = vst.msk [vmem:[#allocation2 + $0xc8] sm:$0xff] %vm567, %v1176
      %1229 = vst.msk [vmem:[#allocation2 + $0xd0] sm:$0xff] %vm567, %v1181
      %1230 = vst.msk [vmem:[#allocation2 + $0xd8] sm:$0xff] %vm567, %v1184
      %1231 = vst.msk [vmem:[#allocation2 + $0xe0] sm:$0xff] %vm567, %v1189
      %1232 = vst.msk [vmem:[#allocation2 + $0xe8] sm:$0xff] %vm567, %v1192
      %1233 = vst.msk [vmem:[#allocation2 + $0xf0] sm:$0xff] %vm567, %v1197
      %1234 = vst.msk [vmem:[#allocation2 + $0xf8] sm:$0xff] %vm567, %v1200
      %v1235 = vld [vmem:[#allocation2 + $0x10] sm:$0xff]
      %v1236 = vld [vmem:[#allocation2 + $0x18] sm:$0xff]
      %v1237 = vld [vmem:[#allocation2 + $0x20] sm:$0xff]
      %v1238 = vld [vmem:[#allocation2 + $0x28] sm:$0xff]
      %v1239 = vld [vmem:[#allocation2 + $0x30] sm:$0xff]
      %v1240 = vld [vmem:[#allocation2 + $0x38] sm:$0xff]
      %v1241 = vld [vmem:[#allocation2 + $0x40] sm:$0xff]
      %v1242 = vld [vmem:[#allocation2 + $0x48] sm:$0xff]
      %v1243 = vld [vmem:[#allocation2 + $0x50] sm:$0xff]
      %v1244 = vld [vmem:[#allocation2 + $0x58] sm:$0xff]
      %v1245 = vld [vmem:[#allocation2 + $0x60] sm:$0xff]
      %v1246 = vld [vmem:[#allocation2 + $0x68] sm:$0xff]
      %v1247 = vld [vmem:[#allocation2 + $0x70] sm:$0xff]
      %v1248 = vld [vmem:[#allocation2 + $0x78] sm:$0xff]
      %v1249 = vld [vmem:[#allocation2 + $0x80] sm:$0xff]
      %v1250 = vld [vmem:[#allocation2 + $0x88] sm:$0xff]
      %v1251 = vld [vmem:[#allocation2 + $0x90] sm:$0xff]
      %v1252 = vld [vmem:[#allocation2 + $0x98] sm:$0xff]
      %v1253 = vld [vmem:[#allocation2 + $0xa0] sm:$0xff]
      %v1254 = vld [vmem:[#allocation2 + $0xa8] sm:$0xff]
      %v1255 = vld [vmem:[#allocation2 + $0xb0] sm:$0xff]
      %v1256 = vld [vmem:[#allocation2 + $0xb8] sm:$0xff]
      %v1257 = vld [vmem:[#allocation2 + $0xc0] sm:$0xff]
      %v1258 = vld [vmem:[#allocation2 + $0xc8] sm:$0xff]
      %v1259 = vld [vmem:[#allocation2 + $0xd0] sm:$0xff]
      %v1260 = vld [vmem:[#allocation2 + $0xd8] sm:$0xff]
      %v1261 = vld [vmem:[#allocation2 + $0xe0] sm:$0xff]
      %v1262 = vld [vmem:[#allocation2 + $0xe8] sm:$0xff]
      %v1263 = vld [vmem:[#allocation2 + $0xf0] sm:$0xff]
      %v1264 = vld [vmem:[#allocation2 + $0xf8] sm:$0xff]
      %v1265 = vld [vmem:[%s295] sm:$0xf]
      %v1266 = vld [vmem:[%s295 + $0x4] sm:$0xf]
      %v1267 = vld [vmem:[%s295 + $0x8] sm:$0xf]
      %v1271 = vunpack.c.l.b16 %v1265
      %v1272 = vunpack.c.l.b16 %v1266
      %v1273 = vunpack.c.l.b16 %v1267
      %v1274 = vpack.c.b16 %v1272, %v1271
      %v1275 = vpack.c.b16 %v1273, %v1273
      %v1278 = vsel %vm1038, %v1275, 0
      %1280 = vmatprep.subr.bf16.mxu0 0
      %1281 = vmatpush1.bf16.msra.mxu0 %v1274
      %1282 = vmatprep.subr.bf16.mxu0 0
      %1283 = vmatpush1.bf16.msra.mxu0 %v1278
      %1284 = vmatprep.subr.bf16.mxu0 0
      %1285 = vmatpush1.bf16.msra.mxu0 0
      %1286 = vmatprep.subr.bf16.mxu0 0
      %1287 = vmatpush1.bf16.msra.mxu0 0
      %1288 = vmatprep.subr.bf16.mxu0 0
      %1289 = vmatpush1.bf16.msra.mxu0 0
      %1290 = vmatprep.subr.bf16.mxu0 0
      %1291 = vmatpush1.bf16.msra.mxu0 0
      %1292 = vmatprep.subr.bf16.mxu0 0
      %1293 = vmatpush1.bf16.msra.mxu0 0
      %1294 = vmatprep.subr.bf16.mxu0 0
      %1295 = vmatpush1.bf16.msra.mxu0 0
      %1296 = vmatprep.subr.bf16.mxu0 0
      %1297 = vmatpush1.bf16.msra.mxu0 0
      %1298 = vmatprep.subr.bf16.mxu0 0
      %1299 = vmatpush1.bf16.msra.mxu0 0
      %1300 = vmatprep.subr.bf16.mxu0 0
      %1301 = vmatpush1.bf16.msra.mxu0 0
      %1302 = vmatprep.subr.bf16.mxu0 0
      %1303 = vmatpush1.bf16.msra.mxu0 0
      %1304 = vmatprep.subr.bf16.mxu0 0
      %1305 = vmatpush1.bf16.msra.mxu0 0
      %1306 = vmatprep.subr.bf16.mxu0 0
      %1307 = vmatpush1.bf16.msra.mxu0 0
      %1308 = vmatprep.subr.bf16.mxu0 0
      %1309 = vmatpush1.bf16.msra.mxu0 0
      %1310 = vmatprep.subr.bf16.mxu0 0
      %1311 = vmatpush1.bf16.msra.mxu0 0
      %1312 = vmatprep.mubr.bf16.mxu0 0
      %1313 = vmatmul.mubr.bf16.gmra.mrb[0].mxu0 %v1006
      %v1314 = vpop.f32.mrb[0].mxu0
      %v1315 = vadd.f32 0.0, %v1314
      %v1316 = vpop.f32.mrb[0].mxu0
      %v1317 = vpop.f32.mrb[0].mxu0
      %v1318 = vadd.f32 0.0, %v1317
      %v1319 = vpop.f32.mrb[0].mxu0
      %1320 = vmatprep.mubr.bf16.mxu0 0
      %1321 = vmatmul.mubr.bf16.gmra.mrb[0].mxu0 %v1008
      %v1322 = vpop.f32.mrb[0].mxu0
      %v1323 = vadd.f32 0.0, %v1322
      %v1324 = vpop.f32.mrb[0].mxu0
      %v1325 = vpop.f32.mrb[0].mxu0
      %v1326 = vadd.f32 0.0, %v1325
      %v1327 = vpop.f32.mrb[0].mxu0
      %1328 = vmatprep.mubr.bf16.mxu0 0
      %1329 = vmatmul.mubr.bf16.gmra.mrb[0].mxu0 %v1010
      %v1330 = vpop.f32.mrb[0].mxu0
      %v1331 = vadd.f32 0.0, %v1330
      %v1332 = vpop.f32.mrb[0].mxu0
      %v1333 = vpop.f32.mrb[0].mxu0
      %v1334 = vadd.f32 0.0, %v1333
      %v1335 = vpop.f32.mrb[0].mxu0
      %1336 = vmatprep.mubr.bf16.mxu0 0
      %1337 = vmatmul.mubr.bf16.gmra.mrb[0].mxu0 %v1012
      %v1338 = vpop.f32.mrb[0].mxu0
      %v1339 = vadd.f32 0.0, %v1338
      %v1340 = vpop.f32.mrb[0].mxu0
      %v1341 = vpop.f32.mrb[0].mxu0
      %v1342 = vadd.f32 0.0, %v1341
      %v1343 = vpop.f32.mrb[0].mxu0
      %1344 = vmatprep.mubr.bf16.mxu0 0
      %1345 = vmatmul.mubr.bf16.gmra.mrb[0].mxu0 %v1014
      %v1346 = vpop.f32.mrb[0].mxu0
      %v1347 = vadd.f32 0.0, %v1346
      %v1348 = vpop.f32.mrb[0].mxu0
      %v1349 = vpop.f32.mrb[0].mxu0
      %v1350 = vadd.f32 0.0, %v1349
      %v1351 = vpop.f32.mrb[0].mxu0
      %1352 = vmatprep.mubr.bf16.mxu0 0
      %1353 = vmatmul.mubr.bf16.gmra.mrb[0].mxu0 %v1016
      %v1354 = vpop.f32.mrb[0].mxu0
      %v1355 = vadd.f32 0.0, %v1354
      %v1356 = vpop.f32.mrb[0].mxu0
      %v1357 = vpop.f32.mrb[0].mxu0
      %v1358 = vadd.f32 0.0, %v1357
      %v1359 = vpop.f32.mrb[0].mxu0
      %1360 = vmatprep.mubr.bf16.mxu0 0
      %1361 = vmatmul.mubr.bf16.gmra.mrb[0].mxu0 %v1018
      %v1362 = vpop.f32.mrb[0].mxu0
      %v1363 = vadd.f32 0.0, %v1362
      %v1364 = vpop.f32.mrb[0].mxu0
      %v1365 = vpop.f32.mrb[0].mxu0
      %v1366 = vadd.f32 0.0, %v1365
      %v1367 = vpop.f32.mrb[0].mxu0
      %1368 = vmatprep.mubr.bf16.mxu0 0
      %1369 = vmatmul.mubr.bf16.gmra.mrb[0].mxu0 %v1020
      %v1370 = vpop.f32.mrb[0].mxu0
      %v1371 = vadd.f32 0.0, %v1370
      %v1372 = vpop.f32.mrb[0].mxu0
      %v1373 = vpop.f32.mrb[0].mxu0
      %v1374 = vadd.f32 0.0, %v1373
      %v1375 = vpop.f32.mrb[0].mxu0
      %1376 = vmatprep.mubr.bf16.mxu0 0
      %1377 = vmatmul.mubr.bf16.gmra.mrb[0].mxu0 %v1022
      %v1378 = vpop.f32.mrb[0].mxu0
      %v1379 = vadd.f32 0.0, %v1378
      %v1380 = vpop.f32.mrb[0].mxu0
      %v1381 = vpop.f32.mrb[0].mxu0
      %v1382 = vadd.f32 0.0, %v1381
      %v1383 = vpop.f32.mrb[0].mxu0
      %1384 = vmatprep.mubr.bf16.mxu0 0
      %1385 = vmatmul.mubr.bf16.gmra.mrb[0].mxu0 %v1024
      %v1386 = vpop.f32.mrb[0].mxu0
      %v1387 = vadd.f32 0.0, %v1386
      %v1388 = vpop.f32.mrb[0].mxu0
      %v1389 = vpop.f32.mrb[0].mxu0
      %v1390 = vadd.f32 0.0, %v1389
      %v1391 = vpop.f32.mrb[0].mxu0
      %1392 = vmatprep.mubr.bf16.mxu0 0
      %1393 = vmatmul.mubr.bf16.gmra.mrb[0].mxu0 %v1026
      %v1394 = vpop.f32.mrb[0].mxu0
      %v1395 = vadd.f32 0.0, %v1394
      %v1396 = vpop.f32.mrb[0].mxu0
      %v1397 = vpop.f32.mrb[0].mxu0
      %v1398 = vadd.f32 0.0, %v1397
      %v1399 = vpop.f32.mrb[0].mxu0
      %1400 = vmatprep.mubr.bf16.mxu0 0
      %1401 = vmatmul.mubr.bf16.gmra.mrb[0].mxu0 %v1028
      %v1402 = vpop.f32.mrb[0].mxu0
      %v1403 = vadd.f32 0.0, %v1402
      %v1404 = vpop.f32.mrb[0].mxu0
      %v1405 = vpop.f32.mrb[0].mxu0
      %v1406 = vadd.f32 0.0, %v1405
      %v1407 = vpop.f32.mrb[0].mxu0
      %1408 = vmatprep.mubr.bf16.mxu0 0
      %1409 = vmatmul.mubr.bf16.gmra.mrb[0].mxu0 %v1030
      %v1410 = vpop.f32.mrb[0].mxu0
      %v1411 = vadd.f32 0.0, %v1410
      %v1412 = vpop.f32.mrb[0].mxu0
      %v1413 = vpop.f32.mrb[0].mxu0
      %v1414 = vadd.f32 0.0, %v1413
      %v1415 = vpop.f32.mrb[0].mxu0
      %1416 = vmatprep.mubr.bf16.mxu0 0
      %1417 = vmatmul.mubr.bf16.gmra.mrb[0].mxu0 %v1032
      %v1418 = vpop.f32.mrb[0].mxu0
      %v1419 = vadd.f32 0.0, %v1418
      %v1420 = vpop.f32.mrb[0].mxu0
      %v1421 = vpop.f32.mrb[0].mxu0
      %v1422 = vadd.f32 0.0, %v1421
      %v1423 = vpop.f32.mrb[0].mxu0
      %1424 = vmatprep.mubr.bf16.mxu0 0
      %1425 = vmatmul.mubr.bf16.gmra.mrb[0].mxu0 %v1034
      %v1426 = vpop.f32.mrb[0].mxu0
      %v1427 = vadd.f32 0.0, %v1426
      %v1428 = vpop.f32.mrb[0].mxu0
      %v1429 = vpop.f32.mrb[0].mxu0
      %v1430 = vadd.f32 0.0, %v1429
      %v1431 = vpop.f32.mrb[0].mxu0
      %1432 = vdwg.mxu0
      %v1433 = vadd.f32 %v1235, %v1315
      %v1434 = vadd.f32 %v1236, %v1318
      %v1435 = vadd.f32 %v1237, %v1323
      %v1436 = vadd.f32 %v1238, %v1326
      %v1437 = vadd.f32 %v1239, %v1331
      %v1438 = vadd.f32 %v1240, %v1334
      %v1439 = vadd.f32 %v1241, %v1339
      %v1440 = vadd.f32 %v1242, %v1342
      %v1441 = vadd.f32 %v1243, %v1347
      %v1442 = vadd.f32 %v1244, %v1350
      %v1443 = vadd.f32 %v1245, %v1355
      %v1444 = vadd.f32 %v1246, %v1358
      %v1445 = vadd.f32 %v1247, %v1363
      %v1446 = vadd.f32 %v1248, %v1366
      %v1447 = vadd.f32 %v1249, %v1371
      %v1448 = vadd.f32 %v1250, %v1374
      %v1449 = vadd.f32 %v1251, %v1379
      %v1450 = vadd.f32 %v1252, %v1382
      %v1451 = vadd.f32 %v1253, %v1387
      %v1452 = vadd.f32 %v1254, %v1390
      %v1453 = vadd.f32 %v1255, %v1395
      %v1454 = vadd.f32 %v1256, %v1398
      %v1455 = vadd.f32 %v1257, %v1403
      %v1456 = vadd.f32 %v1258, %v1406
      %v1457 = vadd.f32 %v1259, %v1411
      %v1458 = vadd.f32 %v1260, %v1414
      %v1459 = vadd.f32 %v1261, %v1419
      %v1460 = vadd.f32 %v1262, %v1422
      %v1461 = vadd.f32 %v1263, %v1427
      %v1462 = vadd.f32 %v1264, %v1430
      %1463 = vst.msk [vmem:[#allocation2 + $0x10] sm:$0xff] %vm567, %v1433
      %1464 = vst.msk [vmem:[#allocation2 + $0x18] sm:$0xff] %vm567, %v1434
      %1465 = vst.msk [vmem:[#allocation2 + $0x20] sm:$0xff] %vm567, %v1435
      %1466 = vst.msk [vmem:[#allocation2 + $0x28] sm:$0xff] %vm567, %v1436
      %1467 = vst.msk [vmem:[#allocation2 + $0x30] sm:$0xff] %vm567, %v1437
      %1468 = vst.msk [vmem:[#allocation2 + $0x38] sm:$0xff] %vm567, %v1438
      %1469 = vst.msk [vmem:[#allocation2 + $0x40] sm:$0xff] %vm567, %v1439
      %1470 = vst.msk [vmem:[#allocation2 + $0x48] sm:$0xff] %vm567, %v1440
      %1471 = vst.msk [vmem:[#allocation2 + $0x50] sm:$0xff] %vm567, %v1441
      %1472 = vst.msk [vmem:[#allocation2 + $0x58] sm:$0xff] %vm567, %v1442
      %1473 = vst.msk [vmem:[#allocation2 + $0x60] sm:$0xff] %vm567, %v1443
      %1474 = vst.msk [vmem:[#allocation2 + $0x68] sm:$0xff] %vm567, %v1444
      %1475 = vst.msk [vmem:[#allocation2 + $0x70] sm:$0xff] %vm567, %v1445
      %1476 = vst.msk [vmem:[#allocation2 + $0x78] sm:$0xff] %vm567, %v1446
      %1477 = vst.msk [vmem:[#allocation2 + $0x80] sm:$0xff] %vm567, %v1447
      %1478 = vst.msk [vmem:[#allocation2 + $0x88] sm:$0xff] %vm567, %v1448
      %1479 = vst.msk [vmem:[#allocation2 + $0x90] sm:$0xff] %vm567, %v1449
      %1480 = vst.msk [vmem:[#allocation2 + $0x98] sm:$0xff] %vm567, %v1450
      %1481 = vst.msk [vmem:[#allocation2 + $0xa0] sm:$0xff] %vm567, %v1451
      %1482 = vst.msk [vmem:[#allocation2 + $0xa8] sm:$0xff] %vm567, %v1452
      %1483 = vst.msk [vmem:[#allocation2 + $0xb0] sm:$0xff] %vm567, %v1453
      %1484 = vst.msk [vmem:[#allocation2 + $0xb8] sm:$0xff] %vm567, %v1454
      %1485 = vst.msk [vmem:[#allocation2 + $0xc0] sm:$0xff] %vm567, %v1455
      %1486 = vst.msk [vmem:[#allocation2 + $0xc8] sm:$0xff] %vm567, %v1456
      %1487 = vst.msk [vmem:[#allocation2 + $0xd0] sm:$0xff] %vm567, %v1457
      %1488 = vst.msk [vmem:[#allocation2 + $0xd8] sm:$0xff] %vm567, %v1458
      %1489 = vst.msk [vmem:[#allocation2 + $0xe0] sm:$0xff] %vm567, %v1459
      %1490 = vst.msk [vmem:[#allocation2 + $0xe8] sm:$0xff] %vm567, %v1460
      %1491 = vst.msk [vmem:[#allocation2 + $0xf0] sm:$0xff] %vm567, %v1461
      %1492 = vst.msk [vmem:[#allocation2 + $0xf8] sm:$0xff] %vm567, %v1462
      %v1493 = vld [vmem:[#allocation2] sm:$0xff]
      %v1494 = vld [vmem:[#allocation2 + $0x8] sm:$0xff]
      %v1495 = vld [vmem:[#allocation2 + $0x10] sm:$0xff]
      %v1496 = vld [vmem:[#allocation2 + $0x18] sm:$0xff]
      %v1497 = vld [vmem:[#allocation2 + $0x20] sm:$0xff]
      %v1498 = vld [vmem:[#allocation2 + $0x28] sm:$0xff]
      %v1499 = vld [vmem:[#allocation2 + $0x30] sm:$0xff]
      %v1500 = vld [vmem:[#allocation2 + $0x38] sm:$0xff]
      %v1501 = vld [vmem:[#allocation2 + $0x40] sm:$0xff]
      %v1502 = vld [vmem:[#allocation2 + $0x48] sm:$0xff]
      %v1503 = vld [vmem:[#allocation2 + $0x50] sm:$0xff]
      %v1504 = vld [vmem:[#allocation2 + $0x58] sm:$0xff]
      %v1505 = vld [vmem:[#allocation2 + $0x60] sm:$0xff]
      %v1506 = vld [vmem:[#allocation2 + $0x68] sm:$0xff]
      %v1507 = vld [vmem:[#allocation2 + $0x70] sm:$0xff]
      %v1508 = vld [vmem:[#allocation2 + $0x78] sm:$0xff]
      %v1509 = vld [vmem:[#allocation2 + $0x80] sm:$0xff]
      %v1510 = vld [vmem:[#allocation2 + $0x88] sm:$0xff]
      %v1511 = vld [vmem:[#allocation2 + $0x90] sm:$0xff]
      %v1512 = vld [vmem:[#allocation2 + $0x98] sm:$0xff]
      %v1513 = vld [vmem:[#allocation2 + $0xa0] sm:$0xff]
      %v1514 = vld [vmem:[#allocation2 + $0xa8] sm:$0xff]
      %v1515 = vld [vmem:[#allocation2 + $0xb0] sm:$0xff]
      %v1516 = vld [vmem:[#allocation2 + $0xb8] sm:$0xff]
      %v1517 = vld [vmem:[#allocation2 + $0xc0] sm:$0xff]
      %v1518 = vld [vmem:[#allocation2 + $0xc8] sm:$0xff]
      %v1519 = vld [vmem:[#allocation2 + $0xd0] sm:$0xff]
      %v1520 = vld [vmem:[#allocation2 + $0xd8] sm:$0xff]
      %v1521 = vld [vmem:[#allocation2 + $0xe0] sm:$0xff]
      %v1522 = vld [vmem:[#allocation2 + $0xe8] sm:$0xff]
      %s1523 = scalar_lea.vmem %s295, 24
      %v1524 = vld [vmem:[%s1523] sm:$0xf]
      %v1525 = vld [vmem:[%s1523 + $0x4] sm:$0xf]
      %v1526 = vld [vmem:[%s1523 + $0x8] sm:$0xf]
      %v1530 = vunpack.c.l.b16 %v1524
      %v1531 = vunpack.c.l.b16 %v1525
      %v1532 = vunpack.c.l.b16 %v1526
      %v1533 = vpack.c.b16 %v1531, %v1530
      %v1534 = vpack.c.b16 %v1532, %v1532
      %v1537 = vsel %vm1038, %v1534, 0
      %1539 = vmatprep.subr.bf16.mxu0 0
      %1540 = vmatpush1.bf16.msra.mxu0 %v1533
      %1541 = vmatprep.subr.bf16.mxu0 0
      %1542 = vmatpush1.bf16.msra.mxu0 %v1537
      %1543 = vmatprep.subr.bf16.mxu0 0
      %1544 = vmatpush1.bf16.msra.mxu0 0
      %1545 = vmatprep.subr.bf16.mxu0 0
      %1546 = vmatpush1.bf16.msra.mxu0 0
      %1547 = vmatprep.subr.bf16.mxu0 0
      %1548 = vmatpush1.bf16.msra.mxu0 0
      %1549 = vmatprep.subr.bf16.mxu0 0
      %1550 = vmatpush1.bf16.msra.mxu0 0
      %1551 = vmatprep.subr.bf16.mxu0 0
      %1552 = vmatpush1.bf16.msra.mxu0 0
      %1553 = vmatprep.subr.bf16.mxu0 0
      %1554 = vmatpush1.bf16.msra.mxu0 0
      %1555 = vmatprep.subr.bf16.mxu0 0
      %1556 = vmatpush1.bf16.msra.mxu0 0
      %1557 = vmatprep.subr.bf16.mxu0 0
      %1558 = vmatpush1.bf16.msra.mxu0 0
      %1559 = vmatprep.subr.bf16.mxu0 0
      %1560 = vmatpush1.bf16.msra.mxu0 0
      %1561 = vmatprep.subr.bf16.mxu0 0
      %1562 = vmatpush1.bf16.msra.mxu0 0
      %1563 = vmatprep.subr.bf16.mxu0 0
      %1564 = vmatpush1.bf16.msra.mxu0 0
      %1565 = vmatprep.subr.bf16.mxu0 0
      %1566 = vmatpush1.bf16.msra.mxu0 0
      %1567 = vmatprep.subr.bf16.mxu0 0
      %1568 = vmatpush1.bf16.msra.mxu0 0
      %1569 = vmatprep.subr.bf16.mxu0 0
      %1570 = vmatpush1.bf16.msra.mxu0 0
      %1571 = vmatprep.mubr.bf16.mxu0 0
      %1572 = vmatmul.mubr.bf16.gmra.mrb[0].mxu0 %v1008
      %v1573 = vpop.f32.mrb[0].mxu0
      %v1574 = vadd.f32 0.0, %v1573
      %v1575 = vpop.f32.mrb[0].mxu0
      %v1576 = vpop.f32.mrb[0].mxu0
      %v1577 = vadd.f32 0.0, %v1576
      %v1578 = vpop.f32.mrb[0].mxu0
      %1579 = vmatprep.mubr.bf16.mxu0 0
      %1580 = vmatmul.mubr.bf16.gmra.mrb[0].mxu0 %v1010
      %v1581 = vpop.f32.mrb[0].mxu0
      %v1582 = vadd.f32 0.0, %v1581
      %v1583 = vpop.f32.mrb[0].mxu0
      %v1584 = vpop.f32.mrb[0].mxu0
      %v1585 = vadd.f32 0.0, %v1584
      %v1586 = vpop.f32.mrb[0].mxu0
      %1587 = vmatprep.mubr.bf16.mxu0 0
      %1588 = vmatmul.mubr.bf16.gmra.mrb[0].mxu0 %v1012
      %v1589 = vpop.f32.mrb[0].mxu0
      %v1590 = vadd.f32 0.0, %v1589
      %v1591 = vpop.f32.mrb[0].mxu0
      %v1592 = vpop.f32.mrb[0].mxu0
      %v1593 = vadd.f32 0.0, %v1592
      %v1594 = vpop.f32.mrb[0].mxu0
      %1595 = vmatprep.mubr.bf16.mxu0 0
      %1596 = vmatmul.mubr.bf16.gmra.mrb[0].mxu0 %v1014
      %v1597 = vpop.f32.mrb[0].mxu0
      %v1598 = vadd.f32 0.0, %v1597
      %v1599 = vpop.f32.mrb[0].mxu0
      %v1600 = vpop.f32.mrb[0].mxu0
      %v1601 = vadd.f32 0.0, %v1600
      %v1602 = vpop.f32.mrb[0].mxu0
      %1603 = vmatprep.mubr.bf16.mxu0 0
      %1604 = vmatmul.mubr.bf16.gmra.mrb[0].mxu0 %v1016
      %v1605 = vpop.f32.mrb[0].mxu0
      %v1606 = vadd.f32 0.0, %v1605
      %v1607 = vpop.f32.mrb[0].mxu0
      %v1608 = vpop.f32.mrb[0].mxu0
      %v1609 = vadd.f32 0.0, %v1608
      %v1610 = vpop.f32.mrb[0].mxu0
      %1611 = vmatprep.mubr.bf16.mxu0 0
      %1612 = vmatmul.mubr.bf16.gmra.mrb[0].mxu0 %v1018
      %v1613 = vpop.f32.mrb[0].mxu0
      %v1614 = vadd.f32 0.0, %v1613
      %v1615 = vpop.f32.mrb[0].mxu0
      %v1616 = vpop.f32.mrb[0].mxu0
      %v1617 = vadd.f32 0.0, %v1616
      %v1618 = vpop.f32.mrb[0].mxu0
      %1619 = vmatprep.mubr.bf16.mxu0 0
      %1620 = vmatmul.mubr.bf16.gmra.mrb[0].mxu0 %v1020
      %v1621 = vpop.f32.mrb[0].mxu0
      %v1622 = vadd.f32 0.0, %v1621
      %v1623 = vpop.f32.mrb[0].mxu0
      %v1624 = vpop.f32.mrb[0].mxu0
      %v1625 = vadd.f32 0.0, %v1624
      %v1626 = vpop.f32.mrb[0].mxu0
      %1627 = vmatprep.mubr.bf16.mxu0 0
      %1628 = vmatmul.mubr.bf16.gmra.mrb[0].mxu0 %v1022
      %v1629 = vpop.f32.mrb[0].mxu0
      %v1630 = vadd.f32 0.0, %v1629
      %v1631 = vpop.f32.mrb[0].mxu0
      %v1632 = vpop.f32.mrb[0].mxu0
      %v1633 = vadd.f32 0.0, %v1632
      %v1634 = vpop.f32.mrb[0].mxu0
      %1635 = vmatprep.mubr.bf16.mxu0 0
      %1636 = vmatmul.mubr.bf16.gmra.mrb[0].mxu0 %v1024
      %v1637 = vpop.f32.mrb[0].mxu0
      %v1638 = vadd.f32 0.0, %v1637
      %v1639 = vpop.f32.mrb[0].mxu0
      %v1640 = vpop.f32.mrb[0].mxu0
      %v1641 = vadd.f32 0.0, %v1640
      %v1642 = vpop.f32.mrb[0].mxu0
      %1643 = vmatprep.mubr.bf16.mxu0 0
      %1644 = vmatmul.mubr.bf16.gmra.mrb[0].mxu0 %v1026
      %v1645 = vpop.f32.mrb[0].mxu0
      %v1646 = vadd.f32 0.0, %v1645
      %v1647 = vpop.f32.mrb[0].mxu0
      %v1648 = vpop.f32.mrb[0].mxu0
      %v1649 = vadd.f32 0.0, %v1648
      %v1650 = vpop.f32.mrb[0].mxu0
      %1651 = vmatprep.mubr.bf16.mxu0 0
      %1652 = vmatmul.mubr.bf16.gmra.mrb[0].mxu0 %v1028
      %v1653 = vpop.f32.mrb[0].mxu0
      %v1654 = vadd.f32 0.0, %v1653
      %v1655 = vpop.f32.mrb[0].mxu0
      %v1656 = vpop.f32.mrb[0].mxu0
      %v1657 = vadd.f32 0.0, %v1656
      %v1658 = vpop.f32.mrb[0].mxu0
      %1659 = vmatprep.mubr.bf16.mxu0 0
      %1660 = vmatmul.mubr.bf16.gmra.mrb[0].mxu0 %v1030
      %v1661 = vpop.f32.mrb[0].mxu0
      %v1662 = vadd.f32 0.0, %v1661
      %v1663 = vpop.f32.mrb[0].mxu0
      %v1664 = vpop.f32.mrb[0].mxu0
      %v1665 = vadd.f32 0.0, %v1664
      %v1666 = vpop.f32.mrb[0].mxu0
      %1667 = vmatprep.mubr.bf16.mxu0 0
      %1668 = vmatmul.mubr.bf16.gmra.mrb[0].mxu0 %v1032
      %v1669 = vpop.f32.mrb[0].mxu0
      %v1670 = vadd.f32 0.0, %v1669
      %v1671 = vpop.f32.mrb[0].mxu0
      %v1672 = vpop.f32.mrb[0].mxu0
      %v1673 = vadd.f32 0.0, %v1672
      %v1674 = vpop.f32.mrb[0].mxu0
      %1675 = vmatprep.mubr.bf16.mxu0 0
      %1676 = vmatmul.mubr.bf16.gmra.mrb[0].mxu0 %v1034
      %v1677 = vpop.f32.mrb[0].mxu0
      %v1678 = vadd.f32 0.0, %v1677
      %v1679 = vpop.f32.mrb[0].mxu0
      %v1680 = vpop.f32.mrb[0].mxu0
      %v1681 = vadd.f32 0.0, %v1680
      %v1682 = vpop.f32.mrb[0].mxu0
      %1683 = vmatprep.mubr.bf16.mxu0 0
      %1684 = vmatmul.mubr.bf16.gmra.mrb[0].mxu0 %v1036
      %v1685 = vpop.f32.mrb[0].mxu0
      %v1686 = vadd.f32 0.0, %v1685
      %v1687 = vpop.f32.mrb[0].mxu0
      %v1688 = vpop.f32.mrb[0].mxu0
      %v1689 = vadd.f32 0.0, %v1688
      %v1690 = vpop.f32.mrb[0].mxu0
      %1691 = vdwg.mxu0
      %v1692 = vadd.f32 %v1493, %v1574
      %v1693 = vadd.f32 %v1494, %v1577
      %v1694 = vadd.f32 %v1495, %v1582
      %v1695 = vadd.f32 %v1496, %v1585
      %v1696 = vadd.f32 %v1497, %v1590
      %v1697 = vadd.f32 %v1498, %v1593
      %v1698 = vadd.f32 %v1499, %v1598
      %v1699 = vadd.f32 %v1500, %v1601
      %v1700 = vadd.f32 %v1501, %v1606
      %v1701 = vadd.f32 %v1502, %v1609
      %v1702 = vadd.f32 %v1503, %v1614
      %v1703 = vadd.f32 %v1504, %v1617
      %v1704 = vadd.f32 %v1505, %v1622
      %v1705 = vadd.f32 %v1506, %v1625
      %v1706 = vadd.f32 %v1507, %v1630
      %v1707 = vadd.f32 %v1508, %v1633
      %v1708 = vadd.f32 %v1509, %v1638
      %v1709 = vadd.f32 %v1510, %v1641
      %v1710 = vadd.f32 %v1511, %v1646
      %v1711 = vadd.f32 %v1512, %v1649
      %v1712 = vadd.f32 %v1513, %v1654
      %v1713 = vadd.f32 %v1514, %v1657
      %v1714 = vadd.f32 %v1515, %v1662
      %v1715 = vadd.f32 %v1516, %v1665
      %v1716 = vadd.f32 %v1517, %v1670
      %v1717 = vadd.f32 %v1518, %v1673
      %v1718 = vadd.f32 %v1519, %v1678
      %v1719 = vadd.f32 %v1520, %v1681
      %v1720 = vadd.f32 %v1521, %v1686
      %v1721 = vadd.f32 %v1522, %v1689
      %1722 = vst.msk [vmem:[#allocation2] sm:$0xff] %vm567, %v1692
      %1723 = vst.msk [vmem:[#allocation2 + $0x8] sm:$0xff] %vm567, %v1693
      %1724 = vst.msk [vmem:[#allocation2 + $0x10] sm:$0xff] %vm567, %v1694
      %1725 = vst.msk [vmem:[#allocation2 + $0x18] sm:$0xff] %vm567, %v1695
      %1726 = vst.msk [vmem:[#allocation2 + $0x20] sm:$0xff] %vm567, %v1696
      %1727 = vst.msk [vmem:[#allocation2 + $0x28] sm:$0xff] %vm567, %v1697
      %1728 = vst.msk [vmem:[#allocation2 + $0x30] sm:$0xff] %vm567, %v1698
      %1729 = vst.msk [vmem:[#allocation2 + $0x38] sm:$0xff] %vm567, %v1699
      %1730 = vst.msk [vmem:[#allocation2 + $0x40] sm:$0xff] %vm567, %v1700
      %1731 = vst.msk [vmem:[#allocation2 + $0x48] sm:$0xff] %vm567, %v1701
      %1732 = vst.msk [vmem:[#allocation2 + $0x50] sm:$0xff] %vm567, %v1702
      %1733 = vst.msk [vmem:[#allocation2 + $0x58] sm:$0xff] %vm567, %v1703
      %1734 = vst.msk [vmem:[#allocation2 + $0x60] sm:$0xff] %vm567, %v1704
      %1735 = vst.msk [vmem:[#allocation2 + $0x68] sm:$0xff] %vm567, %v1705
      %1736 = vst.msk [vmem:[#allocation2 + $0x70] sm:$0xff] %vm567, %v1706
      %1737 = vst.msk [vmem:[#allocation2 + $0x78] sm:$0xff] %vm567, %v1707
      %1738 = vst.msk [vmem:[#allocation2 + $0x80] sm:$0xff] %vm567, %v1708
      %1739 = vst.msk [vmem:[#allocation2 + $0x88] sm:$0xff] %vm567, %v1709
      %1740 = vst.msk [vmem:[#allocation2 + $0x90] sm:$0xff] %vm567, %v1710
      %1741 = vst.msk [vmem:[#allocation2 + $0x98] sm:$0xff] %vm567, %v1711
      %1742 = vst.msk [vmem:[#allocation2 + $0xa0] sm:$0xff] %vm567, %v1712
      %1743 = vst.msk [vmem:[#allocation2 + $0xa8] sm:$0xff] %vm567, %v1713
      %1744 = vst.msk [vmem:[#allocation2 + $0xb0] sm:$0xff] %vm567, %v1714
      %1745 = vst.msk [vmem:[#allocation2 + $0xb8] sm:$0xff] %vm567, %v1715
      %1746 = vst.msk [vmem:[#allocation2 + $0xc0] sm:$0xff] %vm567, %v1716
      %1747 = vst.msk [vmem:[#allocation2 + $0xc8] sm:$0xff] %vm567, %v1717
      %1748 = vst.msk [vmem:[#allocation2 + $0xd0] sm:$0xff] %vm567, %v1718
      %1749 = vst.msk [vmem:[#allocation2 + $0xd8] sm:$0xff] %vm567, %v1719
      %1750 = vst.msk [vmem:[#allocation2 + $0xe0] sm:$0xff] %vm567, %v1720
      %1751 = vst.msk [vmem:[#allocation2 + $0xe8] sm:$0xff] %vm567, %v1721
      %v1752 = vld [vmem:[#allocation2] sm:$0xff]
      %v1753 = vld [vmem:[#allocation2 + $0x8] sm:$0xff]
      %v1754 = vld [vmem:[#allocation2 + $0x10] sm:$0xff]
      %v1755 = vld [vmem:[#allocation2 + $0x18] sm:$0xff]
      %v1756 = vld [vmem:[#allocation2 + $0x20] sm:$0xff]
      %v1757 = vld [vmem:[#allocation2 + $0x28] sm:$0xff]
      %v1758 = vld [vmem:[#allocation2 + $0x30] sm:$0xff]
      %v1759 = vld [vmem:[#allocation2 + $0x38] sm:$0xff]
      %v1760 = vld [vmem:[#allocation2 + $0x40] sm:$0xff]
      %v1761 = vld [vmem:[#allocation2 + $0x48] sm:$0xff]
      %v1762 = vld [vmem:[#allocation2 + $0x50] sm:$0xff]
      %v1763 = vld [vmem:[#allocation2 + $0x58] sm:$0xff]
      %v1764 = vld [vmem:[#allocation2 + $0x60] sm:$0xff]
      %v1765 = vld [vmem:[#allocation2 + $0x68] sm:$0xff]
      %v1766 = vld [vmem:[#allocation2 + $0x70] sm:$0xff]
      %v1767 = vld [vmem:[#allocation2 + $0x78] sm:$0xff]
      %v1768 = vld [vmem:[#allocation2 + $0x80] sm:$0xff]
      %v1769 = vld [vmem:[#allocation2 + $0x88] sm:$0xff]
      %v1770 = vld [vmem:[#allocation2 + $0x90] sm:$0xff]
      %v1771 = vld [vmem:[#allocation2 + $0x98] sm:$0xff]
      %v1772 = vld [vmem:[#allocation2 + $0xa0] sm:$0xff]
      %v1773 = vld [vmem:[#allocation2 + $0xa8] sm:$0xff]
      %v1774 = vld [vmem:[#allocation2 + $0xb0] sm:$0xff]
      %v1775 = vld [vmem:[#allocation2 + $0xb8] sm:$0xff]
      %v1776 = vld [vmem:[#allocation2 + $0xc0] sm:$0xff]
      %v1777 = vld [vmem:[#allocation2 + $0xc8] sm:$0xff]
      %v1778 = vld [vmem:[#allocation2 + $0xd0] sm:$0xff]
      %v1779 = vld [vmem:[#allocation2 + $0xd8] sm:$0xff]
      %v1780 = vld [vmem:[#allocation2 + $0xe0] sm:$0xff]
      %v1781 = vld [vmem:[#allocation2 + $0xe8] sm:$0xff]
      %v1782 = vld [vmem:[#allocation2 + $0xf0] sm:$0xff]
      %v1783 = vld [vmem:[#allocation2 + $0xf8] sm:$0xff]
      %v1784 = vld [vmem:[%s298] sm:$0x1]
      %v1786 = vlaneseq
      %v1787 = vshrl.u32 %v1786, 7
      %v1788 = vsub.s32 0, %v1787
      %v1789 = vrot.slane %v1784, %v1788
      %v1791 = vmul.f32 %v1752, %v1789
      %v1792 = vmul.f32 %v1753, %v1789
      %v1793 = vmul.f32 %v1754, %v1789
      %v1794 = vmul.f32 %v1755, %v1789
      %v1795 = vmul.f32 %v1756, %v1789
      %v1796 = vmul.f32 %v1757, %v1789
      %v1797 = vmul.f32 %v1758, %v1789
      %v1798 = vmul.f32 %v1759, %v1789
      %v1799 = vmul.f32 %v1760, %v1789
      %v1800 = vmul.f32 %v1761, %v1789
      %v1801 = vmul.f32 %v1762, %v1789
      %v1802 = vmul.f32 %v1763, %v1789
      %v1803 = vmul.f32 %v1764, %v1789
      %v1804 = vmul.f32 %v1765, %v1789
      %v1805 = vmul.f32 %v1766, %v1789
      %v1806 = vmul.f32 %v1767, %v1789
      %v1807 = vmul.f32 %v1768, %v1789
      %v1808 = vmul.f32 %v1769, %v1789
      %v1809 = vmul.f32 %v1770, %v1789
      %v1810 = vmul.f32 %v1771, %v1789
      %v1811 = vmul.f32 %v1772, %v1789
      %v1812 = vmul.f32 %v1773, %v1789
      %v1813 = vmul.f32 %v1774, %v1789
      %v1814 = vmul.f32 %v1775, %v1789
      %v1815 = vmul.f32 %v1776, %v1789
      %v1816 = vmul.f32 %v1777, %v1789
      %v1817 = vmul.f32 %v1778, %v1789
      %v1818 = vmul.f32 %v1779, %v1789
      %v1819 = vmul.f32 %v1780, %v1789
      %v1820 = vmul.f32 %v1781, %v1789
      %v1821 = vmul.f32 %v1782, %v1789
      %v1822 = vmul.f32 %v1783, %v1789
      %v1823 = vld [vmem:[%s301] sm:$0x1]
      %v1825 = vlaneseq
      %v1826 = vshrl.u32 %v1825, 7
      %v1827 = vsub.s32 0, %v1826
      %v1828 = vrot.slane %v1823, %v1827
      %v1830 = vadd.f32 %v1791, %v1828
      %v1831 = vadd.f32 %v1792, %v1828
      %v1832 = vadd.f32 %v1793, %v1828
      %v1833 = vadd.f32 %v1794, %v1828
      %v1834 = vadd.f32 %v1795, %v1828
      %v1835 = vadd.f32 %v1796, %v1828
      %v1836 = vadd.f32 %v1797, %v1828
      %v1837 = vadd.f32 %v1798, %v1828
      %v1838 = vadd.f32 %v1799, %v1828
      %v1839 = vadd.f32 %v1800, %v1828
      %v1840 = vadd.f32 %v1801, %v1828
      %v1841 = vadd.f32 %v1802, %v1828
      %v1842 = vadd.f32 %v1803, %v1828
      %v1843 = vadd.f32 %v1804, %v1828
      %v1844 = vadd.f32 %v1805, %v1828
      %v1845 = vadd.f32 %v1806, %v1828
      %v1846 = vadd.f32 %v1807, %v1828
      %v1847 = vadd.f32 %v1808, %v1828
      %v1848 = vadd.f32 %v1809, %v1828
      %v1849 = vadd.f32 %v1810, %v1828
      %v1850 = vadd.f32 %v1811, %v1828
      %v1851 = vadd.f32 %v1812, %v1828
      %v1852 = vadd.f32 %v1813, %v1828
      %v1853 = vadd.f32 %v1814, %v1828
      %v1854 = vadd.f32 %v1815, %v1828
      %v1855 = vadd.f32 %v1816, %v1828
      %v1856 = vadd.f32 %v1817, %v1828
      %v1857 = vadd.f32 %v1818, %v1828
      %v1858 = vadd.f32 %v1819, %v1828
      %v1859 = vadd.f32 %v1820, %v1828
      %v1860 = vadd.f32 %v1821, %v1828
      %v1861 = vadd.f32 %v1822, %v1828
      %v1862 = vmax.f32 %v1830, 0.0
      %v1863 = vmax.f32 %v1831, 0.0
      %v1864 = vmax.f32 %v1832, 0.0
      %v1865 = vmax.f32 %v1833, 0.0
      %v1866 = vmax.f32 %v1834, 0.0
      %v1867 = vmax.f32 %v1835, 0.0
      %v1868 = vmax.f32 %v1836, 0.0
      %v1869 = vmax.f32 %v1837, 0.0
      %v1870 = vmax.f32 %v1838, 0.0
      %v1871 = vmax.f32 %v1839, 0.0
      %v1872 = vmax.f32 %v1840, 0.0
      %v1873 = vmax.f32 %v1841, 0.0
      %v1874 = vmax.f32 %v1842, 0.0
      %v1875 = vmax.f32 %v1843, 0.0
      %v1876 = vmax.f32 %v1844, 0.0
      %v1877 = vmax.f32 %v1845, 0.0
      %v1878 = vmax.f32 %v1846, 0.0
      %v1879 = vmax.f32 %v1847, 0.0
      %v1880 = vmax.f32 %v1848, 0.0
      %v1881 = vmax.f32 %v1849, 0.0
      %v1882 = vmax.f32 %v1850, 0.0
      %v1883 = vmax.f32 %v1851, 0.0
      %v1884 = vmax.f32 %v1852, 0.0
      %v1885 = vmax.f32 %v1853, 0.0
      %v1886 = vmax.f32 %v1854, 0.0
      %v1887 = vmax.f32 %v1855, 0.0
      %v1888 = vmax.f32 %v1856, 0.0
      %v1889 = vmax.f32 %v1857, 0.0
      %v1890 = vmax.f32 %v1858, 0.0
      %v1891 = vmax.f32 %v1859, 0.0
      %v1892 = vmax.f32 %v1860, 0.0
      %v1893 = vmax.f32 %v1861, 0.0
      %v1894 = vpack.c.bf16 %v1863, %v1862
      %v1895 = vpack.c.bf16 %v1865, %v1864
      %v1896 = vpack.c.bf16 %v1867, %v1866
      %v1897 = vpack.c.bf16 %v1869, %v1868
      %v1898 = vpack.c.bf16 %v1871, %v1870
      %v1899 = vpack.c.bf16 %v1873, %v1872
      %v1900 = vpack.c.bf16 %v1875, %v1874
      %v1901 = vpack.c.bf16 %v1877, %v1876
      %v1902 = vpack.c.bf16 %v1879, %v1878
      %v1903 = vpack.c.bf16 %v1881, %v1880
      %v1904 = vpack.c.bf16 %v1883, %v1882
      %v1905 = vpack.c.bf16 %v1885, %v1884
      %v1906 = vpack.c.bf16 %v1887, %v1886
      %v1907 = vpack.c.bf16 %v1889, %v1888
      %v1908 = vpack.c.bf16 %v1891, %v1890
      %v1909 = vpack.c.bf16 %v1893, %v1892
      %v1926 = vunpack.c.l.b16 %v1894
      %v1927 = vunpack.c.h.b16 %v1894
      %v1928 = vunpack.c.l.b16 %v1895
      %v1929 = vunpack.c.h.b16 %v1895
      %v1930 = vunpack.c.l.b16 %v1896
      %v1931 = vunpack.c.h.b16 %v1896
      %v1932 = vunpack.c.l.b16 %v1897
      %v1933 = vunpack.c.h.b16 %v1897
      %v1934 = vunpack.c.l.b16 %v1898
      %v1935 = vunpack.c.h.b16 %v1898
      %v1936 = vunpack.c.l.b16 %v1899
      %v1937 = vunpack.c.h.b16 %v1899
      %v1938 = vunpack.c.l.b16 %v1900
      %v1939 = vunpack.c.h.b16 %v1900
      %v1940 = vunpack.c.l.b16 %v1901
      %v1941 = vunpack.c.h.b16 %v1901
      %v1942 = vunpack.c.l.b16 %v1902
      %v1943 = vunpack.c.h.b16 %v1902
      %v1944 = vunpack.c.l.b16 %v1903
      %v1945 = vunpack.c.h.b16 %v1903
      %v1946 = vunpack.c.l.b16 %v1904
      %v1947 = vunpack.c.h.b16 %v1904
      %v1948 = vunpack.c.l.b16 %v1905
      %v1949 = vunpack.c.h.b16 %v1905
      %v1950 = vunpack.c.l.b16 %v1906
      %v1951 = vunpack.c.h.b16 %v1906
      %v1952 = vunpack.c.l.b16 %v1907
      %v1953 = vunpack.c.h.b16 %v1907
      %v1954 = vunpack.c.l.b16 %v1908
      %v1955 = vunpack.c.h.b16 %v1908
      %v1956 = vunpack.c.l.b16 %v1909
      %v1957 = vunpack.c.h.b16 %v1909
      %v1958 = vpack.c.b16 %v1926, %v1926
      %v1959 = vpack.c.b16 %v1927, %v1927
      %v1960 = vpack.c.b16 %v1928, %v1928
      %v1961 = vpack.c.b16 %v1929, %v1929
      %v1962 = vpack.c.b16 %v1930, %v1930
      %v1963 = vpack.c.b16 %v1931, %v1931
      %v1964 = vpack.c.b16 %v1932, %v1932
      %v1965 = vpack.c.b16 %v1933, %v1933
      %v1966 = vpack.c.b16 %v1934, %v1934
      %v1967 = vpack.c.b16 %v1935, %v1935
      %v1968 = vpack.c.b16 %v1936, %v1936
      %v1969 = vpack.c.b16 %v1937, %v1937
      %v1970 = vpack.c.b16 %v1938, %v1938
      %v1971 = vpack.c.b16 %v1939, %v1939
      %v1972 = vpack.c.b16 %v1940, %v1940
      %v1973 = vpack.c.b16 %v1941, %v1941
      %v1974 = vpack.c.b16 %v1942, %v1942
      %v1975 = vpack.c.b16 %v1943, %v1943
      %v1976 = vpack.c.b16 %v1944, %v1944
      %v1977 = vpack.c.b16 %v1945, %v1945
      %v1978 = vpack.c.b16 %v1946, %v1946
      %v1979 = vpack.c.b16 %v1947, %v1947
      %v1980 = vpack.c.b16 %v1948, %v1948
      %v1981 = vpack.c.b16 %v1949, %v1949
      %v1982 = vpack.c.b16 %v1950, %v1950
      %v1983 = vpack.c.b16 %v1951, %v1951
      %v1984 = vpack.c.b16 %v1952, %v1952
      %v1985 = vpack.c.b16 %v1953, %v1953
      %v1986 = vpack.c.b16 %v1954, %v1954
      %v1987 = vpack.c.b16 %v1955, %v1955
      %v1988 = vpack.c.b16 %v1956, %v1956
      %v1989 = vpack.c.b16 %v1957, %v1957
      %vm2022 = vcmask 27648
      %2023 = vst.msk [vmem:[%s309] sm:$0xf] %vm2022, %v1958
      %2024 = vst.msk [vmem:[%s309 + $0x4] sm:$0xf] %vm2022, %v1959
      %2025 = vst.msk [vmem:[%s309 + $0x8] sm:$0xf] %vm2022, %v1960
      %2026 = vst.msk [vmem:[%s309 + $0xc] sm:$0xf] %vm2022, %v1961
      %2027 = vst.msk [vmem:[%s309 + $0x10] sm:$0xf] %vm2022, %v1962
      %2028 = vst.msk [vmem:[%s309 + $0x14] sm:$0xf] %vm2022, %v1963
      %2029 = vst.msk [vmem:[%s309 + $0x18] sm:$0xf] %vm2022, %v1964
      %2030 = vst.msk [vmem:[%s309 + $0x1c] sm:$0xf] %vm2022, %v1965
      %2031 = vst.msk [vmem:[%s309 + $0x20] sm:$0xf] %vm2022, %v1966
      %2032 = vst.msk [vmem:[%s309 + $0x24] sm:$0xf] %vm2022, %v1967
      %2033 = vst.msk [vmem:[%s309 + $0x28] sm:$0xf] %vm2022, %v1968
      %2034 = vst.msk [vmem:[%s309 + $0x2c] sm:$0xf] %vm2022, %v1969
      %2035 = vst.msk [vmem:[%s309 + $0x30] sm:$0xf] %vm2022, %v1970
      %2036 = vst.msk [vmem:[%s309 + $0x34] sm:$0xf] %vm2022, %v1971
      %2037 = vst.msk [vmem:[%s309 + $0x38] sm:$0xf] %vm2022, %v1972
      %2038 = vst.msk [vmem:[%s309 + $0x3c] sm:$0xf] %vm2022, %v1973
      %2039 = vst.msk [vmem:[%s309 + $0x40] sm:$0xf] %vm2022, %v1974
      %2040 = vst.msk [vmem:[%s309 + $0x44] sm:$0xf] %vm2022, %v1975
      %2041 = vst.msk [vmem:[%s309 + $0x48] sm:$0xf] %vm2022, %v1976
      %2042 = vst.msk [vmem:[%s309 + $0x4c] sm:$0xf] %vm2022, %v1977
      %2043 = vst.msk [vmem:[%s309 + $0x50] sm:$0xf] %vm2022, %v1978
      %2044 = vst.msk [vmem:[%s309 + $0x54] sm:$0xf] %vm2022, %v1979
      %2045 = vst.msk [vmem:[%s309 + $0x58] sm:$0xf] %vm2022, %v1980
      %2046 = vst.msk [vmem:[%s309 + $0x5c] sm:$0xf] %vm2022, %v1981
      %2047 = vst.msk [vmem:[%s309 + $0x60] sm:$0xf] %vm2022, %v1982
      %2048 = vst.msk [vmem:[%s309 + $0x64] sm:$0xf] %vm2022, %v1983
      %2049 = vst.msk [vmem:[%s309 + $0x68] sm:$0xf] %vm2022, %v1984
      %2050 = vst.msk [vmem:[%s309 + $0x6c] sm:$0xf] %vm2022, %v1985
      %2051 = vst.msk [vmem:[%s309 + $0x70] sm:$0xf] %vm2022, %v1986
      %2052 = vst.msk [vmem:[%s309 + $0x74] sm:$0xf] %vm2022, %v1987
      %2053 = vst.msk [vmem:[%s309 + $0x78] sm:$0xf] %vm2022, %v1988
      %2054 = vst.msk [vmem:[%s309 + $0x7c] sm:$0xf] %vm2022, %v1989
      %p2055 = scmp.lt.s32.totalorder %s20, 1
      %s2056 = scalar_select %p2055, %s20, 1
      %p2057 = scmp.lt.s32.totalorder %s21, 0
      %s2058 = scalar_select %p2057, %s21, 0
      %s2059 = smul.addr %s2056, 32
      %s2060 = sadd.s32 %s2058, %s2059
      %s2061 = smul.addr %s2060, 4
      %s2062 = scalar_lea.vmem %s5, %s2061
      // Predicated region
      $region41: #{up_forward.4} parent=39 // pred_check
        %p2063 = pneg %p178
      $region42: #{up_forward.4} parent=39 // pred_check_branch
        %2065 = sbr.rel (%p2063) target = $region44
      $region43: #{up_forward.4} parent=39 // pred_region
        _
      $region44: #{up_forward.4} parent=39 // pred_fallthru
        _
    $region40: #{up_forward.4} parent=5 // pred_fallthru
      _
    %p2066 = scmp.le.s32.totalorder 2, %s11
    // Predicated region
    $region45: #{up_forward.4} parent=5 // pred_check
      %p2067 = pneg %p2066
    $region46: #{up_forward.4} parent=5 // pred_check_branch
      %2069 = sbr.rel (%p2067) target = $region48
    $region47: #{up_forward.4} parent=5 // pred_region
      %s2070 = ssub.s32 %s11, 2
      // Predicated region
      $region49: #{up_forward.4} parent=47 // pred_check
        %p2071 = pneg %p184
      $region50: #{up_forward.4} parent=47 // pred_check_branch
        %2073 = sbr.rel (%p2071) target = $region52
      $region51: #{up_forward.4} parent=47 // pred_region
        %p2074 = scmp.lt.s32.totalorder %s22, 1
        %s2075 = scalar_select %p2074, %s22, 1
        %p2076 = scmp.lt.s32.totalorder %s23, 0
        %s2077 = scalar_select %p2076, %s23, 0
        %s2078 = smul.addr %s2075, 32
        %s2079 = sadd.s32 %s2077, %s2078
        %s2080 = smul.addr %s2079, 4
        %s2081 = scalar_lea.vmem %s5, %s2080
      $region52: #{up_forward.4} parent=47 // pred_fallthru
        _
    $region48: #{up_forward.4} parent=5 // pred_fallthru
      _
  $region6: #{up_forward.4} parent=0 // loop_footer
    %s15 = sadd.s32 1, %s11
  $region7: #{up_forward.4} parent=0 // loop_footer_branch
    %10 = sbr.rel target = $region3
  $region8: #{up_forward.4} parent=0 // loop_exit
    _

</llo_original>
